<compile_context>
chip_gen: v6e
topology: v6e:2x2x1
jax: 0.10.0
libtpu: 0.0.40
codegen_flags: <defaults>
</compile_context>

<pallas_src>
import functools

import jax
import jax.numpy as jnp
from jax import lax
from jax.experimental import pallas as pl
from jax.experimental.pallas import tpu as pltpu


def _spatial_attention_kernel(x_ref, w_ref, o_ref, *, K, H, W, C, Bt):
    """x_ref: (Bt, C, H, W) unpadded input block, native dtype (VMEM).
       w_ref: (2, K*K) f32 tap weights, row 0 = avg-channel, row 1 = max-channel (SMEM).
       o_ref: (Bt, H, W) f32 sigmoid attention block (VMEM)."""
    P = K // 2
    inv_c = jnp.float32(1.0 / C)

    for b in range(Bt):  # Bt is small & static -> simple unrolled loop
        # ---- fused single-pass channel pooling: one sweep over C builds sum AND max ----
        first = x_ref[b, 0].astype(jnp.float32)            # cast in-kernel, per plane

        def pool_body(c, carry):
            s, m = carry
            v = x_ref[b, c].astype(jnp.float32)            # (H, W)
            return s + v, jnp.maximum(m, v)

        s, mx = lax.fori_loop(1, C, pool_body, (first, first))
        avg = s * inv_c                                    # mean over channels, (H, W)

        # ---- zero-pad only the two tiny pooled planes, in-kernel (no HBM pad copy) ----
        zrow = jnp.zeros((P, W), jnp.float32)
        zcol = jnp.zeros((H + 2 * P, P), jnp.float32)

        def pad2d(p):
            p = jnp.concatenate([zrow, p, zrow], axis=0)   # sublane concat (cheap)
            return jnp.concatenate([zcol, p, zcol], axis=1)  # lane concat (once per plane)

        avg_p = pad2d(avg)                                 # (H+2P, W+2P)
        mx_p = pad2d(mx)

        # ---- 7x7 conv as 49x2 scalar*plane FMAs; lane (kw) shift hoisted out of inner loop ----
        acc = jnp.zeros((H, W), jnp.float32)
        for kw in range(K):                                # 2*K lane-offset slices in total
            avg_kw = avg_p[:, kw:kw + W]                   # (H+2P, W)
            mx_kw = mx_p[:, kw:kw + W]
            for kh in range(K):                            # cheap sublane slices
                t = kh * K + kw
                acc = acc + w_ref[0, t] * avg_kw[kh:kh + H, :]
                acc = acc + w_ref[1, t] * mx_kw[kh:kh + H, :]

        # exact sigmoid (exp on the EUP); keeps the 2e-5 tolerance vs the f32 reference
        o_ref[b] = 1.0 / (1.0 + jnp.exp(-acc))


def spatial_attention(x_nchw, w_oihw):
    """x_nchw: (B, C, H, W), any float dtype (cast happens in-kernel).
       w_oihw: (1, 2, K, K) conv weight (bias=False).
       Returns the attention map (B, 1, H, W) in float32, matching SpatialAttention.forward."""
    B, C, H, W = x_nchw.shape
    Cout, Cin, K, K2 = w_oihw.shape
    assert Cout == 1 and Cin == 2 and K == K2 and K % 2 == 1

    # Pick how many batch elements to process per grid step: amortize per-step overhead while
    # keeping the (lane/sublane-padded) double-buffered block comfortably inside VMEM on all gens.
    h_pad = -(-H // 8) * 8
    w_pad = -(-W // 128) * 128
    padded_per_batch = C * h_pad * w_pad * x_nchw.dtype.itemsize
    Bt = 1
    for cand in range(1, min(B, 8) + 1):
        if B % cand == 0 and cand * padded_per_batch <= (2 << 20):
            Bt = cand
    grid = (B // Bt,)

    # 98 tap weights as scalars in SMEM: [avg-channel taps ; max-channel taps]
    w_smem = w_oihw.astype(jnp.float32).reshape(2, K * K)

    kernel = functools.partial(_spatial_attention_kernel, K=K, H=H, W=W, C=C, Bt=Bt)
    att = pl.pallas_call(
        kernel,
        out_shape=jax.ShapeDtypeStruct((B, H, W), jnp.float32),
        grid=grid,
        in_specs=[
            pl.BlockSpec((Bt, C, H, W), lambda i: (i, 0, 0, 0)),
            pl.BlockSpec(memory_space=pltpu.MemorySpace.SMEM),
        ],
        out_specs=pl.BlockSpec((Bt, H, W), lambda i: (i, 0, 0)),
        compiler_params=pltpu.CompilerParams(dimension_semantics=("parallel",)),
    )(x_nchw, w_smem)
    return att.reshape(B, 1, H, W)


def spatial_attention_reference(x, w):
    """Pure-JAX reference matching the PyTorch module."""
    avg = jnp.mean(x, axis=1, keepdims=True)
    mx = jnp.max(x, axis=1, keepdims=True)
    comb = jnp.concatenate([avg, mx], axis=1)
    P = w.shape[-1] // 2
    y = jax.lax.conv_general_dilated(
        comb, w, window_strides=(1, 1), padding=((P, P), (P, P)),
        dimension_numbers=("NCHW", "OIHW", "NCHW"))
    return jax.nn.sigmoid(y)


if __name__ == "__main__":
    key = jax.random.PRNGKey(0)
    kx, kw = jax.random.split(key)
    B, C, H, W, K = 2, 4, 16, 16, 7
    x = jax.random.normal(kx, (B, C, H, W), jnp.float32)
    w = jax.random.normal(kw, (1, 2, K, K), jnp.float32) / jnp.sqrt(2.0 * K * K)

    fwd = jax.jit(spatial_attention)
    att = jax.block_until_ready(fwd(x, w))

    assert att.shape == (B, 1, H, W)
    assert bool(jnp.all(jnp.isfinite(att)))
    assert bool(jnp.all((att >= 0.0) & (att <= 1.0)))

    ref = spatial_attention_reference(x, w)
    assert bool(jnp.allclose(att, ref, atol=2e-5, rtol=2e-5)), "mismatch vs JAX reference"

    print("KERNEL_OK")
</pallas_src>

<mosaic_0001>
module attributes {stable_mosaic.version = 11 : i64} {
  func.func @_spatial_attention_kernel(%arg0: i32, %arg1: memref<2x4x16x16xf32, #tpu.memory_space<vmem>>, %arg2: memref<2x49xf32, #tpu.memory_space<smem>>, %arg3: memref<2x16x16xf32, #tpu.memory_space<vmem>>) attributes {dimension_semantics = [#tpu.dimension_semantics<parallel>], iteration_bounds = array<i64: 1>, scalar_prefetch = 0 : i64, scratch_operands = 0 : i64, tpu.core_type = #tpu.core_type<tc>, window_params = [{transform_indices = @transform_0, window_bounds = array<i64: 2, 4, 16, 16>}, {transform_indices = @transform_1, window_bounds = array<i64: 2, 49>}, {transform_indices = @transform_2, window_bounds = array<i64: 2, 16, 16>}]} {
    %c0 = arith.constant 0 : index
    %c0_0 = arith.constant 0 : index
    %c0_1 = arith.constant 0 : index
    %c0_2 = arith.constant 0 : index
    %0 = vector.load %arg1[%c0, %c0_0, %c0_1, %c0_2] : memref<2x4x16x16xf32, #tpu.memory_space<vmem>>, vector<1x1x16x16xf32>
    %1 = vector.shape_cast %0 : vector<1x1x16x16xf32> to vector<16x16xf32>
    %c1_i32 = arith.constant 1 : i32
    %c3_i32 = arith.constant 3 : i32
    %2 = arith.addi %c1_i32, %c3_i32 : i32
    %c1_i32_3 = arith.constant 1 : i32
    %3:2 = scf.for %arg4 = %c1_i32 to %2 step %c1_i32_3 iter_args(%arg5 = %1, %arg6 = %1) -> (vector<16x16xf32>, vector<16x16xf32>)  : i32 {
      %c0_376 = arith.constant 0 : index
      %1054 = arith.index_cast %arg4 : i32 to index
      %c0_377 = arith.constant 0 : index
      %c0_378 = arith.constant 0 : index
      %1055 = vector.load %arg1[%c0_376, %1054, %c0_377, %c0_378] : memref<2x4x16x16xf32, #tpu.memory_space<vmem>>, vector<1x1x16x16xf32>
      %1056 = vector.shape_cast %1055 : vector<1x1x16x16xf32> to vector<16x16xf32>
      %1057 = arith.addf %arg5, %1056 : vector<16x16xf32>
      %1058 = arith.maximumf %arg6, %1056 : vector<16x16xf32>
      scf.yield %1057, %1058 : vector<16x16xf32>, vector<16x16xf32>
    }
    %c3_i32_4 = arith.constant 3 : i32
    %cst = arith.constant 2.500000e-01 : f32
    %4 = vector.broadcast %cst : f32 to vector<16x16xf32>
    %5 = arith.mulf %3#0, %4 : vector<16x16xf32>
    %cst_5 = arith.constant 0.000000e+00 : f32
    %6 = vector.broadcast %cst_5 : f32 to vector<3x16xf32>
    %cst_6 = arith.constant 0.000000e+00 : f32
    %7 = vector.broadcast %cst_6 : f32 to vector<22x3xf32>
    %8 = tpu.concatenate %6, %5, %6 in 0 : vector<3x16xf32>, vector<16x16xf32>, vector<3x16xf32> -> vector<22x16xf32>
    %9 = tpu.concatenate %7, %8, %7 in 1 : vector<22x3xf32>, vector<22x16xf32>, vector<22x3xf32> -> vector<22x22xf32>
    %10 = tpu.concatenate %6, %3#1, %6 in 0 : vector<3x16xf32>, vector<16x16xf32>, vector<3x16xf32> -> vector<22x16xf32>
    %11 = tpu.concatenate %7, %10, %7 in 1 : vector<22x3xf32>, vector<22x16xf32>, vector<22x3xf32> -> vector<22x22xf32>
    %cst_7 = arith.constant 0.000000e+00 : f32
    %12 = vector.broadcast %cst_7 : f32 to vector<16x16xf32>
    %13 = vector.extract_strided_slice %9 {offsets = [0, 0], sizes = [22, 16], strides = [1, 1]} : vector<22x22xf32> to vector<22x16xf32>
    %14 = vector.extract_strided_slice %11 {offsets = [0, 0], sizes = [22, 16], strides = [1, 1]} : vector<22x22xf32> to vector<22x16xf32>
    %c0_8 = arith.constant 0 : index
    %c0_9 = arith.constant 0 : index
    %15 = memref.load %arg2[%c0_8, %c0_9] : memref<2x49xf32, #tpu.memory_space<smem>>
    %16 = vector.extract_strided_slice %13 {offsets = [0, 0], sizes = [16, 16], strides = [1, 1]} : vector<22x16xf32> to vector<16x16xf32>
    %17 = vector.broadcast %15 : f32 to vector<16x16xf32>
    %18 = arith.mulf %17, %16 : vector<16x16xf32>
    %19 = arith.addf %12, %18 : vector<16x16xf32>
    %c1 = arith.constant 1 : index
    %c0_10 = arith.constant 0 : index
    %20 = memref.load %arg2[%c1, %c0_10] : memref<2x49xf32, #tpu.memory_space<smem>>
    %21 = vector.extract_strided_slice %14 {offsets = [0, 0], sizes = [16, 16], strides = [1, 1]} : vector<22x16xf32> to vector<16x16xf32>
    %22 = vector.broadcast %20 : f32 to vector<16x16xf32>
    %23 = arith.mulf %22, %21 : vector<16x16xf32>
    %24 = arith.addf %19, %23 : vector<16x16xf32>
    %c0_11 = arith.constant 0 : index
    %c7 = arith.constant 7 : index
    %25 = memref.load %arg2[%c0_11, %c7] : memref<2x49xf32, #tpu.memory_space<smem>>
    %26 = vector.extract_strided_slice %13 {offsets = [1, 0], sizes = [16, 16], strides = [1, 1]} : vector<22x16xf32> to vector<16x16xf32>
    %27 = vector.broadcast %25 : f32 to vector<16x16xf32>
    %28 = arith.mulf %27, %26 : vector<16x16xf32>
    %29 = arith.addf %24, %28 : vector<16x16xf32>
    %c1_12 = arith.constant 1 : index
    %c7_13 = arith.constant 7 : index
    %30 = memref.load %arg2[%c1_12, %c7_13] : memref<2x49xf32, #tpu.memory_space<smem>>
    %31 = vector.extract_strided_slice %14 {offsets = [1, 0], sizes = [16, 16], strides = [1, 1]} : vector<22x16xf32> to vector<16x16xf32>
    %32 = vector.broadcast %30 : f32 to vector<16x16xf32>
    %33 = arith.mulf %32, %31 : vector<16x16xf32>
    %34 = arith.addf %29, %33 : vector<16x16xf32>
    %c0_14 = arith.constant 0 : index
    %c14 = arith.constant 14 : index
    %35 = memref.load %arg2[%c0_14, %c14] : memref<2x49xf32, #tpu.memory_space<smem>>
    %36 = vector.extract_strided_slice %13 {offsets = [2, 0], sizes = [16, 16], strides = [1, 1]} : vector<22x16xf32> to vector<16x16xf32>
    %37 = vector.broadcast %35 : f32 to vector<16x16xf32>
    %38 = arith.mulf %37, %36 : vector<16x16xf32>
    %39 = arith.addf %34, %38 : vector<16x16xf32>
    %c1_15 = arith.constant 1 : index
    %c14_16 = arith.constant 14 : index
    %40 = memref.load %arg2[%c1_15, %c14_16] : memref<2x49xf32, #tpu.memory_space<smem>>
    %41 = vector.extract_strided_slice %14 {offsets = [2, 0], sizes = [16, 16], strides = [1, 1]} : vector<22x16xf32> to vector<16x16xf32>
    %42 = vector.broadcast %40 : f32 to vector<16x16xf32>
    %43 = arith.mulf %42, %41 : vector<16x16xf32>
    %44 = arith.addf %39, %43 : vector<16x16xf32>
    %c0_17 = arith.constant 0 : index
    %c21 = arith.constant 21 : index
    %45 = memref.load %arg2[%c0_17, %c21] : memref<2x49xf32, #tpu.memory_space<smem>>
    %46 = vector.extract_strided_slice %13 {offsets = [3, 0], sizes = [16, 16], strides = [1, 1]} : vector<22x16xf32> to vector<16x16xf32>
    %47 = vector.broadcast %45 : f32 to vector<16x16xf32>
    %48 = arith.mulf %47, %46 : vector<16x16xf32>
    %49 = arith.addf %44, %48 : vector<16x16xf32>
    %c1_18 = arith.constant 1 : index
    %c21_19 = arith.constant 21 : index
    %50 = memref.load %arg2[%c1_18, %c21_19] : memref<2x49xf32, #tpu.memory_space<smem>>
    %51 = vector.extract_strided_slice %14 {offsets = [3, 0], sizes = [16, 16], strides = [1, 1]} : vector<22x16xf32> to vector<16x16xf32>
    %52 = vector.broadcast %50 : f32 to vector<16x16xf32>
    %53 = arith.mulf %52, %51 : vector<16x16xf32>
    %54 = arith.addf %49, %53 : vector<16x16xf32>
    %c0_20 = arith.constant 0 : index
    %c28 = arith.constant 28 : index
    %55 = memref.load %arg2[%c0_20, %c28] : memref<2x49xf32, #tpu.memory_space<smem>>
    %56 = vector.extract_strided_slice %13 {offsets = [4, 0], sizes = [16, 16], strides = [1, 1]} : vector<22x16xf32> to vector<16x16xf32>
    %57 = vector.broadcast %55 : f32 to vector<16x16xf32>
    %58 = arith.mulf %57, %56 : vector<16x16xf32>
    %59 = arith.addf %54, %58 : vector<16x16xf32>
    %c1_21 = arith.constant 1 : index
    %c28_22 = arith.constant 28 : index
    %60 = memref.load %arg2[%c1_21, %c28_22] : memref<2x49xf32, #tpu.memory_space<smem>>
    %61 = vector.extract_strided_slice %14 {offsets = [4, 0], sizes = [16, 16], strides = [1, 1]} : vector<22x16xf32> to vector<16x16xf32>
    %62 = vector.broadcast %60 : f32 to vector<16x16xf32>
    %63 = arith.mulf %62, %61 : vector<16x16xf32>
    %64 = arith.addf %59, %63 : vector<16x16xf32>
    %c0_23 = arith.constant 0 : index
    %c35 = arith.constant 35 : index
    %65 = memref.load %arg2[%c0_23, %c35] : memref<2x49xf32, #tpu.memory_space<smem>>
    %66 = vector.extract_strided_slice %13 {offsets = [5, 0], sizes = [16, 16], strides = [1, 1]} : vector<22x16xf32> to vector<16x16xf32>
    %67 = vector.broadcast %65 : f32 to vector<16x16xf32>
    %68 = arith.mulf %67, %66 : vector<16x16xf32>
    %69 = arith.addf %64, %68 : vector<16x16xf32>
    %c1_24 = arith.constant 1 : index
    %c35_25 = arith.constant 35 : index
    %70 = memref.load %arg2[%c1_24, %c35_25] : memref<2x49xf32, #tpu.memory_space<smem>>
    %71 = vector.extract_strided_slice %14 {offsets = [5, 0], sizes = [16, 16], strides = [1, 1]} : vector<22x16xf32> to vector<16x16xf32>
    %72 = vector.broadcast %70 : f32 to vector<16x16xf32>
    %73 = arith.mulf %72, %71 : vector<16x16xf32>
    %74 = arith.addf %69, %73 : vector<16x16xf32>
    %c0_26 = arith.constant 0 : index
    %c42 = arith.constant 42 : index
    %75 = memref.load %arg2[%c0_26, %c42] : memref<2x49xf32, #tpu.memory_space<smem>>
    %76 = vector.extract_strided_slice %13 {offsets = [6, 0], sizes = [16, 16], strides = [1, 1]} : vector<22x16xf32> to vector<16x16xf32>
    %77 = vector.broadcast %75 : f32 to vector<16x16xf32>
    %78 = arith.mulf %77, %76 : vector<16x16xf32>
    %79 = arith.addf %74, %78 : vector<16x16xf32>
    %c1_27 = arith.constant 1 : index
    %c42_28 = arith.constant 42 : index
    %80 = memref.load %arg2[%c1_27, %c42_28] : memref<2x49xf32, #tpu.memory_space<smem>>
    %81 = vector.extract_strided_slice %14 {offsets = [6, 0], sizes = [16, 16], strides = [1, 1]} : vector<22x16xf32> to vector<16x16xf32>
    %82 = vector.broadcast %80 : f32 to vector<16x16xf32>
    %83 = arith.mulf %82, %81 : vector<16x16xf32>
    %84 = arith.addf %79, %83 : vector<16x16xf32>
    %85 = vector.extract_strided_slice %9 {offsets = [0, 1], sizes = [22, 16], strides = [1, 1]} : vector<22x22xf32> to vector<22x16xf32>
    %86 = vector.extract_strided_slice %11 {offsets = [0, 1], sizes = [22, 16], strides = [1, 1]} : vector<22x22xf32> to vector<22x16xf32>
    %c0_29 = arith.constant 0 : index
    %c1_30 = arith.constant 1 : index
    %87 = memref.load %arg2[%c0_29, %c1_30] : memref<2x49xf32, #tpu.memory_space<smem>>
    %88 = vector.extract_strided_slice %85 {offsets = [0, 0], sizes = [16, 16], strides = [1, 1]} : vector<22x16xf32> to vector<16x16xf32>
    %89 = vector.broadcast %87 : f32 to vector<16x16xf32>
    %90 = arith.mulf %89, %88 : vector<16x16xf32>
    %91 = arith.addf %84, %90 : vector<16x16xf32>
    %c1_31 = arith.constant 1 : index
    %c1_32 = arith.constant 1 : index
    %92 = memref.load %arg2[%c1_31, %c1_32] : memref<2x49xf32, #tpu.memory_space<smem>>
    %93 = vector.extract_strided_slice %86 {offsets = [0, 0], sizes = [16, 16], strides = [1, 1]} : vector<22x16xf32> to vector<16x16xf32>
    %94 = vector.broadcast %92 : f32 to vector<16x16xf32>
    %95 = arith.mulf %94, %93 : vector<16x16xf32>
    %96 = arith.addf %91, %95 : vector<16x16xf32>
    %c0_33 = arith.constant 0 : index
    %c8 = arith.constant 8 : index
    %97 = memref.load %arg2[%c0_33, %c8] : memref<2x49xf32, #tpu.memory_space<smem>>
    %98 = vector.extract_strided_slice %85 {offsets = [1, 0], sizes = [16, 16], strides = [1, 1]} : vector<22x16xf32> to vector<16x16xf32>
    %99 = vector.broadcast %97 : f32 to vector<16x16xf32>
    %100 = arith.mulf %99, %98 : vector<16x16xf32>
    %101 = arith.addf %96, %100 : vector<16x16xf32>
    %c1_34 = arith.constant 1 : index
    %c8_35 = arith.constant 8 : index
    %102 = memref.load %arg2[%c1_34, %c8_35] : memref<2x49xf32, #tpu.memory_space<smem>>
    %103 = vector.extract_strided_slice %86 {offsets = [1, 0], sizes = [16, 16], strides = [1, 1]} : vector<22x16xf32> to vector<16x16xf32>
    %104 = vector.broadcast %102 : f32 to vector<16x16xf32>
    %105 = arith.mulf %104, %103 : vector<16x16xf32>
    %106 = arith.addf %101, %105 : vector<16x16xf32>
    %c0_36 = arith.constant 0 : index
    %c15 = arith.constant 15 : index
    %107 = memref.load %arg2[%c0_36, %c15] : memref<2x49xf32, #tpu.memory_space<smem>>
    %108 = vector.extract_strided_slice %85 {offsets = [2, 0], sizes = [16, 16], strides = [1, 1]} : vector<22x16xf32> to vector<16x16xf32>
    %109 = vector.broadcast %107 : f32 to vector<16x16xf32>
    %110 = arith.mulf %109, %108 : vector<16x16xf32>
    %111 = arith.addf %106, %110 : vector<16x16xf32>
    %c1_37 = arith.constant 1 : index
    %c15_38 = arith.constant 15 : index
    %112 = memref.load %arg2[%c1_37, %c15_38] : memref<2x49xf32, #tpu.memory_space<smem>>
    %113 = vector.extract_strided_slice %86 {offsets = [2, 0], sizes = [16, 16], strides = [1, 1]} : vector<22x16xf32> to vector<16x16xf32>
    %114 = vector.broadcast %112 : f32 to vector<16x16xf32>
    %115 = arith.mulf %114, %113 : vector<16x16xf32>
    %116 = arith.addf %111, %115 : vector<16x16xf32>
    %c0_39 = arith.constant 0 : index
    %c22 = arith.constant 22 : index
    %117 = memref.load %arg2[%c0_39, %c22] : memref<2x49xf32, #tpu.memory_space<smem>>
    %118 = vector.extract_strided_slice %85 {offsets = [3, 0], sizes = [16, 16], strides = [1, 1]} : vector<22x16xf32> to vector<16x16xf32>
    %119 = vector.broadcast %117 : f32 to vector<16x16xf32>
    %120 = arith.mulf %119, %118 : vector<16x16xf32>
    %121 = arith.addf %116, %120 : vector<16x16xf32>
    %c1_40 = arith.constant 1 : index
    %c22_41 = arith.constant 22 : index
    %122 = memref.load %arg2[%c1_40, %c22_41] : memref<2x49xf32, #tpu.memory_space<smem>>
    %123 = vector.extract_strided_slice %86 {offsets = [3, 0], sizes = [16, 16], strides = [1, 1]} : vector<22x16xf32> to vector<16x16xf32>
    %124 = vector.broadcast %122 : f32 to vector<16x16xf32>
    %125 = arith.mulf %124, %123 : vector<16x16xf32>
    %126 = arith.addf %121, %125 : vector<16x16xf32>
    %c0_42 = arith.constant 0 : index
    %c29 = arith.constant 29 : index
    %127 = memref.load %arg2[%c0_42, %c29] : memref<2x49xf32, #tpu.memory_space<smem>>
    %128 = vector.extract_strided_slice %85 {offsets = [4, 0], sizes = [16, 16], strides = [1, 1]} : vector<22x16xf32> to vector<16x16xf32>
    %129 = vector.broadcast %127 : f32 to vector<16x16xf32>
    %130 = arith.mulf %129, %128 : vector<16x16xf32>
    %131 = arith.addf %126, %130 : vector<16x16xf32>
    %c1_43 = arith.constant 1 : index
    %c29_44 = arith.constant 29 : index
    %132 = memref.load %arg2[%c1_43, %c29_44] : memref<2x49xf32, #tpu.memory_space<smem>>
    %133 = vector.extract_strided_slice %86 {offsets = [4, 0], sizes = [16, 16], strides = [1, 1]} : vector<22x16xf32> to vector<16x16xf32>
    %134 = vector.broadcast %132 : f32 to vector<16x16xf32>
    %135 = arith.mulf %134, %133 : vector<16x16xf32>
    %136 = arith.addf %131, %135 : vector<16x16xf32>
    %c0_45 = arith.constant 0 : index
    %c36 = arith.constant 36 : index
    %137 = memref.load %arg2[%c0_45, %c36] : memref<2x49xf32, #tpu.memory_space<smem>>
    %138 = vector.extract_strided_slice %85 {offsets = [5, 0], sizes = [16, 16], strides = [1, 1]} : vector<22x16xf32> to vector<16x16xf32>
    %139 = vector.broadcast %137 : f32 to vector<16x16xf32>
    %140 = arith.mulf %139, %138 : vector<16x16xf32>
    %141 = arith.addf %136, %140 : vector<16x16xf32>
    %c1_46 = arith.constant 1 : index
    %c36_47 = arith.constant 36 : index
    %142 = memref.load %arg2[%c1_46, %c36_47] : memref<2x49xf32, #tpu.memory_space<smem>>
    %143 = vector.extract_strided_slice %86 {offsets = [5, 0], sizes = [16, 16], strides = [1, 1]} : vector<22x16xf32> to vector<16x16xf32>
    %144 = vector.broadcast %142 : f32 to vector<16x16xf32>
    %145 = arith.mulf %144, %143 : vector<16x16xf32>
    %146 = arith.addf %141, %145 : vector<16x16xf32>
    %c0_48 = arith.constant 0 : index
    %c43 = arith.constant 43 : index
    %147 = memref.load %arg2[%c0_48, %c43] : memref<2x49xf32, #tpu.memory_space<smem>>
    %148 = vector.extract_strided_slice %85 {offsets = [6, 0], sizes = [16, 16], strides = [1, 1]} : vector<22x16xf32> to vector<16x16xf32>
    %149 = vector.broadcast %147 : f32 to vector<16x16xf32>
    %150 = arith.mulf %149, %148 : vector<16x16xf32>
    %151 = arith.addf %146, %150 : vector<16x16xf32>
    %c1_49 = arith.constant 1 : index
    %c43_50 = arith.constant 43 : index
    %152 = memref.load %arg2[%c1_49, %c43_50] : memref<2x49xf32, #tpu.memory_space<smem>>
    %153 = vector.extract_strided_slice %86 {offsets = [6, 0], sizes = [16, 16], strides = [1, 1]} : vector<22x16xf32> to vector<16x16xf32>
    %154 = vector.broadcast %152 : f32 to vector<16x16xf32>
    %155 = arith.mulf %154, %153 : vector<16x16xf32>
    %156 = arith.addf %151, %155 : vector<16x16xf32>
    %157 = vector.extract_strided_slice %9 {offsets = [0, 2], sizes = [22, 16], strides = [1, 1]} : vector<22x22xf32> to vector<22x16xf32>
    %158 = vector.extract_strided_slice %11 {offsets = [0, 2], sizes = [22, 16], strides = [1, 1]} : vector<22x22xf32> to vector<22x16xf32>
    %c0_51 = arith.constant 0 : index
    %c2 = arith.constant 2 : index
    %159 = memref.load %arg2[%c0_51, %c2] : memref<2x49xf32, #tpu.memory_space<smem>>
    %160 = vector.extract_strided_slice %157 {offsets = [0, 0], sizes = [16, 16], strides = [1, 1]} : vector<22x16xf32> to vector<16x16xf32>
    %161 = vector.broadcast %159 : f32 to vector<16x16xf32>
    %162 = arith.mulf %161, %160 : vector<16x16xf32>
    %163 = arith.addf %156, %162 : vector<16x16xf32>
    %c1_52 = arith.constant 1 : index
    %c2_53 = arith.constant 2 : index
    %164 = memref.load %arg2[%c1_52, %c2_53] : memref<2x49xf32, #tpu.memory_space<smem>>
    %165 = vector.extract_strided_slice %158 {offsets = [0, 0], sizes = [16, 16], strides = [1, 1]} : vector<22x16xf32> to vector<16x16xf32>
    %166 = vector.broadcast %164 : f32 to vector<16x16xf32>
    %167 = arith.mulf %166, %165 : vector<16x16xf32>
    %168 = arith.addf %163, %167 : vector<16x16xf32>
    %c0_54 = arith.constant 0 : index
    %c9 = arith.constant 9 : index
    %169 = memref.load %arg2[%c0_54, %c9] : memref<2x49xf32, #tpu.memory_space<smem>>
    %170 = vector.extract_strided_slice %157 {offsets = [1, 0], sizes = [16, 16], strides = [1, 1]} : vector<22x16xf32> to vector<16x16xf32>
    %171 = vector.broadcast %169 : f32 to vector<16x16xf32>
    %172 = arith.mulf %171, %170 : vector<16x16xf32>
    %173 = arith.addf %168, %172 : vector<16x16xf32>
    %c1_55 = arith.constant 1 : index
    %c9_56 = arith.constant 9 : index
    %174 = memref.load %arg2[%c1_55, %c9_56] : memref<2x49xf32, #tpu.memory_space<smem>>
    %175 = vector.extract_strided_slice %158 {offsets = [1, 0], sizes = [16, 16], strides = [1, 1]} : vector<22x16xf32> to vector<16x16xf32>
    %176 = vector.broadcast %174 : f32 to vector<16x16xf32>
    %177 = arith.mulf %176, %175 : vector<16x16xf32>
    %178 = arith.addf %173, %177 : vector<16x16xf32>
    %c0_57 = arith.constant 0 : index
    %c16 = arith.constant 16 : index
    %179 = memref.load %arg2[%c0_57, %c16] : memref<2x49xf32, #tpu.memory_space<smem>>
    %180 = vector.extract_strided_slice %157 {offsets = [2, 0], sizes = [16, 16], strides = [1, 1]} : vector<22x16xf32> to vector<16x16xf32>
    %181 = vector.broadcast %179 : f32 to vector<16x16xf32>
    %182 = arith.mulf %181, %180 : vector<16x16xf32>
    %183 = arith.addf %178, %182 : vector<16x16xf32>
    %c1_58 = arith.constant 1 : index
    %c16_59 = arith.constant 16 : index
    %184 = memref.load %arg2[%c1_58, %c16_59] : memref<2x49xf32, #tpu.memory_space<smem>>
    %185 = vector.extract_strided_slice %158 {offsets = [2, 0], sizes = [16, 16], strides = [1, 1]} : vector<22x16xf32> to vector<16x16xf32>
    %186 = vector.broadcast %184 : f32 to vector<16x16xf32>
    %187 = arith.mulf %186, %185 : vector<16x16xf32>
    %188 = arith.addf %183, %187 : vector<16x16xf32>
    %c0_60 = arith.constant 0 : index
    %c23 = arith.constant 23 : index
    %189 = memref.load %arg2[%c0_60, %c23] : memref<2x49xf32, #tpu.memory_space<smem>>
    %190 = vector.extract_strided_slice %157 {offsets = [3, 0], sizes = [16, 16], strides = [1, 1]} : vector<22x16xf32> to vector<16x16xf32>
    %191 = vector.broadcast %189 : f32 to vector<16x16xf32>
    %192 = arith.mulf %191, %190 : vector<16x16xf32>
    %193 = arith.addf %188, %192 : vector<16x16xf32>
    %c1_61 = arith.constant 1 : index
    %c23_62 = arith.constant 23 : index
    %194 = memref.load %arg2[%c1_61, %c23_62] : memref<2x49xf32, #tpu.memory_space<smem>>
    %195 = vector.extract_strided_slice %158 {offsets = [3, 0], sizes = [16, 16], strides = [1, 1]} : vector<22x16xf32> to vector<16x16xf32>
    %196 = vector.broadcast %194 : f32 to vector<16x16xf32>
    %197 = arith.mulf %196, %195 : vector<16x16xf32>
    %198 = arith.addf %193, %197 : vector<16x16xf32>
    %c0_63 = arith.constant 0 : index
    %c30 = arith.constant 30 : index
    %199 = memref.load %arg2[%c0_63, %c30] : memref<2x49xf32, #tpu.memory_space<smem>>
    %200 = vector.extract_strided_slice %157 {offsets = [4, 0], sizes = [16, 16], strides = [1, 1]} : vector<22x16xf32> to vector<16x16xf32>
    %201 = vector.broadcast %199 : f32 to vector<16x16xf32>
    %202 = arith.mulf %201, %200 : vector<16x16xf32>
    %203 = arith.addf %198, %202 : vector<16x16xf32>
    %c1_64 = arith.constant 1 : index
    %c30_65 = arith.constant 30 : index
    %204 = memref.load %arg2[%c1_64, %c30_65] : memref<2x49xf32, #tpu.memory_space<smem>>
    %205 = vector.extract_strided_slice %158 {offsets = [4, 0], sizes = [16, 16], strides = [1, 1]} : vector<22x16xf32> to vector<16x16xf32>
    %206 = vector.broadcast %204 : f32 to vector<16x16xf32>
    %207 = arith.mulf %206, %205 : vector<16x16xf32>
    %208 = arith.addf %203, %207 : vector<16x16xf32>
    %c0_66 = arith.constant 0 : index
    %c37 = arith.constant 37 : index
    %209 = memref.load %arg2[%c0_66, %c37] : memref<2x49xf32, #tpu.memory_space<smem>>
    %210 = vector.extract_strided_slice %157 {offsets = [5, 0], sizes = [16, 16], strides = [1, 1]} : vector<22x16xf32> to vector<16x16xf32>
    %211 = vector.broadcast %209 : f32 to vector<16x16xf32>
    %212 = arith.mulf %211, %210 : vector<16x16xf32>
    %213 = arith.addf %208, %212 : vector<16x16xf32>
    %c1_67 = arith.constant 1 : index
    %c37_68 = arith.constant 37 : index
    %214 = memref.load %arg2[%c1_67, %c37_68] : memref<2x49xf32, #tpu.memory_space<smem>>
    %215 = vector.extract_strided_slice %158 {offsets = [5, 0], sizes = [16, 16], strides = [1, 1]} : vector<22x16xf32> to vector<16x16xf32>
    %216 = vector.broadcast %214 : f32 to vector<16x16xf32>
    %217 = arith.mulf %216, %215 : vector<16x16xf32>
    %218 = arith.addf %213, %217 : vector<16x16xf32>
    %c0_69 = arith.constant 0 : index
    %c44 = arith.constant 44 : index
    %219 = memref.load %arg2[%c0_69, %c44] : memref<2x49xf32, #tpu.memory_space<smem>>
    %220 = vector.extract_strided_slice %157 {offsets = [6, 0], sizes = [16, 16], strides = [1, 1]} : vector<22x16xf32> to vector<16x16xf32>
    %221 = vector.broadcast %219 : f32 to vector<16x16xf32>
    %222 = arith.mulf %221, %220 : vector<16x16xf32>
    %223 = arith.addf %218, %222 : vector<16x16xf32>
    %c1_70 = arith.constant 1 : index
    %c44_71 = arith.constant 44 : index
    %224 = memref.load %arg2[%c1_70, %c44_71] : memref<2x49xf32, #tpu.memory_space<smem>>
    %225 = vector.extract_strided_slice %158 {offsets = [6, 0], sizes = [16, 16], strides = [1, 1]} : vector<22x16xf32> to vector<16x16xf32>
    %226 = vector.broadcast %224 : f32 to vector<16x16xf32>
    %227 = arith.mulf %226, %225 : vector<16x16xf32>
    %228 = arith.addf %223, %227 : vector<16x16xf32>
    %229 = vector.extract_strided_slice %9 {offsets = [0, 3], sizes = [22, 16], strides = [1, 1]} : vector<22x22xf32> to vector<22x16xf32>
    %230 = vector.extract_strided_slice %11 {offsets = [0, 3], sizes = [22, 16], strides = [1, 1]} : vector<22x22xf32> to vector<22x16xf32>
    %c0_72 = arith.constant 0 : index
    %c3 = arith.constant 3 : index
    %231 = memref.load %arg2[%c0_72, %c3] : memref<2x49xf32, #tpu.memory_space<smem>>
    %232 = vector.extract_strided_slice %229 {offsets = [0, 0], sizes = [16, 16], strides = [1, 1]} : vector<22x16xf32> to vector<16x16xf32>
    %233 = vector.broadcast %231 : f32 to vector<16x16xf32>
    %234 = arith.mulf %233, %232 : vector<16x16xf32>
    %235 = arith.addf %228, %234 : vector<16x16xf32>
    %c1_73 = arith.constant 1 : index
    %c3_74 = arith.constant 3 : index
    %236 = memref.load %arg2[%c1_73, %c3_74] : memref<2x49xf32, #tpu.memory_space<smem>>
    %237 = vector.extract_strided_slice %230 {offsets = [0, 0], sizes = [16, 16], strides = [1, 1]} : vector<22x16xf32> to vector<16x16xf32>
    %238 = vector.broadcast %236 : f32 to vector<16x16xf32>
    %239 = arith.mulf %238, %237 : vector<16x16xf32>
    %240 = arith.addf %235, %239 : vector<16x16xf32>
    %c0_75 = arith.constant 0 : index
    %c10 = arith.constant 10 : index
    %241 = memref.load %arg2[%c0_75, %c10] : memref<2x49xf32, #tpu.memory_space<smem>>
    %242 = vector.extract_strided_slice %229 {offsets = [1, 0], sizes = [16, 16], strides = [1, 1]} : vector<22x16xf32> to vector<16x16xf32>
    %243 = vector.broadcast %241 : f32 to vector<16x16xf32>
    %244 = arith.mulf %243, %242 : vector<16x16xf32>
    %245 = arith.addf %240, %244 : vector<16x16xf32>
    %c1_76 = arith.constant 1 : index
    %c10_77 = arith.constant 10 : index
    %246 = memref.load %arg2[%c1_76, %c10_77] : memref<2x49xf32, #tpu.memory_space<smem>>
    %247 = vector.extract_strided_slice %230 {offsets = [1, 0], sizes = [16, 16], strides = [1, 1]} : vector<22x16xf32> to vector<16x16xf32>
    %248 = vector.broadcast %246 : f32 to vector<16x16xf32>
    %249 = arith.mulf %248, %247 : vector<16x16xf32>
    %250 = arith.addf %245, %249 : vector<16x16xf32>
    %c0_78 = arith.constant 0 : index
    %c17 = arith.constant 17 : index
    %251 = memref.load %arg2[%c0_78, %c17] : memref<2x49xf32, #tpu.memory_space<smem>>
    %252 = vector.extract_strided_slice %229 {offsets = [2, 0], sizes = [16, 16], strides = [1, 1]} : vector<22x16xf32> to vector<16x16xf32>
    %253 = vector.broadcast %251 : f32 to vector<16x16xf32>
    %254 = arith.mulf %253, %252 : vector<16x16xf32>
    %255 = arith.addf %250, %254 : vector<16x16xf32>
    %c1_79 = arith.constant 1 : index
    %c17_80 = arith.constant 17 : index
    %256 = memref.load %arg2[%c1_79, %c17_80] : memref<2x49xf32, #tpu.memory_space<smem>>
    %257 = vector.extract_strided_slice %230 {offsets = [2, 0], sizes = [16, 16], strides = [1, 1]} : vector<22x16xf32> to vector<16x16xf32>
    %258 = vector.broadcast %256 : f32 to vector<16x16xf32>
    %259 = arith.mulf %258, %257 : vector<16x16xf32>
    %260 = arith.addf %255, %259 : vector<16x16xf32>
    %c0_81 = arith.constant 0 : index
    %c24 = arith.constant 24 : index
    %261 = memref.load %arg2[%c0_81, %c24] : memref<2x49xf32, #tpu.memory_space<smem>>
    %262 = vector.extract_strided_slice %229 {offsets = [3, 0], sizes = [16, 16], strides = [1, 1]} : vector<22x16xf32> to vector<16x16xf32>
    %263 = vector.broadcast %261 : f32 to vector<16x16xf32>
    %264 = arith.mulf %263, %262 : vector<16x16xf32>
    %265 = arith.addf %260, %264 : vector<16x16xf32>
    %c1_82 = arith.constant 1 : index
    %c24_83 = arith.constant 24 : index
    %266 = memref.load %arg2[%c1_82, %c24_83] : memref<2x49xf32, #tpu.memory_space<smem>>
    %267 = vector.extract_strided_slice %230 {offsets = [3, 0], sizes = [16, 16], strides = [1, 1]} : vector<22x16xf32> to vector<16x16xf32>
    %268 = vector.broadcast %266 : f32 to vector<16x16xf32>
    %269 = arith.mulf %268, %267 : vector<16x16xf32>
    %270 = arith.addf %265, %269 : vector<16x16xf32>
    %c0_84 = arith.constant 0 : index
    %c31 = arith.constant 31 : index
    %271 = memref.load %arg2[%c0_84, %c31] : memref<2x49xf32, #tpu.memory_space<smem>>
    %272 = vector.extract_strided_slice %229 {offsets = [4, 0], sizes = [16, 16], strides = [1, 1]} : vector<22x16xf32> to vector<16x16xf32>
    %273 = vector.broadcast %271 : f32 to vector<16x16xf32>
    %274 = arith.mulf %273, %272 : vector<16x16xf32>
    %275 = arith.addf %270, %274 : vector<16x16xf32>
    %c1_85 = arith.constant 1 : index
    %c31_86 = arith.constant 31 : index
    %276 = memref.load %arg2[%c1_85, %c31_86] : memref<2x49xf32, #tpu.memory_space<smem>>
    %277 = vector.extract_strided_slice %230 {offsets = [4, 0], sizes = [16, 16], strides = [1, 1]} : vector<22x16xf32> to vector<16x16xf32>
    %278 = vector.broadcast %276 : f32 to vector<16x16xf32>
    %279 = arith.mulf %278, %277 : vector<16x16xf32>
    %280 = arith.addf %275, %279 : vector<16x16xf32>
    %c0_87 = arith.constant 0 : index
    %c38 = arith.constant 38 : index
    %281 = memref.load %arg2[%c0_87, %c38] : memref<2x49xf32, #tpu.memory_space<smem>>
    %282 = vector.extract_strided_slice %229 {offsets = [5, 0], sizes = [16, 16], strides = [1, 1]} : vector<22x16xf32> to vector<16x16xf32>
    %283 = vector.broadcast %281 : f32 to vector<16x16xf32>
    %284 = arith.mulf %283, %282 : vector<16x16xf32>
    %285 = arith.addf %280, %284 : vector<16x16xf32>
    %c1_88 = arith.constant 1 : index
    %c38_89 = arith.constant 38 : index
    %286 = memref.load %arg2[%c1_88, %c38_89] : memref<2x49xf32, #tpu.memory_space<smem>>
    %287 = vector.extract_strided_slice %230 {offsets = [5, 0], sizes = [16, 16], strides = [1, 1]} : vector<22x16xf32> to vector<16x16xf32>
    %288 = vector.broadcast %286 : f32 to vector<16x16xf32>
    %289 = arith.mulf %288, %287 : vector<16x16xf32>
    %290 = arith.addf %285, %289 : vector<16x16xf32>
    %c0_90 = arith.constant 0 : index
    %c45 = arith.constant 45 : index
    %291 = memref.load %arg2[%c0_90, %c45] : memref<2x49xf32, #tpu.memory_space<smem>>
    %292 = vector.extract_strided_slice %229 {offsets = [6, 0], sizes = [16, 16], strides = [1, 1]} : vector<22x16xf32> to vector<16x16xf32>
    %293 = vector.broadcast %291 : f32 to vector<16x16xf32>
    %294 = arith.mulf %293, %292 : vector<16x16xf32>
    %295 = arith.addf %290, %294 : vector<16x16xf32>
    %c1_91 = arith.constant 1 : index
    %c45_92 = arith.constant 45 : index
    %296 = memref.load %arg2[%c1_91, %c45_92] : memref<2x49xf32, #tpu.memory_space<smem>>
    %297 = vector.extract_strided_slice %230 {offsets = [6, 0], sizes = [16, 16], strides = [1, 1]} : vector<22x16xf32> to vector<16x16xf32>
    %298 = vector.broadcast %296 : f32 to vector<16x16xf32>
    %299 = arith.mulf %298, %297 : vector<16x16xf32>
    %300 = arith.addf %295, %299 : vector<16x16xf32>
    %301 = vector.extract_strided_slice %9 {offsets = [0, 4], sizes = [22, 16], strides = [1, 1]} : vector<22x22xf32> to vector<22x16xf32>
    %302 = vector.extract_strided_slice %11 {offsets = [0, 4], sizes = [22, 16], strides = [1, 1]} : vector<22x22xf32> to vector<22x16xf32>
    %c0_93 = arith.constant 0 : index
    %c4 = arith.constant 4 : index
    %303 = memref.load %arg2[%c0_93, %c4] : memref<2x49xf32, #tpu.memory_space<smem>>
    %304 = vector.extract_strided_slice %301 {offsets = [0, 0], sizes = [16, 16], strides = [1, 1]} : vector<22x16xf32> to vector<16x16xf32>
    %305 = vector.broadcast %303 : f32 to vector<16x16xf32>
    %306 = arith.mulf %305, %304 : vector<16x16xf32>
    %307 = arith.addf %300, %306 : vector<16x16xf32>
    %c1_94 = arith.constant 1 : index
    %c4_95 = arith.constant 4 : index
    %308 = memref.load %arg2[%c1_94, %c4_95] : memref<2x49xf32, #tpu.memory_space<smem>>
    %309 = vector.extract_strided_slice %302 {offsets = [0, 0], sizes = [16, 16], strides = [1, 1]} : vector<22x16xf32> to vector<16x16xf32>
    %310 = vector.broadcast %308 : f32 to vector<16x16xf32>
    %311 = arith.mulf %310, %309 : vector<16x16xf32>
    %312 = arith.addf %307, %311 : vector<16x16xf32>
    %c0_96 = arith.constant 0 : index
    %c11 = arith.constant 11 : index
    %313 = memref.load %arg2[%c0_96, %c11] : memref<2x49xf32, #tpu.memory_space<smem>>
    %314 = vector.extract_strided_slice %301 {offsets = [1, 0], sizes = [16, 16], strides = [1, 1]} : vector<22x16xf32> to vector<16x16xf32>
    %315 = vector.broadcast %313 : f32 to vector<16x16xf32>
    %316 = arith.mulf %315, %314 : vector<16x16xf32>
    %317 = arith.addf %312, %316 : vector<16x16xf32>
    %c1_97 = arith.constant 1 : index
    %c11_98 = arith.constant 11 : index
    %318 = memref.load %arg2[%c1_97, %c11_98] : memref<2x49xf32, #tpu.memory_space<smem>>
    %319 = vector.extract_strided_slice %302 {offsets = [1, 0], sizes = [16, 16], strides = [1, 1]} : vector<22x16xf32> to vector<16x16xf32>
    %320 = vector.broadcast %318 : f32 to vector<16x16xf32>
    %321 = arith.mulf %320, %319 : vector<16x16xf32>
    %322 = arith.addf %317, %321 : vector<16x16xf32>
    %c0_99 = arith.constant 0 : index
    %c18 = arith.constant 18 : index
    %323 = memref.load %arg2[%c0_99, %c18] : memref<2x49xf32, #tpu.memory_space<smem>>
    %324 = vector.extract_strided_slice %301 {offsets = [2, 0], sizes = [16, 16], strides = [1, 1]} : vector<22x16xf32> to vector<16x16xf32>
    %325 = vector.broadcast %323 : f32 to vector<16x16xf32>
    %326 = arith.mulf %325, %324 : vector<16x16xf32>
    %327 = arith.addf %322, %326 : vector<16x16xf32>
    %c1_100 = arith.constant 1 : index
    %c18_101 = arith.constant 18 : index
    %328 = memref.load %arg2[%c1_100, %c18_101] : memref<2x49xf32, #tpu.memory_space<smem>>
    %329 = vector.extract_strided_slice %302 {offsets = [2, 0], sizes = [16, 16], strides = [1, 1]} : vector<22x16xf32> to vector<16x16xf32>
    %330 = vector.broadcast %328 : f32 to vector<16x16xf32>
    %331 = arith.mulf %330, %329 : vector<16x16xf32>
    %332 = arith.addf %327, %331 : vector<16x16xf32>
    %c0_102 = arith.constant 0 : index
    %c25 = arith.constant 25 : index
    %333 = memref.load %arg2[%c0_102, %c25] : memref<2x49xf32, #tpu.memory_space<smem>>
    %334 = vector.extract_strided_slice %301 {offsets = [3, 0], sizes = [16, 16], strides = [1, 1]} : vector<22x16xf32> to vector<16x16xf32>
    %335 = vector.broadcast %333 : f32 to vector<16x16xf32>
    %336 = arith.mulf %335, %334 : vector<16x16xf32>
    %337 = arith.addf %332, %336 : vector<16x16xf32>
    %c1_103 = arith.constant 1 : index
    %c25_104 = arith.constant 25 : index
    %338 = memref.load %arg2[%c1_103, %c25_104] : memref<2x49xf32, #tpu.memory_space<smem>>
    %339 = vector.extract_strided_slice %302 {offsets = [3, 0], sizes = [16, 16], strides = [1, 1]} : vector<22x16xf32> to vector<16x16xf32>
    %340 = vector.broadcast %338 : f32 to vector<16x16xf32>
    %341 = arith.mulf %340, %339 : vector<16x16xf32>
    %342 = arith.addf %337, %341 : vector<16x16xf32>
    %c0_105 = arith.constant 0 : index
    %c32 = arith.constant 32 : index
    %343 = memref.load %arg2[%c0_105, %c32] : memref<2x49xf32, #tpu.memory_space<smem>>
    %344 = vector.extract_strided_slice %301 {offsets = [4, 0], sizes = [16, 16], strides = [1, 1]} : vector<22x16xf32> to vector<16x16xf32>
    %345 = vector.broadcast %343 : f32 to vector<16x16xf32>
    %346 = arith.mulf %345, %344 : vector<16x16xf32>
    %347 = arith.addf %342, %346 : vector<16x16xf32>
    %c1_106 = arith.constant 1 : index
    %c32_107 = arith.constant 32 : index
    %348 = memref.load %arg2[%c1_106, %c32_107] : memref<2x49xf32, #tpu.memory_space<smem>>
    %349 = vector.extract_strided_slice %302 {offsets = [4, 0], sizes = [16, 16], strides = [1, 1]} : vector<22x16xf32> to vector<16x16xf32>
    %350 = vector.broadcast %348 : f32 to vector<16x16xf32>
    %351 = arith.mulf %350, %349 : vector<16x16xf32>
    %352 = arith.addf %347, %351 : vector<16x16xf32>
    %c0_108 = arith.constant 0 : index
    %c39 = arith.constant 39 : index
    %353 = memref.load %arg2[%c0_108, %c39] : memref<2x49xf32, #tpu.memory_space<smem>>
    %354 = vector.extract_strided_slice %301 {offsets = [5, 0], sizes = [16, 16], strides = [1, 1]} : vector<22x16xf32> to vector<16x16xf32>
    %355 = vector.broadcast %353 : f32 to vector<16x16xf32>
    %356 = arith.mulf %355, %354 : vector<16x16xf32>
    %357 = arith.addf %352, %356 : vector<16x16xf32>
    %c1_109 = arith.constant 1 : index
    %c39_110 = arith.constant 39 : index
    %358 = memref.load %arg2[%c1_109, %c39_110] : memref<2x49xf32, #tpu.memory_space<smem>>
    %359 = vector.extract_strided_slice %302 {offsets = [5, 0], sizes = [16, 16], strides = [1, 1]} : vector<22x16xf32> to vector<16x16xf32>
    %360 = vector.broadcast %358 : f32 to vector<16x16xf32>
    %361 = arith.mulf %360, %359 : vector<16x16xf32>
    %362 = arith.addf %357, %361 : vector<16x16xf32>
    %c0_111 = arith.constant 0 : index
    %c46 = arith.constant 46 : index
    %363 = memref.load %arg2[%c0_111, %c46] : memref<2x49xf32, #tpu.memory_space<smem>>
    %364 = vector.extract_strided_slice %301 {offsets = [6, 0], sizes = [16, 16], strides = [1, 1]} : vector<22x16xf32> to vector<16x16xf32>
    %365 = vector.broadcast %363 : f32 to vector<16x16xf32>
    %366 = arith.mulf %365, %364 : vector<16x16xf32>
    %367 = arith.addf %362, %366 : vector<16x16xf32>
    %c1_112 = arith.constant 1 : index
    %c46_113 = arith.constant 46 : index
    %368 = memref.load %arg2[%c1_112, %c46_113] : memref<2x49xf32, #tpu.memory_space<smem>>
    %369 = vector.extract_strided_slice %302 {offsets = [6, 0], sizes = [16, 16], strides = [1, 1]} : vector<22x16xf32> to vector<16x16xf32>
    %370 = vector.broadcast %368 : f32 to vector<16x16xf32>
    %371 = arith.mulf %370, %369 : vector<16x16xf32>
    %372 = arith.addf %367, %371 : vector<16x16xf32>
    %373 = vector.extract_strided_slice %9 {offsets = [0, 5], sizes = [22, 16], strides = [1, 1]} : vector<22x22xf32> to vector<22x16xf32>
    %374 = vector.extract_strided_slice %11 {offsets = [0, 5], sizes = [22, 16], strides = [1, 1]} : vector<22x22xf32> to vector<22x16xf32>
    %c0_114 = arith.constant 0 : index
    %c5 = arith.constant 5 : index
    %375 = memref.load %arg2[%c0_114, %c5] : memref<2x49xf32, #tpu.memory_space<smem>>
    %376 = vector.extract_strided_slice %373 {offsets = [0, 0], sizes = [16, 16], strides = [1, 1]} : vector<22x16xf32> to vector<16x16xf32>
    %377 = vector.broadcast %375 : f32 to vector<16x16xf32>
    %378 = arith.mulf %377, %376 : vector<16x16xf32>
    %379 = arith.addf %372, %378 : vector<16x16xf32>
    %c1_115 = arith.constant 1 : index
    %c5_116 = arith.constant 5 : index
    %380 = memref.load %arg2[%c1_115, %c5_116] : memref<2x49xf32, #tpu.memory_space<smem>>
    %381 = vector.extract_strided_slice %374 {offsets = [0, 0], sizes = [16, 16], strides = [1, 1]} : vector<22x16xf32> to vector<16x16xf32>
    %382 = vector.broadcast %380 : f32 to vector<16x16xf32>
    %383 = arith.mulf %382, %381 : vector<16x16xf32>
    %384 = arith.addf %379, %383 : vector<16x16xf32>
    %c0_117 = arith.constant 0 : index
    %c12 = arith.constant 12 : index
    %385 = memref.load %arg2[%c0_117, %c12] : memref<2x49xf32, #tpu.memory_space<smem>>
    %386 = vector.extract_strided_slice %373 {offsets = [1, 0], sizes = [16, 16], strides = [1, 1]} : vector<22x16xf32> to vector<16x16xf32>
    %387 = vector.broadcast %385 : f32 to vector<16x16xf32>
    %388 = arith.mulf %387, %386 : vector<16x16xf32>
    %389 = arith.addf %384, %388 : vector<16x16xf32>
    %c1_118 = arith.constant 1 : index
    %c12_119 = arith.constant 12 : index
    %390 = memref.load %arg2[%c1_118, %c12_119] : memref<2x49xf32, #tpu.memory_space<smem>>
    %391 = vector.extract_strided_slice %374 {offsets = [1, 0], sizes = [16, 16], strides = [1, 1]} : vector<22x16xf32> to vector<16x16xf32>
    %392 = vector.broadcast %390 : f32 to vector<16x16xf32>
    %393 = arith.mulf %392, %391 : vector<16x16xf32>
    %394 = arith.addf %389, %393 : vector<16x16xf32>
    %c0_120 = arith.constant 0 : index
    %c19 = arith.constant 19 : index
    %395 = memref.load %arg2[%c0_120, %c19] : memref<2x49xf32, #tpu.memory_space<smem>>
    %396 = vector.extract_strided_slice %373 {offsets = [2, 0], sizes = [16, 16], strides = [1, 1]} : vector<22x16xf32> to vector<16x16xf32>
    %397 = vector.broadcast %395 : f32 to vector<16x16xf32>
    %398 = arith.mulf %397, %396 : vector<16x16xf32>
    %399 = arith.addf %394, %398 : vector<16x16xf32>
    %c1_121 = arith.constant 1 : index
    %c19_122 = arith.constant 19 : index
    %400 = memref.load %arg2[%c1_121, %c19_122] : memref<2x49xf32, #tpu.memory_space<smem>>
    %401 = vector.extract_strided_slice %374 {offsets = [2, 0], sizes = [16, 16], strides = [1, 1]} : vector<22x16xf32> to vector<16x16xf32>
    %402 = vector.broadcast %400 : f32 to vector<16x16xf32>
    %403 = arith.mulf %402, %401 : vector<16x16xf32>
    %404 = arith.addf %399, %403 : vector<16x16xf32>
    %c0_123 = arith.constant 0 : index
    %c26 = arith.constant 26 : index
    %405 = memref.load %arg2[%c0_123, %c26] : memref<2x49xf32, #tpu.memory_space<smem>>
    %406 = vector.extract_strided_slice %373 {offsets = [3, 0], sizes = [16, 16], strides = [1, 1]} : vector<22x16xf32> to vector<16x16xf32>
    %407 = vector.broadcast %405 : f32 to vector<16x16xf32>
    %408 = arith.mulf %407, %406 : vector<16x16xf32>
    %409 = arith.addf %404, %408 : vector<16x16xf32>
    %c1_124 = arith.constant 1 : index
    %c26_125 = arith.constant 26 : index
    %410 = memref.load %arg2[%c1_124, %c26_125] : memref<2x49xf32, #tpu.memory_space<smem>>
    %411 = vector.extract_strided_slice %374 {offsets = [3, 0], sizes = [16, 16], strides = [1, 1]} : vector<22x16xf32> to vector<16x16xf32>
    %412 = vector.broadcast %410 : f32 to vector<16x16xf32>
    %413 = arith.mulf %412, %411 : vector<16x16xf32>
    %414 = arith.addf %409, %413 : vector<16x16xf32>
    %c0_126 = arith.constant 0 : index
    %c33 = arith.constant 33 : index
    %415 = memref.load %arg2[%c0_126, %c33] : memref<2x49xf32, #tpu.memory_space<smem>>
    %416 = vector.extract_strided_slice %373 {offsets = [4, 0], sizes = [16, 16], strides = [1, 1]} : vector<22x16xf32> to vector<16x16xf32>
    %417 = vector.broadcast %415 : f32 to vector<16x16xf32>
    %418 = arith.mulf %417, %416 : vector<16x16xf32>
    %419 = arith.addf %414, %418 : vector<16x16xf32>
    %c1_127 = arith.constant 1 : index
    %c33_128 = arith.constant 33 : index
    %420 = memref.load %arg2[%c1_127, %c33_128] : memref<2x49xf32, #tpu.memory_space<smem>>
    %421 = vector.extract_strided_slice %374 {offsets = [4, 0], sizes = [16, 16], strides = [1, 1]} : vector<22x16xf32> to vector<16x16xf32>
    %422 = vector.broadcast %420 : f32 to vector<16x16xf32>
    %423 = arith.mulf %422, %421 : vector<16x16xf32>
    %424 = arith.addf %419, %423 : vector<16x16xf32>
    %c0_129 = arith.constant 0 : index
    %c40 = arith.constant 40 : index
    %425 = memref.load %arg2[%c0_129, %c40] : memref<2x49xf32, #tpu.memory_space<smem>>
    %426 = vector.extract_strided_slice %373 {offsets = [5, 0], sizes = [16, 16], strides = [1, 1]} : vector<22x16xf32> to vector<16x16xf32>
    %427 = vector.broadcast %425 : f32 to vector<16x16xf32>
    %428 = arith.mulf %427, %426 : vector<16x16xf32>
    %429 = arith.addf %424, %428 : vector<16x16xf32>
    %c1_130 = arith.constant 1 : index
    %c40_131 = arith.constant 40 : index
    %430 = memref.load %arg2[%c1_130, %c40_131] : memref<2x49xf32, #tpu.memory_space<smem>>
    %431 = vector.extract_strided_slice %374 {offsets = [5, 0], sizes = [16, 16], strides = [1, 1]} : vector<22x16xf32> to vector<16x16xf32>
    %432 = vector.broadcast %430 : f32 to vector<16x16xf32>
    %433 = arith.mulf %432, %431 : vector<16x16xf32>
    %434 = arith.addf %429, %433 : vector<16x16xf32>
    %c0_132 = arith.constant 0 : index
    %c47 = arith.constant 47 : index
    %435 = memref.load %arg2[%c0_132, %c47] : memref<2x49xf32, #tpu.memory_space<smem>>
    %436 = vector.extract_strided_slice %373 {offsets = [6, 0], sizes = [16, 16], strides = [1, 1]} : vector<22x16xf32> to vector<16x16xf32>
    %437 = vector.broadcast %435 : f32 to vector<16x16xf32>
    %438 = arith.mulf %437, %436 : vector<16x16xf32>
    %439 = arith.addf %434, %438 : vector<16x16xf32>
    %c1_133 = arith.constant 1 : index
    %c47_134 = arith.constant 47 : index
    %440 = memref.load %arg2[%c1_133, %c47_134] : memref<2x49xf32, #tpu.memory_space<smem>>
    %441 = vector.extract_strided_slice %374 {offsets = [6, 0], sizes = [16, 16], strides = [1, 1]} : vector<22x16xf32> to vector<16x16xf32>
    %442 = vector.broadcast %440 : f32 to vector<16x16xf32>
    %443 = arith.mulf %442, %441 : vector<16x16xf32>
    %444 = arith.addf %439, %443 : vector<16x16xf32>
    %445 = vector.extract_strided_slice %9 {offsets = [0, 6], sizes = [22, 16], strides = [1, 1]} : vector<22x22xf32> to vector<22x16xf32>
    %446 = vector.extract_strided_slice %11 {offsets = [0, 6], sizes = [22, 16], strides = [1, 1]} : vector<22x22xf32> to vector<22x16xf32>
    %c0_135 = arith.constant 0 : index
    %c6 = arith.constant 6 : index
    %447 = memref.load %arg2[%c0_135, %c6] : memref<2x49xf32, #tpu.memory_space<smem>>
    %448 = vector.extract_strided_slice %445 {offsets = [0, 0], sizes = [16, 16], strides = [1, 1]} : vector<22x16xf32> to vector<16x16xf32>
    %449 = vector.broadcast %447 : f32 to vector<16x16xf32>
    %450 = arith.mulf %449, %448 : vector<16x16xf32>
    %451 = arith.addf %444, %450 : vector<16x16xf32>
    %c1_136 = arith.constant 1 : index
    %c6_137 = arith.constant 6 : index
    %452 = memref.load %arg2[%c1_136, %c6_137] : memref<2x49xf32, #tpu.memory_space<smem>>
    %453 = vector.extract_strided_slice %446 {offsets = [0, 0], sizes = [16, 16], strides = [1, 1]} : vector<22x16xf32> to vector<16x16xf32>
    %454 = vector.broadcast %452 : f32 to vector<16x16xf32>
    %455 = arith.mulf %454, %453 : vector<16x16xf32>
    %456 = arith.addf %451, %455 : vector<16x16xf32>
    %c0_138 = arith.constant 0 : index
    %c13 = arith.constant 13 : index
    %457 = memref.load %arg2[%c0_138, %c13] : memref<2x49xf32, #tpu.memory_space<smem>>
    %458 = vector.extract_strided_slice %445 {offsets = [1, 0], sizes = [16, 16], strides = [1, 1]} : vector<22x16xf32> to vector<16x16xf32>
    %459 = vector.broadcast %457 : f32 to vector<16x16xf32>
    %460 = arith.mulf %459, %458 : vector<16x16xf32>
    %461 = arith.addf %456, %460 : vector<16x16xf32>
    %c1_139 = arith.constant 1 : index
    %c13_140 = arith.constant 13 : index
    %462 = memref.load %arg2[%c1_139, %c13_140] : memref<2x49xf32, #tpu.memory_space<smem>>
    %463 = vector.extract_strided_slice %446 {offsets = [1, 0], sizes = [16, 16], strides = [1, 1]} : vector<22x16xf32> to vector<16x16xf32>
    %464 = vector.broadcast %462 : f32 to vector<16x16xf32>
    %465 = arith.mulf %464, %463 : vector<16x16xf32>
    %466 = arith.addf %461, %465 : vector<16x16xf32>
    %c0_141 = arith.constant 0 : index
    %c20 = arith.constant 20 : index
    %467 = memref.load %arg2[%c0_141, %c20] : memref<2x49xf32, #tpu.memory_space<smem>>
    %468 = vector.extract_strided_slice %445 {offsets = [2, 0], sizes = [16, 16], strides = [1, 1]} : vector<22x16xf32> to vector<16x16xf32>
    %469 = vector.broadcast %467 : f32 to vector<16x16xf32>
    %470 = arith.mulf %469, %468 : vector<16x16xf32>
    %471 = arith.addf %466, %470 : vector<16x16xf32>
    %c1_142 = arith.constant 1 : index
    %c20_143 = arith.constant 20 : index
    %472 = memref.load %arg2[%c1_142, %c20_143] : memref<2x49xf32, #tpu.memory_space<smem>>
    %473 = vector.extract_strided_slice %446 {offsets = [2, 0], sizes = [16, 16], strides = [1, 1]} : vector<22x16xf32> to vector<16x16xf32>
    %474 = vector.broadcast %472 : f32 to vector<16x16xf32>
    %475 = arith.mulf %474, %473 : vector<16x16xf32>
    %476 = arith.addf %471, %475 : vector<16x16xf32>
    %c0_144 = arith.constant 0 : index
    %c27 = arith.constant 27 : index
    %477 = memref.load %arg2[%c0_144, %c27] : memref<2x49xf32, #tpu.memory_space<smem>>
    %478 = vector.extract_strided_slice %445 {offsets = [3, 0], sizes = [16, 16], strides = [1, 1]} : vector<22x16xf32> to vector<16x16xf32>
    %479 = vector.broadcast %477 : f32 to vector<16x16xf32>
    %480 = arith.mulf %479, %478 : vector<16x16xf32>
    %481 = arith.addf %476, %480 : vector<16x16xf32>
    %c1_145 = arith.constant 1 : index
    %c27_146 = arith.constant 27 : index
    %482 = memref.load %arg2[%c1_145, %c27_146] : memref<2x49xf32, #tpu.memory_space<smem>>
    %483 = vector.extract_strided_slice %446 {offsets = [3, 0], sizes = [16, 16], strides = [1, 1]} : vector<22x16xf32> to vector<16x16xf32>
    %484 = vector.broadcast %482 : f32 to vector<16x16xf32>
    %485 = arith.mulf %484, %483 : vector<16x16xf32>
    %486 = arith.addf %481, %485 : vector<16x16xf32>
    %c0_147 = arith.constant 0 : index
    %c34 = arith.constant 34 : index
    %487 = memref.load %arg2[%c0_147, %c34] : memref<2x49xf32, #tpu.memory_space<smem>>
    %488 = vector.extract_strided_slice %445 {offsets = [4, 0], sizes = [16, 16], strides = [1, 1]} : vector<22x16xf32> to vector<16x16xf32>
    %489 = vector.broadcast %487 : f32 to vector<16x16xf32>
    %490 = arith.mulf %489, %488 : vector<16x16xf32>
    %491 = arith.addf %486, %490 : vector<16x16xf32>
    %c1_148 = arith.constant 1 : index
    %c34_149 = arith.constant 34 : index
    %492 = memref.load %arg2[%c1_148, %c34_149] : memref<2x49xf32, #tpu.memory_space<smem>>
    %493 = vector.extract_strided_slice %446 {offsets = [4, 0], sizes = [16, 16], strides = [1, 1]} : vector<22x16xf32> to vector<16x16xf32>
    %494 = vector.broadcast %492 : f32 to vector<16x16xf32>
    %495 = arith.mulf %494, %493 : vector<16x16xf32>
    %496 = arith.addf %491, %495 : vector<16x16xf32>
    %c0_150 = arith.constant 0 : index
    %c41 = arith.constant 41 : index
    %497 = memref.load %arg2[%c0_150, %c41] : memref<2x49xf32, #tpu.memory_space<smem>>
    %498 = vector.extract_strided_slice %445 {offsets = [5, 0], sizes = [16, 16], strides = [1, 1]} : vector<22x16xf32> to vector<16x16xf32>
    %499 = vector.broadcast %497 : f32 to vector<16x16xf32>
    %500 = arith.mulf %499, %498 : vector<16x16xf32>
    %501 = arith.addf %496, %500 : vector<16x16xf32>
    %c1_151 = arith.constant 1 : index
    %c41_152 = arith.constant 41 : index
    %502 = memref.load %arg2[%c1_151, %c41_152] : memref<2x49xf32, #tpu.memory_space<smem>>
    %503 = vector.extract_strided_slice %446 {offsets = [5, 0], sizes = [16, 16], strides = [1, 1]} : vector<22x16xf32> to vector<16x16xf32>
    %504 = vector.broadcast %502 : f32 to vector<16x16xf32>
    %505 = arith.mulf %504, %503 : vector<16x16xf32>
    %506 = arith.addf %501, %505 : vector<16x16xf32>
    %c0_153 = arith.constant 0 : index
    %c48 = arith.constant 48 : index
    %507 = memref.load %arg2[%c0_153, %c48] : memref<2x49xf32, #tpu.memory_space<smem>>
    %508 = vector.extract_strided_slice %445 {offsets = [6, 0], sizes = [16, 16], strides = [1, 1]} : vector<22x16xf32> to vector<16x16xf32>
    %509 = vector.broadcast %507 : f32 to vector<16x16xf32>
    %510 = arith.mulf %509, %508 : vector<16x16xf32>
    %511 = arith.addf %506, %510 : vector<16x16xf32>
    %c1_154 = arith.constant 1 : index
    %c48_155 = arith.constant 48 : index
    %512 = memref.load %arg2[%c1_154, %c48_155] : memref<2x49xf32, #tpu.memory_space<smem>>
    %513 = vector.extract_strided_slice %446 {offsets = [6, 0], sizes = [16, 16], strides = [1, 1]} : vector<22x16xf32> to vector<16x16xf32>
    %514 = vector.broadcast %512 : f32 to vector<16x16xf32>
    %515 = arith.mulf %514, %513 : vector<16x16xf32>
    %516 = arith.addf %511, %515 : vector<16x16xf32>
    %cst_156 = arith.constant 0.000000e+00 : f32
    %517 = vector.broadcast %cst_156 : f32 to vector<16x16xf32>
    %518 = arith.subf %517, %516 : vector<16x16xf32>
    %519 = math.exp %518 : vector<16x16xf32>
    %cst_157 = arith.constant 1.000000e+00 : f32
    %520 = vector.broadcast %cst_157 : f32 to vector<16x16xf32>
    %521 = arith.addf %520, %519 : vector<16x16xf32>
    %cst_158 = arith.constant 1.000000e+00 : f32
    %522 = vector.broadcast %cst_158 : f32 to vector<16x16xf32>
    %523 = arith.divf %522, %521 : vector<16x16xf32>
    %c0_159 = arith.constant 0 : index
    %c0_160 = arith.constant 0 : index
    %c0_161 = arith.constant 0 : index
    %524 = vector.load %arg3[%c0_159, %c0_160, %c0_161] : memref<2x16x16xf32, #tpu.memory_space<vmem>>, vector<1x16x16xf32>
    %525 = vector.shape_cast %524 : vector<1x16x16xf32> to vector<16x16xf32>
    %526 = vector.shape_cast %523 : vector<16x16xf32> to vector<1x16x16xf32>
    tpu.vector_store %arg3[%c0_159, %c0_160, %c0_161], %526 {strides = array<i32>} : memref<2x16x16xf32, #tpu.memory_space<vmem>>, vector<1x16x16xf32>,
    %c1_162 = arith.constant 1 : index
    %c0_163 = arith.constant 0 : index
    %c0_164 = arith.constant 0 : index
    %c0_165 = arith.constant 0 : index
    %527 = vector.load %arg1[%c1_162, %c0_163, %c0_164, %c0_165] : memref<2x4x16x16xf32, #tpu.memory_space<vmem>>, vector<1x1x16x16xf32>
    %528 = vector.shape_cast %527 : vector<1x1x16x16xf32> to vector<16x16xf32>
    %c1_i32_166 = arith.constant 1 : i32
    %c3_i32_167 = arith.constant 3 : i32
    %529 = arith.addi %c1_i32_166, %c3_i32_167 : i32
    %c1_i32_168 = arith.constant 1 : i32
    %530:2 = scf.for %arg4 = %c1_i32_166 to %529 step %c1_i32_168 iter_args(%arg5 = %528, %arg6 = %528) -> (vector<16x16xf32>, vector<16x16xf32>)  : i32 {
      %c1_376 = arith.constant 1 : index
      %1054 = arith.index_cast %arg4 : i32 to index
      %c0_377 = arith.constant 0 : index
      %c0_378 = arith.constant 0 : index
      %1055 = vector.load %arg1[%c1_376, %1054, %c0_377, %c0_378] : memref<2x4x16x16xf32, #tpu.memory_space<vmem>>, vector<1x1x16x16xf32>
      %1056 = vector.shape_cast %1055 : vector<1x1x16x16xf32> to vector<16x16xf32>
      %1057 = arith.addf %arg5, %1056 : vector<16x16xf32>
      %1058 = arith.maximumf %arg6, %1056 : vector<16x16xf32>
      scf.yield %1057, %1058 : vector<16x16xf32>, vector<16x16xf32>
    }
    %c3_i32_169 = arith.constant 3 : i32
    %cst_170 = arith.constant 2.500000e-01 : f32
    %531 = vector.broadcast %cst_170 : f32 to vector<16x16xf32>
    %532 = arith.mulf %530#0, %531 : vector<16x16xf32>
    %cst_171 = arith.constant 0.000000e+00 : f32
    %533 = vector.broadcast %cst_171 : f32 to vector<3x16xf32>
    %cst_172 = arith.constant 0.000000e+00 : f32
    %534 = vector.broadcast %cst_172 : f32 to vector<22x3xf32>
    %535 = tpu.concatenate %533, %532, %533 in 0 : vector<3x16xf32>, vector<16x16xf32>, vector<3x16xf32> -> vector<22x16xf32>
    %536 = tpu.concatenate %534, %535, %534 in 1 : vector<22x3xf32>, vector<22x16xf32>, vector<22x3xf32> -> vector<22x22xf32>
    %537 = tpu.concatenate %533, %530#1, %533 in 0 : vector<3x16xf32>, vector<16x16xf32>, vector<3x16xf32> -> vector<22x16xf32>
    %538 = tpu.concatenate %534, %537, %534 in 1 : vector<22x3xf32>, vector<22x16xf32>, vector<22x3xf32> -> vector<22x22xf32>
    %cst_173 = arith.constant 0.000000e+00 : f32
    %539 = vector.broadcast %cst_173 : f32 to vector<16x16xf32>
    %540 = vector.extract_strided_slice %536 {offsets = [0, 0], sizes = [22, 16], strides = [1, 1]} : vector<22x22xf32> to vector<22x16xf32>
    %541 = vector.extract_strided_slice %538 {offsets = [0, 0], sizes = [22, 16], strides = [1, 1]} : vector<22x22xf32> to vector<22x16xf32>
    %c0_174 = arith.constant 0 : index
    %c0_175 = arith.constant 0 : index
    %542 = memref.load %arg2[%c0_174, %c0_175] : memref<2x49xf32, #tpu.memory_space<smem>>
    %543 = vector.extract_strided_slice %540 {offsets = [0, 0], sizes = [16, 16], strides = [1, 1]} : vector<22x16xf32> to vector<16x16xf32>
    %544 = vector.broadcast %542 : f32 to vector<16x16xf32>
    %545 = arith.mulf %544, %543 : vector<16x16xf32>
    %546 = arith.addf %539, %545 : vector<16x16xf32>
    %c1_176 = arith.constant 1 : index
    %c0_177 = arith.constant 0 : index
    %547 = memref.load %arg2[%c1_176, %c0_177] : memref<2x49xf32, #tpu.memory_space<smem>>
    %548 = vector.extract_strided_slice %541 {offsets = [0, 0], sizes = [16, 16], strides = [1, 1]} : vector<22x16xf32> to vector<16x16xf32>
    %549 = vector.broadcast %547 : f32 to vector<16x16xf32>
    %550 = arith.mulf %549, %548 : vector<16x16xf32>
    %551 = arith.addf %546, %550 : vector<16x16xf32>
    %c0_178 = arith.constant 0 : index
    %c7_179 = arith.constant 7 : index
    %552 = memref.load %arg2[%c0_178, %c7_179] : memref<2x49xf32, #tpu.memory_space<smem>>
    %553 = vector.extract_strided_slice %540 {offsets = [1, 0], sizes = [16, 16], strides = [1, 1]} : vector<22x16xf32> to vector<16x16xf32>
    %554 = vector.broadcast %552 : f32 to vector<16x16xf32>
    %555 = arith.mulf %554, %553 : vector<16x16xf32>
    %556 = arith.addf %551, %555 : vector<16x16xf32>
    %c1_180 = arith.constant 1 : index
    %c7_181 = arith.constant 7 : index
    %557 = memref.load %arg2[%c1_180, %c7_181] : memref<2x49xf32, #tpu.memory_space<smem>>
    %558 = vector.extract_strided_slice %541 {offsets = [1, 0], sizes = [16, 16], strides = [1, 1]} : vector<22x16xf32> to vector<16x16xf32>
    %559 = vector.broadcast %557 : f32 to vector<16x16xf32>
    %560 = arith.mulf %559, %558 : vector<16x16xf32>
    %561 = arith.addf %556, %560 : vector<16x16xf32>
    %c0_182 = arith.constant 0 : index
    %c14_183 = arith.constant 14 : index
    %562 = memref.load %arg2[%c0_182, %c14_183] : memref<2x49xf32, #tpu.memory_space<smem>>
    %563 = vector.extract_strided_slice %540 {offsets = [2, 0], sizes = [16, 16], strides = [1, 1]} : vector<22x16xf32> to vector<16x16xf32>
    %564 = vector.broadcast %562 : f32 to vector<16x16xf32>
    %565 = arith.mulf %564, %563 : vector<16x16xf32>
    %566 = arith.addf %561, %565 : vector<16x16xf32>
    %c1_184 = arith.constant 1 : index
    %c14_185 = arith.constant 14 : index
    %567 = memref.load %arg2[%c1_184, %c14_185] : memref<2x49xf32, #tpu.memory_space<smem>>
    %568 = vector.extract_strided_slice %541 {offsets = [2, 0], sizes = [16, 16], strides = [1, 1]} : vector<22x16xf32> to vector<16x16xf32>
    %569 = vector.broadcast %567 : f32 to vector<16x16xf32>
    %570 = arith.mulf %569, %568 : vector<16x16xf32>
    %571 = arith.addf %566, %570 : vector<16x16xf32>
    %c0_186 = arith.constant 0 : index
    %c21_187 = arith.constant 21 : index
    %572 = memref.load %arg2[%c0_186, %c21_187] : memref<2x49xf32, #tpu.memory_space<smem>>
    %573 = vector.extract_strided_slice %540 {offsets = [3, 0], sizes = [16, 16], strides = [1, 1]} : vector<22x16xf32> to vector<16x16xf32>
    %574 = vector.broadcast %572 : f32 to vector<16x16xf32>
    %575 = arith.mulf %574, %573 : vector<16x16xf32>
    %576 = arith.addf %571, %575 : vector<16x16xf32>
    %c1_188 = arith.constant 1 : index
    %c21_189 = arith.constant 21 : index
    %577 = memref.load %arg2[%c1_188, %c21_189] : memref<2x49xf32, #tpu.memory_space<smem>>
    %578 = vector.extract_strided_slice %541 {offsets = [3, 0], sizes = [16, 16], strides = [1, 1]} : vector<22x16xf32> to vector<16x16xf32>
    %579 = vector.broadcast %577 : f32 to vector<16x16xf32>
    %580 = arith.mulf %579, %578 : vector<16x16xf32>
    %581 = arith.addf %576, %580 : vector<16x16xf32>
    %c0_190 = arith.constant 0 : index
    %c28_191 = arith.constant 28 : index
    %582 = memref.load %arg2[%c0_190, %c28_191] : memref<2x49xf32, #tpu.memory_space<smem>>
    %583 = vector.extract_strided_slice %540 {offsets = [4, 0], sizes = [16, 16], strides = [1, 1]} : vector<22x16xf32> to vector<16x16xf32>
    %584 = vector.broadcast %582 : f32 to vector<16x16xf32>
    %585 = arith.mulf %584, %583 : vector<16x16xf32>
    %586 = arith.addf %581, %585 : vector<16x16xf32>
    %c1_192 = arith.constant 1 : index
    %c28_193 = arith.constant 28 : index
    %587 = memref.load %arg2[%c1_192, %c28_193] : memref<2x49xf32, #tpu.memory_space<smem>>
    %588 = vector.extract_strided_slice %541 {offsets = [4, 0], sizes = [16, 16], strides = [1, 1]} : vector<22x16xf32> to vector<16x16xf32>
    %589 = vector.broadcast %587 : f32 to vector<16x16xf32>
    %590 = arith.mulf %589, %588 : vector<16x16xf32>
    %591 = arith.addf %586, %590 : vector<16x16xf32>
    %c0_194 = arith.constant 0 : index
    %c35_195 = arith.constant 35 : index
    %592 = memref.load %arg2[%c0_194, %c35_195] : memref<2x49xf32, #tpu.memory_space<smem>>
    %593 = vector.extract_strided_slice %540 {offsets = [5, 0], sizes = [16, 16], strides = [1, 1]} : vector<22x16xf32> to vector<16x16xf32>
    %594 = vector.broadcast %592 : f32 to vector<16x16xf32>
    %595 = arith.mulf %594, %593 : vector<16x16xf32>
    %596 = arith.addf %591, %595 : vector<16x16xf32>
    %c1_196 = arith.constant 1 : index
    %c35_197 = arith.constant 35 : index
    %597 = memref.load %arg2[%c1_196, %c35_197] : memref<2x49xf32, #tpu.memory_space<smem>>
    %598 = vector.extract_strided_slice %541 {offsets = [5, 0], sizes = [16, 16], strides = [1, 1]} : vector<22x16xf32> to vector<16x16xf32>
    %599 = vector.broadcast %597 : f32 to vector<16x16xf32>
    %600 = arith.mulf %599, %598 : vector<16x16xf32>
    %601 = arith.addf %596, %600 : vector<16x16xf32>
    %c0_198 = arith.constant 0 : index
    %c42_199 = arith.constant 42 : index
    %602 = memref.load %arg2[%c0_198, %c42_199] : memref<2x49xf32, #tpu.memory_space<smem>>
    %603 = vector.extract_strided_slice %540 {offsets = [6, 0], sizes = [16, 16], strides = [1, 1]} : vector<22x16xf32> to vector<16x16xf32>
    %604 = vector.broadcast %602 : f32 to vector<16x16xf32>
    %605 = arith.mulf %604, %603 : vector<16x16xf32>
    %606 = arith.addf %601, %605 : vector<16x16xf32>
    %c1_200 = arith.constant 1 : index
    %c42_201 = arith.constant 42 : index
    %607 = memref.load %arg2[%c1_200, %c42_201] : memref<2x49xf32, #tpu.memory_space<smem>>
    %608 = vector.extract_strided_slice %541 {offsets = [6, 0], sizes = [16, 16], strides = [1, 1]} : vector<22x16xf32> to vector<16x16xf32>
    %609 = vector.broadcast %607 : f32 to vector<16x16xf32>
    %610 = arith.mulf %609, %608 : vector<16x16xf32>
    %611 = arith.addf %606, %610 : vector<16x16xf32>
    %612 = vector.extract_strided_slice %536 {offsets = [0, 1], sizes = [22, 16], strides = [1, 1]} : vector<22x22xf32> to vector<22x16xf32>
    %613 = vector.extract_strided_slice %538 {offsets = [0, 1], sizes = [22, 16], strides = [1, 1]} : vector<22x22xf32> to vector<22x16xf32>
    %c0_202 = arith.constant 0 : index
    %c1_203 = arith.constant 1 : index
    %614 = memref.load %arg2[%c0_202, %c1_203] : memref<2x49xf32, #tpu.memory_space<smem>>
    %615 = vector.extract_strided_slice %612 {offsets = [0, 0], sizes = [16, 16], strides = [1, 1]} : vector<22x16xf32> to vector<16x16xf32>
    %616 = vector.broadcast %614 : f32 to vector<16x16xf32>
    %617 = arith.mulf %616, %615 : vector<16x16xf32>
    %618 = arith.addf %611, %617 : vector<16x16xf32>
    %c1_204 = arith.constant 1 : index
    %c1_205 = arith.constant 1 : index
    %619 = memref.load %arg2[%c1_204, %c1_205] : memref<2x49xf32, #tpu.memory_space<smem>>
    %620 = vector.extract_strided_slice %613 {offsets = [0, 0], sizes = [16, 16], strides = [1, 1]} : vector<22x16xf32> to vector<16x16xf32>
    %621 = vector.broadcast %619 : f32 to vector<16x16xf32>
    %622 = arith.mulf %621, %620 : vector<16x16xf32>
    %623 = arith.addf %618, %622 : vector<16x16xf32>
    %c0_206 = arith.constant 0 : index
    %c8_207 = arith.constant 8 : index
    %624 = memref.load %arg2[%c0_206, %c8_207] : memref<2x49xf32, #tpu.memory_space<smem>>
    %625 = vector.extract_strided_slice %612 {offsets = [1, 0], sizes = [16, 16], strides = [1, 1]} : vector<22x16xf32> to vector<16x16xf32>
    %626 = vector.broadcast %624 : f32 to vector<16x16xf32>
    %627 = arith.mulf %626, %625 : vector<16x16xf32>
    %628 = arith.addf %623, %627 : vector<16x16xf32>
    %c1_208 = arith.constant 1 : index
    %c8_209 = arith.constant 8 : index
    %629 = memref.load %arg2[%c1_208, %c8_209] : memref<2x49xf32, #tpu.memory_space<smem>>
    %630 = vector.extract_strided_slice %613 {offsets = [1, 0], sizes = [16, 16], strides = [1, 1]} : vector<22x16xf32> to vector<16x16xf32>
    %631 = vector.broadcast %629 : f32 to vector<16x16xf32>
    %632 = arith.mulf %631, %630 : vector<16x16xf32>
    %633 = arith.addf %628, %632 : vector<16x16xf32>
    %c0_210 = arith.constant 0 : index
    %c15_211 = arith.constant 15 : index
    %634 = memref.load %arg2[%c0_210, %c15_211] : memref<2x49xf32, #tpu.memory_space<smem>>
    %635 = vector.extract_strided_slice %612 {offsets = [2, 0], sizes = [16, 16], strides = [1, 1]} : vector<22x16xf32> to vector<16x16xf32>
    %636 = vector.broadcast %634 : f32 to vector<16x16xf32>
    %637 = arith.mulf %636, %635 : vector<16x16xf32>
    %638 = arith.addf %633, %637 : vector<16x16xf32>
    %c1_212 = arith.constant 1 : index
    %c15_213 = arith.constant 15 : index
    %639 = memref.load %arg2[%c1_212, %c15_213] : memref<2x49xf32, #tpu.memory_space<smem>>
    %640 = vector.extract_strided_slice %613 {offsets = [2, 0], sizes = [16, 16], strides = [1, 1]} : vector<22x16xf32> to vector<16x16xf32>
    %641 = vector.broadcast %639 : f32 to vector<16x16xf32>
    %642 = arith.mulf %641, %640 : vector<16x16xf32>
    %643 = arith.addf %638, %642 : vector<16x16xf32>
    %c0_214 = arith.constant 0 : index
    %c22_215 = arith.constant 22 : index
    %644 = memref.load %arg2[%c0_214, %c22_215] : memref<2x49xf32, #tpu.memory_space<smem>>
    %645 = vector.extract_strided_slice %612 {offsets = [3, 0], sizes = [16, 16], strides = [1, 1]} : vector<22x16xf32> to vector<16x16xf32>
    %646 = vector.broadcast %644 : f32 to vector<16x16xf32>
    %647 = arith.mulf %646, %645 : vector<16x16xf32>
    %648 = arith.addf %643, %647 : vector<16x16xf32>
    %c1_216 = arith.constant 1 : index
    %c22_217 = arith.constant 22 : index
    %649 = memref.load %arg2[%c1_216, %c22_217] : memref<2x49xf32, #tpu.memory_space<smem>>
    %650 = vector.extract_strided_slice %613 {offsets = [3, 0], sizes = [16, 16], strides = [1, 1]} : vector<22x16xf32> to vector<16x16xf32>
    %651 = vector.broadcast %649 : f32 to vector<16x16xf32>
    %652 = arith.mulf %651, %650 : vector<16x16xf32>
    %653 = arith.addf %648, %652 : vector<16x16xf32>
    %c0_218 = arith.constant 0 : index
    %c29_219 = arith.constant 29 : index
    %654 = memref.load %arg2[%c0_218, %c29_219] : memref<2x49xf32, #tpu.memory_space<smem>>
    %655 = vector.extract_strided_slice %612 {offsets = [4, 0], sizes = [16, 16], strides = [1, 1]} : vector<22x16xf32> to vector<16x16xf32>
    %656 = vector.broadcast %654 : f32 to vector<16x16xf32>
    %657 = arith.mulf %656, %655 : vector<16x16xf32>
    %658 = arith.addf %653, %657 : vector<16x16xf32>
    %c1_220 = arith.constant 1 : index
    %c29_221 = arith.constant 29 : index
    %659 = memref.load %arg2[%c1_220, %c29_221] : memref<2x49xf32, #tpu.memory_space<smem>>
    %660 = vector.extract_strided_slice %613 {offsets = [4, 0], sizes = [16, 16], strides = [1, 1]} : vector<22x16xf32> to vector<16x16xf32>
    %661 = vector.broadcast %659 : f32 to vector<16x16xf32>
    %662 = arith.mulf %661, %660 : vector<16x16xf32>
    %663 = arith.addf %658, %662 : vector<16x16xf32>
    %c0_222 = arith.constant 0 : index
    %c36_223 = arith.constant 36 : index
    %664 = memref.load %arg2[%c0_222, %c36_223] : memref<2x49xf32, #tpu.memory_space<smem>>
    %665 = vector.extract_strided_slice %612 {offsets = [5, 0], sizes = [16, 16], strides = [1, 1]} : vector<22x16xf32> to vector<16x16xf32>
    %666 = vector.broadcast %664 : f32 to vector<16x16xf32>
    %667 = arith.mulf %666, %665 : vector<16x16xf32>
    %668 = arith.addf %663, %667 : vector<16x16xf32>
    %c1_224 = arith.constant 1 : index
    %c36_225 = arith.constant 36 : index
    %669 = memref.load %arg2[%c1_224, %c36_225] : memref<2x49xf32, #tpu.memory_space<smem>>
    %670 = vector.extract_strided_slice %613 {offsets = [5, 0], sizes = [16, 16], strides = [1, 1]} : vector<22x16xf32> to vector<16x16xf32>
    %671 = vector.broadcast %669 : f32 to vector<16x16xf32>
    %672 = arith.mulf %671, %670 : vector<16x16xf32>
    %673 = arith.addf %668, %672 : vector<16x16xf32>
    %c0_226 = arith.constant 0 : index
    %c43_227 = arith.constant 43 : index
    %674 = memref.load %arg2[%c0_226, %c43_227] : memref<2x49xf32, #tpu.memory_space<smem>>
    %675 = vector.extract_strided_slice %612 {offsets = [6, 0], sizes = [16, 16], strides = [1, 1]} : vector<22x16xf32> to vector<16x16xf32>
    %676 = vector.broadcast %674 : f32 to vector<16x16xf32>
    %677 = arith.mulf %676, %675 : vector<16x16xf32>
    %678 = arith.addf %673, %677 : vector<16x16xf32>
    %c1_228 = arith.constant 1 : index
    %c43_229 = arith.constant 43 : index
    %679 = memref.load %arg2[%c1_228, %c43_229] : memref<2x49xf32, #tpu.memory_space<smem>>
    %680 = vector.extract_strided_slice %613 {offsets = [6, 0], sizes = [16, 16], strides = [1, 1]} : vector<22x16xf32> to vector<16x16xf32>
    %681 = vector.broadcast %679 : f32 to vector<16x16xf32>
    %682 = arith.mulf %681, %680 : vector<16x16xf32>
    %683 = arith.addf %678, %682 : vector<16x16xf32>
    %684 = vector.extract_strided_slice %536 {offsets = [0, 2], sizes = [22, 16], strides = [1, 1]} : vector<22x22xf32> to vector<22x16xf32>
    %685 = vector.extract_strided_slice %538 {offsets = [0, 2], sizes = [22, 16], strides = [1, 1]} : vector<22x22xf32> to vector<22x16xf32>
    %c0_230 = arith.constant 0 : index
    %c2_231 = arith.constant 2 : index
    %686 = memref.load %arg2[%c0_230, %c2_231] : memref<2x49xf32, #tpu.memory_space<smem>>
    %687 = vector.extract_strided_slice %684 {offsets = [0, 0], sizes = [16, 16], strides = [1, 1]} : vector<22x16xf32> to vector<16x16xf32>
    %688 = vector.broadcast %686 : f32 to vector<16x16xf32>
    %689 = arith.mulf %688, %687 : vector<16x16xf32>
    %690 = arith.addf %683, %689 : vector<16x16xf32>
    %c1_232 = arith.constant 1 : index
    %c2_233 = arith.constant 2 : index
    %691 = memref.load %arg2[%c1_232, %c2_233] : memref<2x49xf32, #tpu.memory_space<smem>>
    %692 = vector.extract_strided_slice %685 {offsets = [0, 0], sizes = [16, 16], strides = [1, 1]} : vector<22x16xf32> to vector<16x16xf32>
    %693 = vector.broadcast %691 : f32 to vector<16x16xf32>
    %694 = arith.mulf %693, %692 : vector<16x16xf32>
    %695 = arith.addf %690, %694 : vector<16x16xf32>
    %c0_234 = arith.constant 0 : index
    %c9_235 = arith.constant 9 : index
    %696 = memref.load %arg2[%c0_234, %c9_235] : memref<2x49xf32, #tpu.memory_space<smem>>
    %697 = vector.extract_strided_slice %684 {offsets = [1, 0], sizes = [16, 16], strides = [1, 1]} : vector<22x16xf32> to vector<16x16xf32>
    %698 = vector.broadcast %696 : f32 to vector<16x16xf32>
    %699 = arith.mulf %698, %697 : vector<16x16xf32>
    %700 = arith.addf %695, %699 : vector<16x16xf32>
    %c1_236 = arith.constant 1 : index
    %c9_237 = arith.constant 9 : index
    %701 = memref.load %arg2[%c1_236, %c9_237] : memref<2x49xf32, #tpu.memory_space<smem>>
    %702 = vector.extract_strided_slice %685 {offsets = [1, 0], sizes = [16, 16], strides = [1, 1]} : vector<22x16xf32> to vector<16x16xf32>
    %703 = vector.broadcast %701 : f32 to vector<16x16xf32>
    %704 = arith.mulf %703, %702 : vector<16x16xf32>
    %705 = arith.addf %700, %704 : vector<16x16xf32>
    %c0_238 = arith.constant 0 : index
    %c16_239 = arith.constant 16 : index
    %706 = memref.load %arg2[%c0_238, %c16_239] : memref<2x49xf32, #tpu.memory_space<smem>>
    %707 = vector.extract_strided_slice %684 {offsets = [2, 0], sizes = [16, 16], strides = [1, 1]} : vector<22x16xf32> to vector<16x16xf32>
    %708 = vector.broadcast %706 : f32 to vector<16x16xf32>
    %709 = arith.mulf %708, %707 : vector<16x16xf32>
    %710 = arith.addf %705, %709 : vector<16x16xf32>
    %c1_240 = arith.constant 1 : index
    %c16_241 = arith.constant 16 : index
    %711 = memref.load %arg2[%c1_240, %c16_241] : memref<2x49xf32, #tpu.memory_space<smem>>
    %712 = vector.extract_strided_slice %685 {offsets = [2, 0], sizes = [16, 16], strides = [1, 1]} : vector<22x16xf32> to vector<16x16xf32>
    %713 = vector.broadcast %711 : f32 to vector<16x16xf32>
    %714 = arith.mulf %713, %712 : vector<16x16xf32>
    %715 = arith.addf %710, %714 : vector<16x16xf32>
    %c0_242 = arith.constant 0 : index
    %c23_243 = arith.constant 23 : index
    %716 = memref.load %arg2[%c0_242, %c23_243] : memref<2x49xf32, #tpu.memory_space<smem>>
    %717 = vector.extract_strided_slice %684 {offsets = [3, 0], sizes = [16, 16], strides = [1, 1]} : vector<22x16xf32> to vector<16x16xf32>
    %718 = vector.broadcast %716 : f32 to vector<16x16xf32>
    %719 = arith.mulf %718, %717 : vector<16x16xf32>
    %720 = arith.addf %715, %719 : vector<16x16xf32>
    %c1_244 = arith.constant 1 : index
    %c23_245 = arith.constant 23 : index
    %721 = memref.load %arg2[%c1_244, %c23_245] : memref<2x49xf32, #tpu.memory_space<smem>>
    %722 = vector.extract_strided_slice %685 {offsets = [3, 0], sizes = [16, 16], strides = [1, 1]} : vector<22x16xf32> to vector<16x16xf32>
    %723 = vector.broadcast %721 : f32 to vector<16x16xf32>
    %724 = arith.mulf %723, %722 : vector<16x16xf32>
    %725 = arith.addf %720, %724 : vector<16x16xf32>
    %c0_246 = arith.constant 0 : index
    %c30_247 = arith.constant 30 : index
    %726 = memref.load %arg2[%c0_246, %c30_247] : memref<2x49xf32, #tpu.memory_space<smem>>
    %727 = vector.extract_strided_slice %684 {offsets = [4, 0], sizes = [16, 16], strides = [1, 1]} : vector<22x16xf32> to vector<16x16xf32>
    %728 = vector.broadcast %726 : f32 to vector<16x16xf32>
    %729 = arith.mulf %728, %727 : vector<16x16xf32>
    %730 = arith.addf %725, %729 : vector<16x16xf32>
    %c1_248 = arith.constant 1 : index
    %c30_249 = arith.constant 30 : index
    %731 = memref.load %arg2[%c1_248, %c30_249] : memref<2x49xf32, #tpu.memory_space<smem>>
    %732 = vector.extract_strided_slice %685 {offsets = [4, 0], sizes = [16, 16], strides = [1, 1]} : vector<22x16xf32> to vector<16x16xf32>
    %733 = vector.broadcast %731 : f32 to vector<16x16xf32>
    %734 = arith.mulf %733, %732 : vector<16x16xf32>
    %735 = arith.addf %730, %734 : vector<16x16xf32>
    %c0_250 = arith.constant 0 : index
    %c37_251 = arith.constant 37 : index
    %736 = memref.load %arg2[%c0_250, %c37_251] : memref<2x49xf32, #tpu.memory_space<smem>>
    %737 = vector.extract_strided_slice %684 {offsets = [5, 0], sizes = [16, 16], strides = [1, 1]} : vector<22x16xf32> to vector<16x16xf32>
    %738 = vector.broadcast %736 : f32 to vector<16x16xf32>
    %739 = arith.mulf %738, %737 : vector<16x16xf32>
    %740 = arith.addf %735, %739 : vector<16x16xf32>
    %c1_252 = arith.constant 1 : index
    %c37_253 = arith.constant 37 : index
    %741 = memref.load %arg2[%c1_252, %c37_253] : memref<2x49xf32, #tpu.memory_space<smem>>
    %742 = vector.extract_strided_slice %685 {offsets = [5, 0], sizes = [16, 16], strides = [1, 1]} : vector<22x16xf32> to vector<16x16xf32>
    %743 = vector.broadcast %741 : f32 to vector<16x16xf32>
    %744 = arith.mulf %743, %742 : vector<16x16xf32>
    %745 = arith.addf %740, %744 : vector<16x16xf32>
    %c0_254 = arith.constant 0 : index
    %c44_255 = arith.constant 44 : index
    %746 = memref.load %arg2[%c0_254, %c44_255] : memref<2x49xf32, #tpu.memory_space<smem>>
    %747 = vector.extract_strided_slice %684 {offsets = [6, 0], sizes = [16, 16], strides = [1, 1]} : vector<22x16xf32> to vector<16x16xf32>
    %748 = vector.broadcast %746 : f32 to vector<16x16xf32>
    %749 = arith.mulf %748, %747 : vector<16x16xf32>
    %750 = arith.addf %745, %749 : vector<16x16xf32>
    %c1_256 = arith.constant 1 : index
    %c44_257 = arith.constant 44 : index
    %751 = memref.load %arg2[%c1_256, %c44_257] : memref<2x49xf32, #tpu.memory_space<smem>>
    %752 = vector.extract_strided_slice %685 {offsets = [6, 0], sizes = [16, 16], strides = [1, 1]} : vector<22x16xf32> to vector<16x16xf32>
    %753 = vector.broadcast %751 : f32 to vector<16x16xf32>
    %754 = arith.mulf %753, %752 : vector<16x16xf32>
    %755 = arith.addf %750, %754 : vector<16x16xf32>
    %756 = vector.extract_strided_slice %536 {offsets = [0, 3], sizes = [22, 16], strides = [1, 1]} : vector<22x22xf32> to vector<22x16xf32>
    %757 = vector.extract_strided_slice %538 {offsets = [0, 3], sizes = [22, 16], strides = [1, 1]} : vector<22x22xf32> to vector<22x16xf32>
    %c0_258 = arith.constant 0 : index
    %c3_259 = arith.constant 3 : index
    %758 = memref.load %arg2[%c0_258, %c3_259] : memref<2x49xf32, #tpu.memory_space<smem>>
    %759 = vector.extract_strided_slice %756 {offsets = [0, 0], sizes = [16, 16], strides = [1, 1]} : vector<22x16xf32> to vector<16x16xf32>
    %760 = vector.broadcast %758 : f32 to vector<16x16xf32>
    %761 = arith.mulf %760, %759 : vector<16x16xf32>
    %762 = arith.addf %755, %761 : vector<16x16xf32>
    %c1_260 = arith.constant 1 : index
    %c3_261 = arith.constant 3 : index
    %763 = memref.load %arg2[%c1_260, %c3_261] : memref<2x49xf32, #tpu.memory_space<smem>>
    %764 = vector.extract_strided_slice %757 {offsets = [0, 0], sizes = [16, 16], strides = [1, 1]} : vector<22x16xf32> to vector<16x16xf32>
    %765 = vector.broadcast %763 : f32 to vector<16x16xf32>
    %766 = arith.mulf %765, %764 : vector<16x16xf32>
    %767 = arith.addf %762, %766 : vector<16x16xf32>
    %c0_262 = arith.constant 0 : index
    %c10_263 = arith.constant 10 : index
    %768 = memref.load %arg2[%c0_262, %c10_263] : memref<2x49xf32, #tpu.memory_space<smem>>
    %769 = vector.extract_strided_slice %756 {offsets = [1, 0], sizes = [16, 16], strides = [1, 1]} : vector<22x16xf32> to vector<16x16xf32>
    %770 = vector.broadcast %768 : f32 to vector<16x16xf32>
    %771 = arith.mulf %770, %769 : vector<16x16xf32>
    %772 = arith.addf %767, %771 : vector<16x16xf32>
    %c1_264 = arith.constant 1 : index
    %c10_265 = arith.constant 10 : index
    %773 = memref.load %arg2[%c1_264, %c10_265] : memref<2x49xf32, #tpu.memory_space<smem>>
    %774 = vector.extract_strided_slice %757 {offsets = [1, 0], sizes = [16, 16], strides = [1, 1]} : vector<22x16xf32> to vector<16x16xf32>
    %775 = vector.broadcast %773 : f32 to vector<16x16xf32>
    %776 = arith.mulf %775, %774 : vector<16x16xf32>
    %777 = arith.addf %772, %776 : vector<16x16xf32>
    %c0_266 = arith.constant 0 : index
    %c17_267 = arith.constant 17 : index
    %778 = memref.load %arg2[%c0_266, %c17_267] : memref<2x49xf32, #tpu.memory_space<smem>>
    %779 = vector.extract_strided_slice %756 {offsets = [2, 0], sizes = [16, 16], strides = [1, 1]} : vector<22x16xf32> to vector<16x16xf32>
    %780 = vector.broadcast %778 : f32 to vector<16x16xf32>
    %781 = arith.mulf %780, %779 : vector<16x16xf32>
    %782 = arith.addf %777, %781 : vector<16x16xf32>
    %c1_268 = arith.constant 1 : index
    %c17_269 = arith.constant 17 : index
    %783 = memref.load %arg2[%c1_268, %c17_269] : memref<2x49xf32, #tpu.memory_space<smem>>
    %784 = vector.extract_strided_slice %757 {offsets = [2, 0], sizes = [16, 16], strides = [1, 1]} : vector<22x16xf32> to vector<16x16xf32>
    %785 = vector.broadcast %783 : f32 to vector<16x16xf32>
    %786 = arith.mulf %785, %784 : vector<16x16xf32>
    %787 = arith.addf %782, %786 : vector<16x16xf32>
    %c0_270 = arith.constant 0 : index
    %c24_271 = arith.constant 24 : index
    %788 = memref.load %arg2[%c0_270, %c24_271] : memref<2x49xf32, #tpu.memory_space<smem>>
    %789 = vector.extract_strided_slice %756 {offsets = [3, 0], sizes = [16, 16], strides = [1, 1]} : vector<22x16xf32> to vector<16x16xf32>
    %790 = vector.broadcast %788 : f32 to vector<16x16xf32>
    %791 = arith.mulf %790, %789 : vector<16x16xf32>
    %792 = arith.addf %787, %791 : vector<16x16xf32>
    %c1_272 = arith.constant 1 : index
    %c24_273 = arith.constant 24 : index
    %793 = memref.load %arg2[%c1_272, %c24_273] : memref<2x49xf32, #tpu.memory_space<smem>>
    %794 = vector.extract_strided_slice %757 {offsets = [3, 0], sizes = [16, 16], strides = [1, 1]} : vector<22x16xf32> to vector<16x16xf32>
    %795 = vector.broadcast %793 : f32 to vector<16x16xf32>
    %796 = arith.mulf %795, %794 : vector<16x16xf32>
    %797 = arith.addf %792, %796 : vector<16x16xf32>
    %c0_274 = arith.constant 0 : index
    %c31_275 = arith.constant 31 : index
    %798 = memref.load %arg2[%c0_274, %c31_275] : memref<2x49xf32, #tpu.memory_space<smem>>
    %799 = vector.extract_strided_slice %756 {offsets = [4, 0], sizes = [16, 16], strides = [1, 1]} : vector<22x16xf32> to vector<16x16xf32>
    %800 = vector.broadcast %798 : f32 to vector<16x16xf32>
    %801 = arith.mulf %800, %799 : vector<16x16xf32>
    %802 = arith.addf %797, %801 : vector<16x16xf32>
    %c1_276 = arith.constant 1 : index
    %c31_277 = arith.constant 31 : index
    %803 = memref.load %arg2[%c1_276, %c31_277] : memref<2x49xf32, #tpu.memory_space<smem>>
    %804 = vector.extract_strided_slice %757 {offsets = [4, 0], sizes = [16, 16], strides = [1, 1]} : vector<22x16xf32> to vector<16x16xf32>
    %805 = vector.broadcast %803 : f32 to vector<16x16xf32>
    %806 = arith.mulf %805, %804 : vector<16x16xf32>
    %807 = arith.addf %802, %806 : vector<16x16xf32>
    %c0_278 = arith.constant 0 : index
    %c38_279 = arith.constant 38 : index
    %808 = memref.load %arg2[%c0_278, %c38_279] : memref<2x49xf32, #tpu.memory_space<smem>>
    %809 = vector.extract_strided_slice %756 {offsets = [5, 0], sizes = [16, 16], strides = [1, 1]} : vector<22x16xf32> to vector<16x16xf32>
    %810 = vector.broadcast %808 : f32 to vector<16x16xf32>
    %811 = arith.mulf %810, %809 : vector<16x16xf32>
    %812 = arith.addf %807, %811 : vector<16x16xf32>
    %c1_280 = arith.constant 1 : index
    %c38_281 = arith.constant 38 : index
    %813 = memref.load %arg2[%c1_280, %c38_281] : memref<2x49xf32, #tpu.memory_space<smem>>
    %814 = vector.extract_strided_slice %757 {offsets = [5, 0], sizes = [16, 16], strides = [1, 1]} : vector<22x16xf32> to vector<16x16xf32>
    %815 = vector.broadcast %813 : f32 to vector<16x16xf32>
    %816 = arith.mulf %815, %814 : vector<16x16xf32>
    %817 = arith.addf %812, %816 : vector<16x16xf32>
    %c0_282 = arith.constant 0 : index
    %c45_283 = arith.constant 45 : index
    %818 = memref.load %arg2[%c0_282, %c45_283] : memref<2x49xf32, #tpu.memory_space<smem>>
    %819 = vector.extract_strided_slice %756 {offsets = [6, 0], sizes = [16, 16], strides = [1, 1]} : vector<22x16xf32> to vector<16x16xf32>
    %820 = vector.broadcast %818 : f32 to vector<16x16xf32>
    %821 = arith.mulf %820, %819 : vector<16x16xf32>
    %822 = arith.addf %817, %821 : vector<16x16xf32>
    %c1_284 = arith.constant 1 : index
    %c45_285 = arith.constant 45 : index
    %823 = memref.load %arg2[%c1_284, %c45_285] : memref<2x49xf32, #tpu.memory_space<smem>>
    %824 = vector.extract_strided_slice %757 {offsets = [6, 0], sizes = [16, 16], strides = [1, 1]} : vector<22x16xf32> to vector<16x16xf32>
    %825 = vector.broadcast %823 : f32 to vector<16x16xf32>
    %826 = arith.mulf %825, %824 : vector<16x16xf32>
    %827 = arith.addf %822, %826 : vector<16x16xf32>
    %828 = vector.extract_strided_slice %536 {offsets = [0, 4], sizes = [22, 16], strides = [1, 1]} : vector<22x22xf32> to vector<22x16xf32>
    %829 = vector.extract_strided_slice %538 {offsets = [0, 4], sizes = [22, 16], strides = [1, 1]} : vector<22x22xf32> to vector<22x16xf32>
    %c0_286 = arith.constant 0 : index
    %c4_287 = arith.constant 4 : index
    %830 = memref.load %arg2[%c0_286, %c4_287] : memref<2x49xf32, #tpu.memory_space<smem>>
    %831 = vector.extract_strided_slice %828 {offsets = [0, 0], sizes = [16, 16], strides = [1, 1]} : vector<22x16xf32> to vector<16x16xf32>
    %832 = vector.broadcast %830 : f32 to vector<16x16xf32>
    %833 = arith.mulf %832, %831 : vector<16x16xf32>
    %834 = arith.addf %827, %833 : vector<16x16xf32>
    %c1_288 = arith.constant 1 : index
    %c4_289 = arith.constant 4 : index
    %835 = memref.load %arg2[%c1_288, %c4_289] : memref<2x49xf32, #tpu.memory_space<smem>>
    %836 = vector.extract_strided_slice %829 {offsets = [0, 0], sizes = [16, 16], strides = [1, 1]} : vector<22x16xf32> to vector<16x16xf32>
    %837 = vector.broadcast %835 : f32 to vector<16x16xf32>
    %838 = arith.mulf %837, %836 : vector<16x16xf32>
    %839 = arith.addf %834, %838 : vector<16x16xf32>
    %c0_290 = arith.constant 0 : index
    %c11_291 = arith.constant 11 : index
    %840 = memref.load %arg2[%c0_290, %c11_291] : memref<2x49xf32, #tpu.memory_space<smem>>
    %841 = vector.extract_strided_slice %828 {offsets = [1, 0], sizes = [16, 16], strides = [1, 1]} : vector<22x16xf32> to vector<16x16xf32>
    %842 = vector.broadcast %840 : f32 to vector<16x16xf32>
    %843 = arith.mulf %842, %841 : vector<16x16xf32>
    %844 = arith.addf %839, %843 : vector<16x16xf32>
    %c1_292 = arith.constant 1 : index
    %c11_293 = arith.constant 11 : index
    %845 = memref.load %arg2[%c1_292, %c11_293] : memref<2x49xf32, #tpu.memory_space<smem>>
    %846 = vector.extract_strided_slice %829 {offsets = [1, 0], sizes = [16, 16], strides = [1, 1]} : vector<22x16xf32> to vector<16x16xf32>
    %847 = vector.broadcast %845 : f32 to vector<16x16xf32>
    %848 = arith.mulf %847, %846 : vector<16x16xf32>
    %849 = arith.addf %844, %848 : vector<16x16xf32>
    %c0_294 = arith.constant 0 : index
    %c18_295 = arith.constant 18 : index
    %850 = memref.load %arg2[%c0_294, %c18_295] : memref<2x49xf32, #tpu.memory_space<smem>>
    %851 = vector.extract_strided_slice %828 {offsets = [2, 0], sizes = [16, 16], strides = [1, 1]} : vector<22x16xf32> to vector<16x16xf32>
    %852 = vector.broadcast %850 : f32 to vector<16x16xf32>
    %853 = arith.mulf %852, %851 : vector<16x16xf32>
    %854 = arith.addf %849, %853 : vector<16x16xf32>
    %c1_296 = arith.constant 1 : index
    %c18_297 = arith.constant 18 : index
    %855 = memref.load %arg2[%c1_296, %c18_297] : memref<2x49xf32, #tpu.memory_space<smem>>
    %856 = vector.extract_strided_slice %829 {offsets = [2, 0], sizes = [16, 16], strides = [1, 1]} : vector<22x16xf32> to vector<16x16xf32>
    %857 = vector.broadcast %855 : f32 to vector<16x16xf32>
    %858 = arith.mulf %857, %856 : vector<16x16xf32>
    %859 = arith.addf %854, %858 : vector<16x16xf32>
    %c0_298 = arith.constant 0 : index
    %c25_299 = arith.constant 25 : index
    %860 = memref.load %arg2[%c0_298, %c25_299] : memref<2x49xf32, #tpu.memory_space<smem>>
    %861 = vector.extract_strided_slice %828 {offsets = [3, 0], sizes = [16, 16], strides = [1, 1]} : vector<22x16xf32> to vector<16x16xf32>
    %862 = vector.broadcast %860 : f32 to vector<16x16xf32>
    %863 = arith.mulf %862, %861 : vector<16x16xf32>
    %864 = arith.addf %859, %863 : vector<16x16xf32>
    %c1_300 = arith.constant 1 : index
    %c25_301 = arith.constant 25 : index
    %865 = memref.load %arg2[%c1_300, %c25_301] : memref<2x49xf32, #tpu.memory_space<smem>>
    %866 = vector.extract_strided_slice %829 {offsets = [3, 0], sizes = [16, 16], strides = [1, 1]} : vector<22x16xf32> to vector<16x16xf32>
    %867 = vector.broadcast %865 : f32 to vector<16x16xf32>
    %868 = arith.mulf %867, %866 : vector<16x16xf32>
    %869 = arith.addf %864, %868 : vector<16x16xf32>
    %c0_302 = arith.constant 0 : index
    %c32_303 = arith.constant 32 : index
    %870 = memref.load %arg2[%c0_302, %c32_303] : memref<2x49xf32, #tpu.memory_space<smem>>
    %871 = vector.extract_strided_slice %828 {offsets = [4, 0], sizes = [16, 16], strides = [1, 1]} : vector<22x16xf32> to vector<16x16xf32>
    %872 = vector.broadcast %870 : f32 to vector<16x16xf32>
    %873 = arith.mulf %872, %871 : vector<16x16xf32>
    %874 = arith.addf %869, %873 : vector<16x16xf32>
    %c1_304 = arith.constant 1 : index
    %c32_305 = arith.constant 32 : index
    %875 = memref.load %arg2[%c1_304, %c32_305] : memref<2x49xf32, #tpu.memory_space<smem>>
    %876 = vector.extract_strided_slice %829 {offsets = [4, 0], sizes = [16, 16], strides = [1, 1]} : vector<22x16xf32> to vector<16x16xf32>
    %877 = vector.broadcast %875 : f32 to vector<16x16xf32>
    %878 = arith.mulf %877, %876 : vector<16x16xf32>
    %879 = arith.addf %874, %878 : vector<16x16xf32>
    %c0_306 = arith.constant 0 : index
    %c39_307 = arith.constant 39 : index
    %880 = memref.load %arg2[%c0_306, %c39_307] : memref<2x49xf32, #tpu.memory_space<smem>>
    %881 = vector.extract_strided_slice %828 {offsets = [5, 0], sizes = [16, 16], strides = [1, 1]} : vector<22x16xf32> to vector<16x16xf32>
    %882 = vector.broadcast %880 : f32 to vector<16x16xf32>
    %883 = arith.mulf %882, %881 : vector<16x16xf32>
    %884 = arith.addf %879, %883 : vector<16x16xf32>
    %c1_308 = arith.constant 1 : index
    %c39_309 = arith.constant 39 : index
    %885 = memref.load %arg2[%c1_308, %c39_309] : memref<2x49xf32, #tpu.memory_space<smem>>
    %886 = vector.extract_strided_slice %829 {offsets = [5, 0], sizes = [16, 16], strides = [1, 1]} : vector<22x16xf32> to vector<16x16xf32>
    %887 = vector.broadcast %885 : f32 to vector<16x16xf32>
    %888 = arith.mulf %887, %886 : vector<16x16xf32>
    %889 = arith.addf %884, %888 : vector<16x16xf32>
    %c0_310 = arith.constant 0 : index
    %c46_311 = arith.constant 46 : index
    %890 = memref.load %arg2[%c0_310, %c46_311] : memref<2x49xf32, #tpu.memory_space<smem>>
    %891 = vector.extract_strided_slice %828 {offsets = [6, 0], sizes = [16, 16], strides = [1, 1]} : vector<22x16xf32> to vector<16x16xf32>
    %892 = vector.broadcast %890 : f32 to vector<16x16xf32>
    %893 = arith.mulf %892, %891 : vector<16x16xf32>
    %894 = arith.addf %889, %893 : vector<16x16xf32>
    %c1_312 = arith.constant 1 : index
    %c46_313 = arith.constant 46 : index
    %895 = memref.load %arg2[%c1_312, %c46_313] : memref<2x49xf32, #tpu.memory_space<smem>>
    %896 = vector.extract_strided_slice %829 {offsets = [6, 0], sizes = [16, 16], strides = [1, 1]} : vector<22x16xf32> to vector<16x16xf32>
    %897 = vector.broadcast %895 : f32 to vector<16x16xf32>
    %898 = arith.mulf %897, %896 : vector<16x16xf32>
    %899 = arith.addf %894, %898 : vector<16x16xf32>
    %900 = vector.extract_strided_slice %536 {offsets = [0, 5], sizes = [22, 16], strides = [1, 1]} : vector<22x22xf32> to vector<22x16xf32>
    %901 = vector.extract_strided_slice %538 {offsets = [0, 5], sizes = [22, 16], strides = [1, 1]} : vector<22x22xf32> to vector<22x16xf32>
    %c0_314 = arith.constant 0 : index
    %c5_315 = arith.constant 5 : index
    %902 = memref.load %arg2[%c0_314, %c5_315] : memref<2x49xf32, #tpu.memory_space<smem>>
    %903 = vector.extract_strided_slice %900 {offsets = [0, 0], sizes = [16, 16], strides = [1, 1]} : vector<22x16xf32> to vector<16x16xf32>
    %904 = vector.broadcast %902 : f32 to vector<16x16xf32>
    %905 = arith.mulf %904, %903 : vector<16x16xf32>
    %906 = arith.addf %899, %905 : vector<16x16xf32>
    %c1_316 = arith.constant 1 : index
    %c5_317 = arith.constant 5 : index
    %907 = memref.load %arg2[%c1_316, %c5_317] : memref<2x49xf32, #tpu.memory_space<smem>>
    %908 = vector.extract_strided_slice %901 {offsets = [0, 0], sizes = [16, 16], strides = [1, 1]} : vector<22x16xf32> to vector<16x16xf32>
    %909 = vector.broadcast %907 : f32 to vector<16x16xf32>
    %910 = arith.mulf %909, %908 : vector<16x16xf32>
    %911 = arith.addf %906, %910 : vector<16x16xf32>
    %c0_318 = arith.constant 0 : index
    %c12_319 = arith.constant 12 : index
    %912 = memref.load %arg2[%c0_318, %c12_319] : memref<2x49xf32, #tpu.memory_space<smem>>
    %913 = vector.extract_strided_slice %900 {offsets = [1, 0], sizes = [16, 16], strides = [1, 1]} : vector<22x16xf32> to vector<16x16xf32>
    %914 = vector.broadcast %912 : f32 to vector<16x16xf32>
    %915 = arith.mulf %914, %913 : vector<16x16xf32>
    %916 = arith.addf %911, %915 : vector<16x16xf32>
    %c1_320 = arith.constant 1 : index
    %c12_321 = arith.constant 12 : index
    %917 = memref.load %arg2[%c1_320, %c12_321] : memref<2x49xf32, #tpu.memory_space<smem>>
    %918 = vector.extract_strided_slice %901 {offsets = [1, 0], sizes = [16, 16], strides = [1, 1]} : vector<22x16xf32> to vector<16x16xf32>
    %919 = vector.broadcast %917 : f32 to vector<16x16xf32>
    %920 = arith.mulf %919, %918 : vector<16x16xf32>
    %921 = arith.addf %916, %920 : vector<16x16xf32>
    %c0_322 = arith.constant 0 : index
    %c19_323 = arith.constant 19 : index
    %922 = memref.load %arg2[%c0_322, %c19_323] : memref<2x49xf32, #tpu.memory_space<smem>>
    %923 = vector.extract_strided_slice %900 {offsets = [2, 0], sizes = [16, 16], strides = [1, 1]} : vector<22x16xf32> to vector<16x16xf32>
    %924 = vector.broadcast %922 : f32 to vector<16x16xf32>
    %925 = arith.mulf %924, %923 : vector<16x16xf32>
    %926 = arith.addf %921, %925 : vector<16x16xf32>
    %c1_324 = arith.constant 1 : index
    %c19_325 = arith.constant 19 : index
    %927 = memref.load %arg2[%c1_324, %c19_325] : memref<2x49xf32, #tpu.memory_space<smem>>
    %928 = vector.extract_strided_slice %901 {offsets = [2, 0], sizes = [16, 16], strides = [1, 1]} : vector<22x16xf32> to vector<16x16xf32>
    %929 = vector.broadcast %927 : f32 to vector<16x16xf32>
    %930 = arith.mulf %929, %928 : vector<16x16xf32>
    %931 = arith.addf %926, %930 : vector<16x16xf32>
    %c0_326 = arith.constant 0 : index
    %c26_327 = arith.constant 26 : index
    %932 = memref.load %arg2[%c0_326, %c26_327] : memref<2x49xf32, #tpu.memory_space<smem>>
    %933 = vector.extract_strided_slice %900 {offsets = [3, 0], sizes = [16, 16], strides = [1, 1]} : vector<22x16xf32> to vector<16x16xf32>
    %934 = vector.broadcast %932 : f32 to vector<16x16xf32>
    %935 = arith.mulf %934, %933 : vector<16x16xf32>
    %936 = arith.addf %931, %935 : vector<16x16xf32>
    %c1_328 = arith.constant 1 : index
    %c26_329 = arith.constant 26 : index
    %937 = memref.load %arg2[%c1_328, %c26_329] : memref<2x49xf32, #tpu.memory_space<smem>>
    %938 = vector.extract_strided_slice %901 {offsets = [3, 0], sizes = [16, 16], strides = [1, 1]} : vector<22x16xf32> to vector<16x16xf32>
    %939 = vector.broadcast %937 : f32 to vector<16x16xf32>
    %940 = arith.mulf %939, %938 : vector<16x16xf32>
    %941 = arith.addf %936, %940 : vector<16x16xf32>
    %c0_330 = arith.constant 0 : index
    %c33_331 = arith.constant 33 : index
    %942 = memref.load %arg2[%c0_330, %c33_331] : memref<2x49xf32, #tpu.memory_space<smem>>
    %943 = vector.extract_strided_slice %900 {offsets = [4, 0], sizes = [16, 16], strides = [1, 1]} : vector<22x16xf32> to vector<16x16xf32>
    %944 = vector.broadcast %942 : f32 to vector<16x16xf32>
    %945 = arith.mulf %944, %943 : vector<16x16xf32>
    %946 = arith.addf %941, %945 : vector<16x16xf32>
    %c1_332 = arith.constant 1 : index
    %c33_333 = arith.constant 33 : index
    %947 = memref.load %arg2[%c1_332, %c33_333] : memref<2x49xf32, #tpu.memory_space<smem>>
    %948 = vector.extract_strided_slice %901 {offsets = [4, 0], sizes = [16, 16], strides = [1, 1]} : vector<22x16xf32> to vector<16x16xf32>
    %949 = vector.broadcast %947 : f32 to vector<16x16xf32>
    %950 = arith.mulf %949, %948 : vector<16x16xf32>
    %951 = arith.addf %946, %950 : vector<16x16xf32>
    %c0_334 = arith.constant 0 : index
    %c40_335 = arith.constant 40 : index
    %952 = memref.load %arg2[%c0_334, %c40_335] : memref<2x49xf32, #tpu.memory_space<smem>>
    %953 = vector.extract_strided_slice %900 {offsets = [5, 0], sizes = [16, 16], strides = [1, 1]} : vector<22x16xf32> to vector<16x16xf32>
    %954 = vector.broadcast %952 : f32 to vector<16x16xf32>
    %955 = arith.mulf %954, %953 : vector<16x16xf32>
    %956 = arith.addf %951, %955 : vector<16x16xf32>
    %c1_336 = arith.constant 1 : index
    %c40_337 = arith.constant 40 : index
    %957 = memref.load %arg2[%c1_336, %c40_337] : memref<2x49xf32, #tpu.memory_space<smem>>
    %958 = vector.extract_strided_slice %901 {offsets = [5, 0], sizes = [16, 16], strides = [1, 1]} : vector<22x16xf32> to vector<16x16xf32>
    %959 = vector.broadcast %957 : f32 to vector<16x16xf32>
    %960 = arith.mulf %959, %958 : vector<16x16xf32>
    %961 = arith.addf %956, %960 : vector<16x16xf32>
    %c0_338 = arith.constant 0 : index
    %c47_339 = arith.constant 47 : index
    %962 = memref.load %arg2[%c0_338, %c47_339] : memref<2x49xf32, #tpu.memory_space<smem>>
    %963 = vector.extract_strided_slice %900 {offsets = [6, 0], sizes = [16, 16], strides = [1, 1]} : vector<22x16xf32> to vector<16x16xf32>
    %964 = vector.broadcast %962 : f32 to vector<16x16xf32>
    %965 = arith.mulf %964, %963 : vector<16x16xf32>
    %966 = arith.addf %961, %965 : vector<16x16xf32>
    %c1_340 = arith.constant 1 : index
    %c47_341 = arith.constant 47 : index
    %967 = memref.load %arg2[%c1_340, %c47_341] : memref<2x49xf32, #tpu.memory_space<smem>>
    %968 = vector.extract_strided_slice %901 {offsets = [6, 0], sizes = [16, 16], strides = [1, 1]} : vector<22x16xf32> to vector<16x16xf32>
    %969 = vector.broadcast %967 : f32 to vector<16x16xf32>
    %970 = arith.mulf %969, %968 : vector<16x16xf32>
    %971 = arith.addf %966, %970 : vector<16x16xf32>
    %972 = vector.extract_strided_slice %536 {offsets = [0, 6], sizes = [22, 16], strides = [1, 1]} : vector<22x22xf32> to vector<22x16xf32>
    %973 = vector.extract_strided_slice %538 {offsets = [0, 6], sizes = [22, 16], strides = [1, 1]} : vector<22x22xf32> to vector<22x16xf32>
    %c0_342 = arith.constant 0 : index
    %c6_343 = arith.constant 6 : index
    %974 = memref.load %arg2[%c0_342, %c6_343] : memref<2x49xf32, #tpu.memory_space<smem>>
    %975 = vector.extract_strided_slice %972 {offsets = [0, 0], sizes = [16, 16], strides = [1, 1]} : vector<22x16xf32> to vector<16x16xf32>
    %976 = vector.broadcast %974 : f32 to vector<16x16xf32>
    %977 = arith.mulf %976, %975 : vector<16x16xf32>
    %978 = arith.addf %971, %977 : vector<16x16xf32>
    %c1_344 = arith.constant 1 : index
    %c6_345 = arith.constant 6 : index
    %979 = memref.load %arg2[%c1_344, %c6_345] : memref<2x49xf32, #tpu.memory_space<smem>>
    %980 = vector.extract_strided_slice %973 {offsets = [0, 0], sizes = [16, 16], strides = [1, 1]} : vector<22x16xf32> to vector<16x16xf32>
    %981 = vector.broadcast %979 : f32 to vector<16x16xf32>
    %982 = arith.mulf %981, %980 : vector<16x16xf32>
    %983 = arith.addf %978, %982 : vector<16x16xf32>
    %c0_346 = arith.constant 0 : index
    %c13_347 = arith.constant 13 : index
    %984 = memref.load %arg2[%c0_346, %c13_347] : memref<2x49xf32, #tpu.memory_space<smem>>
    %985 = vector.extract_strided_slice %972 {offsets = [1, 0], sizes = [16, 16], strides = [1, 1]} : vector<22x16xf32> to vector<16x16xf32>
    %986 = vector.broadcast %984 : f32 to vector<16x16xf32>
    %987 = arith.mulf %986, %985 : vector<16x16xf32>
    %988 = arith.addf %983, %987 : vector<16x16xf32>
    %c1_348 = arith.constant 1 : index
    %c13_349 = arith.constant 13 : index
    %989 = memref.load %arg2[%c1_348, %c13_349] : memref<2x49xf32, #tpu.memory_space<smem>>
    %990 = vector.extract_strided_slice %973 {offsets = [1, 0], sizes = [16, 16], strides = [1, 1]} : vector<22x16xf32> to vector<16x16xf32>
    %991 = vector.broadcast %989 : f32 to vector<16x16xf32>
    %992 = arith.mulf %991, %990 : vector<16x16xf32>
    %993 = arith.addf %988, %992 : vector<16x16xf32>
    %c0_350 = arith.constant 0 : index
    %c20_351 = arith.constant 20 : index
    %994 = memref.load %arg2[%c0_350, %c20_351] : memref<2x49xf32, #tpu.memory_space<smem>>
    %995 = vector.extract_strided_slice %972 {offsets = [2, 0], sizes = [16, 16], strides = [1, 1]} : vector<22x16xf32> to vector<16x16xf32>
    %996 = vector.broadcast %994 : f32 to vector<16x16xf32>
    %997 = arith.mulf %996, %995 : vector<16x16xf32>
    %998 = arith.addf %993, %997 : vector<16x16xf32>
    %c1_352 = arith.constant 1 : index
    %c20_353 = arith.constant 20 : index
    %999 = memref.load %arg2[%c1_352, %c20_353] : memref<2x49xf32, #tpu.memory_space<smem>>
    %1000 = vector.extract_strided_slice %973 {offsets = [2, 0], sizes = [16, 16], strides = [1, 1]} : vector<22x16xf32> to vector<16x16xf32>
    %1001 = vector.broadcast %999 : f32 to vector<16x16xf32>
    %1002 = arith.mulf %1001, %1000 : vector<16x16xf32>
    %1003 = arith.addf %998, %1002 : vector<16x16xf32>
    %c0_354 = arith.constant 0 : index
    %c27_355 = arith.constant 27 : index
    %1004 = memref.load %arg2[%c0_354, %c27_355] : memref<2x49xf32, #tpu.memory_space<smem>>
    %1005 = vector.extract_strided_slice %972 {offsets = [3, 0], sizes = [16, 16], strides = [1, 1]} : vector<22x16xf32> to vector<16x16xf32>
    %1006 = vector.broadcast %1004 : f32 to vector<16x16xf32>
    %1007 = arith.mulf %1006, %1005 : vector<16x16xf32>
    %1008 = arith.addf %1003, %1007 : vector<16x16xf32>
    %c1_356 = arith.constant 1 : index
    %c27_357 = arith.constant 27 : index
    %1009 = memref.load %arg2[%c1_356, %c27_357] : memref<2x49xf32, #tpu.memory_space<smem>>
    %1010 = vector.extract_strided_slice %973 {offsets = [3, 0], sizes = [16, 16], strides = [1, 1]} : vector<22x16xf32> to vector<16x16xf32>
    %1011 = vector.broadcast %1009 : f32 to vector<16x16xf32>
    %1012 = arith.mulf %1011, %1010 : vector<16x16xf32>
    %1013 = arith.addf %1008, %1012 : vector<16x16xf32>
    %c0_358 = arith.constant 0 : index
    %c34_359 = arith.constant 34 : index
    %1014 = memref.load %arg2[%c0_358, %c34_359] : memref<2x49xf32, #tpu.memory_space<smem>>
    %1015 = vector.extract_strided_slice %972 {offsets = [4, 0], sizes = [16, 16], strides = [1, 1]} : vector<22x16xf32> to vector<16x16xf32>
    %1016 = vector.broadcast %1014 : f32 to vector<16x16xf32>
    %1017 = arith.mulf %1016, %1015 : vector<16x16xf32>
    %1018 = arith.addf %1013, %1017 : vector<16x16xf32>
    %c1_360 = arith.constant 1 : index
    %c34_361 = arith.constant 34 : index
    %1019 = memref.load %arg2[%c1_360, %c34_361] : memref<2x49xf32, #tpu.memory_space<smem>>
    %1020 = vector.extract_strided_slice %973 {offsets = [4, 0], sizes = [16, 16], strides = [1, 1]} : vector<22x16xf32> to vector<16x16xf32>
    %1021 = vector.broadcast %1019 : f32 to vector<16x16xf32>
    %1022 = arith.mulf %1021, %1020 : vector<16x16xf32>
    %1023 = arith.addf %1018, %1022 : vector<16x16xf32>
    %c0_362 = arith.constant 0 : index
    %c41_363 = arith.constant 41 : index
    %1024 = memref.load %arg2[%c0_362, %c41_363] : memref<2x49xf32, #tpu.memory_space<smem>>
    %1025 = vector.extract_strided_slice %972 {offsets = [5, 0], sizes = [16, 16], strides = [1, 1]} : vector<22x16xf32> to vector<16x16xf32>
    %1026 = vector.broadcast %1024 : f32 to vector<16x16xf32>
    %1027 = arith.mulf %1026, %1025 : vector<16x16xf32>
    %1028 = arith.addf %1023, %1027 : vector<16x16xf32>
    %c1_364 = arith.constant 1 : index
    %c41_365 = arith.constant 41 : index
    %1029 = memref.load %arg2[%c1_364, %c41_365] : memref<2x49xf32, #tpu.memory_space<smem>>
    %1030 = vector.extract_strided_slice %973 {offsets = [5, 0], sizes = [16, 16], strides = [1, 1]} : vector<22x16xf32> to vector<16x16xf32>
    %1031 = vector.broadcast %1029 : f32 to vector<16x16xf32>
    %1032 = arith.mulf %1031, %1030 : vector<16x16xf32>
    %1033 = arith.addf %1028, %1032 : vector<16x16xf32>
    %c0_366 = arith.constant 0 : index
    %c48_367 = arith.constant 48 : index
    %1034 = memref.load %arg2[%c0_366, %c48_367] : memref<2x49xf32, #tpu.memory_space<smem>>
    %1035 = vector.extract_strided_slice %972 {offsets = [6, 0], sizes = [16, 16], strides = [1, 1]} : vector<22x16xf32> to vector<16x16xf32>
    %1036 = vector.broadcast %1034 : f32 to vector<16x16xf32>
    %1037 = arith.mulf %1036, %1035 : vector<16x16xf32>
    %1038 = arith.addf %1033, %1037 : vector<16x16xf32>
    %c1_368 = arith.constant 1 : index
    %c48_369 = arith.constant 48 : index
    %1039 = memref.load %arg2[%c1_368, %c48_369] : memref<2x49xf32, #tpu.memory_space<smem>>
    %1040 = vector.extract_strided_slice %973 {offsets = [6, 0], sizes = [16, 16], strides = [1, 1]} : vector<22x16xf32> to vector<16x16xf32>
    %1041 = vector.broadcast %1039 : f32 to vector<16x16xf32>
    %1042 = arith.mulf %1041, %1040 : vector<16x16xf32>
    %1043 = arith.addf %1038, %1042 : vector<16x16xf32>
    %cst_370 = arith.constant 0.000000e+00 : f32
    %1044 = vector.broadcast %cst_370 : f32 to vector<16x16xf32>
    %1045 = arith.subf %1044, %1043 : vector<16x16xf32>
    %1046 = math.exp %1045 : vector<16x16xf32>
    %cst_371 = arith.constant 1.000000e+00 : f32
    %1047 = vector.broadcast %cst_371 : f32 to vector<16x16xf32>
    %1048 = arith.addf %1047, %1046 : vector<16x16xf32>
    %cst_372 = arith.constant 1.000000e+00 : f32
    %1049 = vector.broadcast %cst_372 : f32 to vector<16x16xf32>
    %1050 = arith.divf %1049, %1048 : vector<16x16xf32>
    %c1_373 = arith.constant 1 : index
    %c0_374 = arith.constant 0 : index
    %c0_375 = arith.constant 0 : index
    %1051 = vector.load %arg3[%c1_373, %c0_374, %c0_375] : memref<2x16x16xf32, #tpu.memory_space<vmem>>, vector<1x16x16xf32>
    %1052 = vector.shape_cast %1051 : vector<1x16x16xf32> to vector<16x16xf32>
    %1053 = vector.shape_cast %1050 : vector<16x16xf32> to vector<1x16x16xf32>
    tpu.vector_store %arg3[%c1_373, %c0_374, %c0_375], %1053 {strides = array<i32>} : memref<2x16x16xf32, #tpu.memory_space<vmem>>, vector<1x16x16xf32>,
    return
  }
  func.func @transform_0(%arg0: i32) -> (i32, i32, i32, i32) {
    %c0_i32 = arith.constant 0 : i32
    %c0_i32_0 = arith.constant 0 : i32
    %c0_i32_1 = arith.constant 0 : i32
    %c0_i32_2 = arith.constant 0 : i32
    return %arg0, %c0_i32, %c0_i32_0, %c0_i32_1 : i32, i32, i32, i32
  }
  func.func @transform_1(%arg0: i32) -> (i32, i32) {
    %c0_i32 = arith.constant 0 : i32
    %c0_i32_0 = arith.constant 0 : i32
    %c0_i32_1 = arith.constant 0 : i32
    return %c0_i32, %c0_i32_0 : i32, i32
  }
  func.func @transform_2(%arg0: i32) -> (i32, i32, i32) {
    %c0_i32 = arith.constant 0 : i32
    %c0_i32_0 = arith.constant 0 : i32
    %c0_i32_1 = arith.constant 0 : i32
    return %arg0, %c0_i32, %c0_i32_0 : i32, i32, i32
  }
}

</mosaic_0001>

<llo_original>
// kernel: spatial_attention.1
$region0: #{spatial_attention.1}
  #allocation0 [shape = 'u32[]', space=smem, size = 0x4, offset = 0x4, fixed_abs, tag = 'smem constant byte address 0x4 - core index']
  #allocation1 [shape = 'u32[144,128]{1,0:T(1,128)}', space=vmem, size = 0x12000, scoped, tag = 'internal scratch']
  %s0 = inlined_call_operand.hbm [shape: f32[2,4,16,16], index: 0, kind: input, shape index: {}]
  %s1 = inlined_call_operand.vmem [shape: f32[2,49], index: 1, kind: input, shape index: {}]
  %s2 = inlined_call_operand.hbm [shape: f32[2,16,16], index: 2, kind: output, shape index: {}]
  %s3 = sld [smem:[#allocation0]]
  $region40: #{spatial_attention.1} parent=0
    _
  %s5 = ssub.s32 1, %s3
  %s6 = scalar_select 0, %s5, %s3
  $region1: #{spatial_attention.1} parent=0
    #allocation2 [shape = 'u8[65536]{0}', space=vmem, size = 0x10000, scoped, tag = 'input window, operand 0, single buffered']
    #allocation3 [shape = 's32[1]{0}', space=sflag, size = 0x4, scoped, tag = 'scoped memory for spatial_attention.1']
    #allocation4 [shape = 's32[1]{0}', space=sflag, size = 0x4, scoped, tag = 'scoped memory for spatial_attention.1']
    #allocation5 [shape = 's32[1]{0}', space=sflag, size = 0x4, scoped, tag = 'scoped memory for spatial_attention.1']
    #allocation6 [shape = 'u8[1024]{0}', space=smem, size = 0x400, scoped, tag = 'input window, operand 1, single buffered']
    #allocation7 [shape = 'u8[16384]{0}', space=vmem, size = 0x4000, scoped, tag = 'output window, operand 0, single buffered']
    %7 = vsyncpa [#allocation3], 0
    %8 = vsyncpa [#allocation5], 0
    %9 = vsyncpa [#allocation4], 0
    // Predicated region
    $region2: #{spatial_attention.1} parent=1 // pred_check
      _
    $region3: #{spatial_attention.1} parent=1 // pred_check_branch
      %11 = sbr.rel (0) target = $region5
    $region4: #{spatial_attention.1} parent=1 // pred_region
      %s13 = ssub.s32 2048, 2048
      %14 = vsyncadd [#allocation3], %s13
      %s15 = sshll.u32 [#allocation2], 4
      %s16 = int_to_ptr.vmem [resolvable:$true] %s15
      %21 = dma.hbm_to_vmem [thread:$0]  %s0, 2048, %s16, [#allocation3], 128, 128, 8
    $region5: #{spatial_attention.1} parent=1 // pred_fallthru
      _
    // Predicated region
    $region6: #{spatial_attention.1} parent=1 // pred_check
      _
    $region7: #{spatial_attention.1} parent=1 // pred_check_branch
      %23 = sbr.rel (0) target = $region9
    $region8: #{spatial_attention.1} parent=1 // pred_region
      %s25 = ssub.s32 32, 32
      %26 = vsyncadd [#allocation5], %s25
      %s28 = sshll.u32 %s1, 4
      %s29 = int_to_ptr.vmem [resolvable:$true] %s28
      %31 = dma.vmem_to_smem %s29, 32, [#allocation6], [#allocation5]
    $region9: #{spatial_attention.1} parent=1 // pred_fallthru
      _
    // Predicated region
    $region10: #{spatial_attention.1} parent=1 // pred_check
      _
    $region11: #{spatial_attention.1} parent=1 // pred_check_branch
      %33 = sbr.rel (0) target = $region13
    $region12: #{spatial_attention.1} parent=1 // pred_region
      %34 = dma.done [#allocation3], 2048
    $region13: #{spatial_attention.1} parent=1 // pred_fallthru
      _
    // Predicated region
    $region14: #{spatial_attention.1} parent=1 // pred_check
      _
    $region15: #{spatial_attention.1} parent=1 // pred_check_branch
      %36 = sbr.rel (0) target = $region17
    $region16: #{spatial_attention.1} parent=1 // pred_region
      %37 = dma.done [#allocation5], 32
    $region17: #{spatial_attention.1} parent=1 // pred_fallthru
      _
    %38 = sfence
    %v39 = vld [vmem:[#allocation2] sm:$0xff]
    %v40 = vld [vmem:[#allocation2 + $0x8] sm:$0xff]
    loop: start=1, step=1, limit=4
    $region18: #{spatial_attention.1} parent=1 // loop_pre_header
      _
    $region19: #{spatial_attention.1} parent=1 // loop_header
      %s42 = sphi 1, %s46
      %p43 = scmp.ge.s32.totalorder %s42, 4
      %v47 = vphi %v39, %v55
      %v48 = vphi %v40, %v56
      %v49 = vphi %v39, %v57
      %v50 = vphi %v40, %v58
    $region20: #{spatial_attention.1} parent=1 // loop_header_branch
      %45 = sbr.rel (%p43) target = $region24
    $region21: #{spatial_attention.1} parent=1 // loop_body
      %s51 = smul.u32 %s42, 16
      %s52 = scalar_lea.vmem [#allocation2], %s51
      %v53 = vld [vmem:[%s52] sm:$0xff]
      %v54 = vld [vmem:[%s52 + $0x8] sm:$0xff]
      %v55 = vadd.f32 %v47, %v53
      %v56 = vadd.f32 %v48, %v54
      %v57 = vmax.f32 %v49, %v53
      %v58 = vmax.f32 %v50, %v54
    $region22: #{spatial_attention.1} parent=1 // loop_footer
      %s46 = sadd.s32 1, %s42
    $region23: #{spatial_attention.1} parent=1 // loop_footer_branch
      %41 = sbr.rel target = $region19
    $region24: #{spatial_attention.1} parent=1 // loop_exit
      _
    %v59 = vmul.f32 %v47, 0.25
    %v60 = vmul.f32 %v48, 0.25
    %vm63 = vcmask 1042432
    %v64 = vrot.slane %v59, 5
    %v65 = vrot.slane %v60, 5
    %v66 = vsel %vm63, %v64, %v65
    %v69 = vsel %vm63, 0.0, %v64
    %v70 = vsel %vm63, %v65, 0.0
    %73 = vrot.lane.b32.xlu0 %v69, 3
    %v74 = vpop.permute.xlu0 %73
    %75 = vrot.lane.b32.xlu0 %v66, 3
    %v76 = vpop.permute.xlu0 %75
    %77 = vrot.lane.b32.xlu0 %v70, 3
    %v78 = vpop.permute.xlu0 %77
    %vm82 = vcmask 23552
    %v83 = vsel %vm82, 0.0, %v74
    %v84 = vsel %vm82, 0.0, %v76
    %v85 = vsel %vm82, 0.0, %v78
    %vm86 = vcmask 154624
    %v87 = vsel %vm86, %v83, 0.0
    %v88 = vsel %vm86, %v84, 0.0
    %v89 = vsel %vm86, %v85, 0.0
    %v92 = vrot.slane %v49, 5
    %v93 = vrot.slane %v50, 5
    %v94 = vsel %vm63, %v92, %v93
    %v97 = vsel %vm63, 0.0, %v92
    %v98 = vsel %vm63, %v93, 0.0
    %101 = vrot.lane.b32.xlu0 %v97, 3
    %v102 = vpop.permute.xlu0 %101
    %103 = vrot.lane.b32.xlu0 %v94, 3
    %v104 = vpop.permute.xlu0 %103
    %105 = vrot.lane.b32.xlu0 %v98, 3
    %v106 = vpop.permute.xlu0 %105
    %v110 = vsel %vm82, 0.0, %v102
    %v111 = vsel %vm82, 0.0, %v104
    %v112 = vsel %vm82, 0.0, %v106
    %v113 = vsel %vm86, %v110, 0.0
    %v114 = vsel %vm86, %v111, 0.0
    %v115 = vsel %vm86, %v112, 0.0
    %s116 = sld [smem:[#allocation6]]
    %v117 = vstv %s116
    %v118 = vmul.f32 %v117, %v87
    %v119 = vmul.f32 %v117, %v88
    %v120 = vadd.f32 %v118, 0.0
    %v121 = vadd.f32 %v119, 0.0
    %s122 = sld [smem:[#allocation6 + $0x80]]
    %v123 = vstv %s122
    %v124 = vmul.f32 %v123, %v113
    %v125 = vmul.f32 %v123, %v114
    %v126 = vadd.f32 %v120, %v124
    %v127 = vadd.f32 %v121, %v125
    %s128 = sld [smem:[#allocation6 + $0x7]]
    %v129 = vstv %s128
    %v130 = vmul.f32 %v129, %v87
    %v131 = vmul.f32 %v129, %v88
    %v132 = vmul.f32 %v129, %v89
    %vm136 = vcmask 1046528
    %v137 = vrot.slane %v130, 1
    %v138 = vrot.slane %v131, 1
    %v139 = vsel %vm136, %v137, %v138
    %v140 = vrot.slane %v132, 1
    %v141 = vsel %vm136, %v138, %v140
    %v144 = vadd.f32 %v126, %v139
    %v145 = vadd.f32 %v127, %v141
    %s146 = sld [smem:[#allocation6 + $0x87]]
    %v147 = vstv %s146
    %v148 = vmul.f32 %v147, %v113
    %v149 = vmul.f32 %v147, %v114
    %v150 = vmul.f32 %v147, %v115
    %v154 = vrot.slane %v148, 1
    %v155 = vrot.slane %v149, 1
    %v156 = vsel %vm136, %v154, %v155
    %v157 = vrot.slane %v150, 1
    %v158 = vsel %vm136, %v155, %v157
    %v161 = vadd.f32 %v144, %v156
    %v162 = vadd.f32 %v145, %v158
    %s163 = sld [smem:[#allocation6 + $0xe]]
    %v164 = vstv %s163
    %v165 = vmul.f32 %v164, %v87
    %v166 = vmul.f32 %v164, %v88
    %v167 = vmul.f32 %v164, %v89
    %vm171 = vcmask 1045504
    %v172 = vrot.slane %v165, 2
    %v173 = vrot.slane %v166, 2
    %v174 = vsel %vm171, %v172, %v173
    %v175 = vrot.slane %v167, 2
    %v176 = vsel %vm171, %v173, %v175
    %v179 = vadd.f32 %v161, %v174
    %v180 = vadd.f32 %v162, %v176
    %s181 = sld [smem:[#allocation6 + $0x8e]]
    %v182 = vstv %s181
    %v183 = vmul.f32 %v182, %v113
    %v184 = vmul.f32 %v182, %v114
    %v185 = vmul.f32 %v182, %v115
    %v189 = vrot.slane %v183, 2
    %v190 = vrot.slane %v184, 2
    %v191 = vsel %vm171, %v189, %v190
    %v192 = vrot.slane %v185, 2
    %v193 = vsel %vm171, %v190, %v192
    %v196 = vadd.f32 %v179, %v191
    %v197 = vadd.f32 %v180, %v193
    %s198 = sld [smem:[#allocation6 + $0x15]]
    %v199 = vstv %s198
    %v200 = vmul.f32 %v199, %v87
    %v201 = vmul.f32 %v199, %v88
    %v202 = vmul.f32 %v199, %v89
    %vm206 = vcmask 1044480
    %v207 = vrot.slane %v200, 3
    %v208 = vrot.slane %v201, 3
    %v209 = vsel %vm206, %v207, %v208
    %v210 = vrot.slane %v202, 3
    %v211 = vsel %vm206, %v208, %v210
    %v214 = vadd.f32 %v196, %v209
    %v215 = vadd.f32 %v197, %v211
    %s216 = sld [smem:[#allocation6 + $0x95]]
    %v217 = vstv %s216
    %v218 = vmul.f32 %v217, %v113
    %v219 = vmul.f32 %v217, %v114
    %v220 = vmul.f32 %v217, %v115
    %v224 = vrot.slane %v218, 3
    %v225 = vrot.slane %v219, 3
    %v226 = vsel %vm206, %v224, %v225
    %v227 = vrot.slane %v220, 3
    %v228 = vsel %vm206, %v225, %v227
    %v231 = vadd.f32 %v214, %v226
    %v232 = vadd.f32 %v215, %v228
    %s233 = sld [smem:[#allocation6 + $0x1c]]
    %v234 = vstv %s233
    %v235 = vmul.f32 %v234, %v87
    %v236 = vmul.f32 %v234, %v88
    %v237 = vmul.f32 %v234, %v89
    %vm241 = vcmask 1043456
    %v242 = vrot.slane %v235, 4
    %v243 = vrot.slane %v236, 4
    %v244 = vsel %vm241, %v242, %v243
    %v245 = vrot.slane %v237, 4
    %v246 = vsel %vm241, %v243, %v245
    %v249 = vadd.f32 %v231, %v244
    %v250 = vadd.f32 %v232, %v246
    %s251 = sld [smem:[#allocation6 + $0x9c]]
    %v252 = vstv %s251
    %v253 = vmul.f32 %v252, %v113
    %v254 = vmul.f32 %v252, %v114
    %v255 = vmul.f32 %v252, %v115
    %v259 = vrot.slane %v253, 4
    %v260 = vrot.slane %v254, 4
    %v261 = vsel %vm241, %v259, %v260
    %v262 = vrot.slane %v255, 4
    %v263 = vsel %vm241, %v260, %v262
    %v266 = vadd.f32 %v249, %v261
    %v267 = vadd.f32 %v250, %v263
    %s268 = sld [smem:[#allocation6 + $0x23]]
    %v269 = vstv %s268
    %v270 = vmul.f32 %v269, %v87
    %v271 = vmul.f32 %v269, %v88
    %v272 = vmul.f32 %v269, %v89
    %v276 = vrot.slane %v270, 5
    %v277 = vrot.slane %v271, 5
    %v278 = vsel %vm63, %v276, %v277
    %v279 = vrot.slane %v272, 5
    %v280 = vsel %vm63, %v277, %v279
    %v283 = vadd.f32 %v266, %v278
    %v284 = vadd.f32 %v267, %v280
    %s285 = sld [smem:[#allocation6 + $0xa3]]
    %v286 = vstv %s285
    %v287 = vmul.f32 %v286, %v113
    %v288 = vmul.f32 %v286, %v114
    %v289 = vmul.f32 %v286, %v115
    %v293 = vrot.slane %v287, 5
    %v294 = vrot.slane %v288, 5
    %v295 = vsel %vm63, %v293, %v294
    %v296 = vrot.slane %v289, 5
    %v297 = vsel %vm63, %v294, %v296
    %v300 = vadd.f32 %v283, %v295
    %v301 = vadd.f32 %v284, %v297
    %s302 = sld [smem:[#allocation6 + $0x2a]]
    %v303 = vstv %s302
    %v304 = vmul.f32 %v303, %v87
    %v305 = vmul.f32 %v303, %v88
    %v306 = vmul.f32 %v303, %v89
    %vm310 = vcmask 1041408
    %v311 = vrot.slane %v304, 6
    %v312 = vrot.slane %v305, 6
    %v313 = vsel %vm310, %v311, %v312
    %v314 = vrot.slane %v306, 6
    %v315 = vsel %vm310, %v312, %v314
    %v318 = vadd.f32 %v300, %v313
    %v319 = vadd.f32 %v301, %v315
    %s320 = sld [smem:[#allocation6 + $0xaa]]
    %v321 = vstv %s320
    %v322 = vmul.f32 %v321, %v113
    %v323 = vmul.f32 %v321, %v114
    %v324 = vmul.f32 %v321, %v115
    %v328 = vrot.slane %v322, 6
    %v329 = vrot.slane %v323, 6
    %v330 = vsel %vm310, %v328, %v329
    %v331 = vrot.slane %v324, 6
    %v332 = vsel %vm310, %v329, %v331
    %v335 = vadd.f32 %v318, %v330
    %v336 = vadd.f32 %v319, %v332
    %s337 = sld [smem:[#allocation6 + $0x1]]
    %v338 = vstv %s337
    %v339 = vmul.f32 %v338, %v87
    %v340 = vmul.f32 %v338, %v88
    %343 = vrot.lane.b32.xlu0 %v339, 127
    %v344 = vpop.permute.xlu0 %343
    %345 = vrot.lane.b32.xlu0 %v340, 127
    %v346 = vpop.permute.xlu0 %345
    %v349 = vadd.f32 %v335, %v344
    %v350 = vadd.f32 %v336, %v346
    %s351 = sld [smem:[#allocation6 + $0x81]]
    %v352 = vstv %s351
    %v353 = vmul.f32 %v352, %v113
    %v354 = vmul.f32 %v352, %v114
    %357 = vrot.lane.b32.xlu0 %v353, 127
    %v358 = vpop.permute.xlu0 %357
    %359 = vrot.lane.b32.xlu0 %v354, 127
    %v360 = vpop.permute.xlu0 %359
    %v363 = vadd.f32 %v349, %v358
    %v364 = vadd.f32 %v350, %v360
    %s365 = sld [smem:[#allocation6 + $0x8]]
    %v366 = vstv %s365
    %v367 = vmul.f32 %v366, %v87
    %v368 = vmul.f32 %v366, %v88
    %v369 = vmul.f32 %v366, %v89
    %v373 = vrot.slane %v367, 1
    %v374 = vrot.slane %v368, 1
    %v375 = vsel %vm136, %v373, %v374
    %v376 = vrot.slane %v369, 1
    %v377 = vsel %vm136, %v374, %v376
    %378 = vrot.lane.b32.xlu0 %v375, 127
    %v379 = vpop.permute.xlu0 %378
    %380 = vrot.lane.b32.xlu0 %v377, 127
    %v381 = vpop.permute.xlu0 %380
    %v384 = vadd.f32 %v363, %v379
    %v385 = vadd.f32 %v364, %v381
    %s386 = sld [smem:[#allocation6 + $0x88]]
    %v387 = vstv %s386
    %v388 = vmul.f32 %v387, %v113
    %v389 = vmul.f32 %v387, %v114
    %v390 = vmul.f32 %v387, %v115
    %v394 = vrot.slane %v388, 1
    %v395 = vrot.slane %v389, 1
    %v396 = vsel %vm136, %v394, %v395
    %v397 = vrot.slane %v390, 1
    %v398 = vsel %vm136, %v395, %v397
    %399 = vrot.lane.b32.xlu0 %v396, 127
    %v400 = vpop.permute.xlu0 %399
    %401 = vrot.lane.b32.xlu0 %v398, 127
    %v402 = vpop.permute.xlu0 %401
    %v405 = vadd.f32 %v384, %v400
    %v406 = vadd.f32 %v385, %v402
    %s407 = sld [smem:[#allocation6 + $0xf]]
    %v408 = vstv %s407
    %v409 = vmul.f32 %v408, %v87
    %v410 = vmul.f32 %v408, %v88
    %v411 = vmul.f32 %v408, %v89
    %v415 = vrot.slane %v409, 2
    %v416 = vrot.slane %v410, 2
    %v417 = vsel %vm171, %v415, %v416
    %v418 = vrot.slane %v411, 2
    %v419 = vsel %vm171, %v416, %v418
    %420 = vrot.lane.b32.xlu0 %v417, 127
    %v421 = vpop.permute.xlu0 %420
    %422 = vrot.lane.b32.xlu0 %v419, 127
    %v423 = vpop.permute.xlu0 %422
    %v426 = vadd.f32 %v405, %v421
    %v427 = vadd.f32 %v406, %v423
    %s428 = sld [smem:[#allocation6 + $0x8f]]
    %v429 = vstv %s428
    %v430 = vmul.f32 %v429, %v113
    %v431 = vmul.f32 %v429, %v114
    %v432 = vmul.f32 %v429, %v115
    %v436 = vrot.slane %v430, 2
    %v437 = vrot.slane %v431, 2
    %v438 = vsel %vm171, %v436, %v437
    %v439 = vrot.slane %v432, 2
    %v440 = vsel %vm171, %v437, %v439
    %441 = vrot.lane.b32.xlu0 %v438, 127
    %v442 = vpop.permute.xlu0 %441
    %443 = vrot.lane.b32.xlu0 %v440, 127
    %v444 = vpop.permute.xlu0 %443
    %v447 = vadd.f32 %v426, %v442
    %v448 = vadd.f32 %v427, %v444
    %s449 = sld [smem:[#allocation6 + $0x16]]
    %v450 = vstv %s449
    %v451 = vmul.f32 %v450, %v87
    %v452 = vmul.f32 %v450, %v88
    %v453 = vmul.f32 %v450, %v89
    %v457 = vrot.slane %v451, 3
    %v458 = vrot.slane %v452, 3
    %v459 = vsel %vm206, %v457, %v458
    %v460 = vrot.slane %v453, 3
    %v461 = vsel %vm206, %v458, %v460
    %462 = vrot.lane.b32.xlu0 %v459, 127
    %v463 = vpop.permute.xlu0 %462
    %464 = vrot.lane.b32.xlu0 %v461, 127
    %v465 = vpop.permute.xlu0 %464
    %v468 = vadd.f32 %v447, %v463
    %v469 = vadd.f32 %v448, %v465
    %s470 = sld [smem:[#allocation6 + $0x96]]
    %v471 = vstv %s470
    %v472 = vmul.f32 %v471, %v113
    %v473 = vmul.f32 %v471, %v114
    %v474 = vmul.f32 %v471, %v115
    %v478 = vrot.slane %v472, 3
    %v479 = vrot.slane %v473, 3
    %v480 = vsel %vm206, %v478, %v479
    %v481 = vrot.slane %v474, 3
    %v482 = vsel %vm206, %v479, %v481
    %483 = vrot.lane.b32.xlu0 %v480, 127
    %v484 = vpop.permute.xlu0 %483
    %485 = vrot.lane.b32.xlu0 %v482, 127
    %v486 = vpop.permute.xlu0 %485
    %v489 = vadd.f32 %v468, %v484
    %v490 = vadd.f32 %v469, %v486
    %s491 = sld [smem:[#allocation6 + $0x1d]]
    %v492 = vstv %s491
    %v493 = vmul.f32 %v492, %v87
    %v494 = vmul.f32 %v492, %v88
    %v495 = vmul.f32 %v492, %v89
    %v499 = vrot.slane %v493, 4
    %v500 = vrot.slane %v494, 4
    %v501 = vsel %vm241, %v499, %v500
    %v502 = vrot.slane %v495, 4
    %v503 = vsel %vm241, %v500, %v502
    %504 = vrot.lane.b32.xlu0 %v501, 127
    %v505 = vpop.permute.xlu0 %504
    %506 = vrot.lane.b32.xlu0 %v503, 127
    %v507 = vpop.permute.xlu0 %506
    %v510 = vadd.f32 %v489, %v505
    %v511 = vadd.f32 %v490, %v507
    %s512 = sld [smem:[#allocation6 + $0x9d]]
    %v513 = vstv %s512
    %v514 = vmul.f32 %v513, %v113
    %v515 = vmul.f32 %v513, %v114
    %v516 = vmul.f32 %v513, %v115
    %v520 = vrot.slane %v514, 4
    %v521 = vrot.slane %v515, 4
    %v522 = vsel %vm241, %v520, %v521
    %v523 = vrot.slane %v516, 4
    %v524 = vsel %vm241, %v521, %v523
    %525 = vrot.lane.b32.xlu0 %v522, 127
    %v526 = vpop.permute.xlu0 %525
    %527 = vrot.lane.b32.xlu0 %v524, 127
    %v528 = vpop.permute.xlu0 %527
    %v531 = vadd.f32 %v510, %v526
    %v532 = vadd.f32 %v511, %v528
    %s533 = sld [smem:[#allocation6 + $0x24]]
    %v534 = vstv %s533
    %v535 = vmul.f32 %v534, %v87
    %v536 = vmul.f32 %v534, %v88
    %v537 = vmul.f32 %v534, %v89
    %v541 = vrot.slane %v535, 5
    %v542 = vrot.slane %v536, 5
    %v543 = vsel %vm63, %v541, %v542
    %v544 = vrot.slane %v537, 5
    %v545 = vsel %vm63, %v542, %v544
    %546 = vrot.lane.b32.xlu0 %v543, 127
    %v547 = vpop.permute.xlu0 %546
    %548 = vrot.lane.b32.xlu0 %v545, 127
    %v549 = vpop.permute.xlu0 %548
    %v552 = vadd.f32 %v531, %v547
    %v553 = vadd.f32 %v532, %v549
    %s554 = sld [smem:[#allocation6 + $0xa4]]
    %v555 = vstv %s554
    %v556 = vmul.f32 %v555, %v113
    %v557 = vmul.f32 %v555, %v114
    %v558 = vmul.f32 %v555, %v115
    %v562 = vrot.slane %v556, 5
    %v563 = vrot.slane %v557, 5
    %v564 = vsel %vm63, %v562, %v563
    %v565 = vrot.slane %v558, 5
    %v566 = vsel %vm63, %v563, %v565
    %567 = vrot.lane.b32.xlu0 %v564, 127
    %v568 = vpop.permute.xlu0 %567
    %569 = vrot.lane.b32.xlu0 %v566, 127
    %v570 = vpop.permute.xlu0 %569
    %v573 = vadd.f32 %v552, %v568
    %v574 = vadd.f32 %v553, %v570
    %s575 = sld [smem:[#allocation6 + $0x2b]]
    %v576 = vstv %s575
    %v577 = vmul.f32 %v576, %v87
    %v578 = vmul.f32 %v576, %v88
    %v579 = vmul.f32 %v576, %v89
    %v583 = vrot.slane %v577, 6
    %v584 = vrot.slane %v578, 6
    %v585 = vsel %vm310, %v583, %v584
    %v586 = vrot.slane %v579, 6
    %v587 = vsel %vm310, %v584, %v586
    %588 = vrot.lane.b32.xlu0 %v585, 127
    %v589 = vpop.permute.xlu0 %588
    %590 = vrot.lane.b32.xlu0 %v587, 127
    %v591 = vpop.permute.xlu0 %590
    %v594 = vadd.f32 %v573, %v589
    %v595 = vadd.f32 %v574, %v591
    %s596 = sld [smem:[#allocation6 + $0xab]]
    %v597 = vstv %s596
    %v598 = vmul.f32 %v597, %v113
    %v599 = vmul.f32 %v597, %v114
    %v600 = vmul.f32 %v597, %v115
    %v604 = vrot.slane %v598, 6
    %v605 = vrot.slane %v599, 6
    %v606 = vsel %vm310, %v604, %v605
    %v607 = vrot.slane %v600, 6
    %v608 = vsel %vm310, %v605, %v607
    %609 = vrot.lane.b32.xlu0 %v606, 127
    %v610 = vpop.permute.xlu0 %609
    %611 = vrot.lane.b32.xlu0 %v608, 127
    %v612 = vpop.permute.xlu0 %611
    %v615 = vadd.f32 %v594, %v610
    %v616 = vadd.f32 %v595, %v612
    %s617 = sld [smem:[#allocation6 + $0x2]]
    %v618 = vstv %s617
    %v619 = vmul.f32 %v618, %v87
    %v620 = vmul.f32 %v618, %v88
    %623 = vrot.lane.b32.xlu0 %v619, 126
    %v624 = vpop.permute.xlu0 %623
    %625 = vrot.lane.b32.xlu0 %v620, 126
    %v626 = vpop.permute.xlu0 %625
    %v629 = vadd.f32 %v615, %v624
    %v630 = vadd.f32 %v616, %v626
    %s631 = sld [smem:[#allocation6 + $0x82]]
    %v632 = vstv %s631
    %v633 = vmul.f32 %v632, %v113
    %v634 = vmul.f32 %v632, %v114
    %637 = vrot.lane.b32.xlu0 %v633, 126
    %v638 = vpop.permute.xlu0 %637
    %639 = vrot.lane.b32.xlu0 %v634, 126
    %v640 = vpop.permute.xlu0 %639
    %v643 = vadd.f32 %v629, %v638
    %v644 = vadd.f32 %v630, %v640
    %s645 = sld [smem:[#allocation6 + $0x9]]
    %v646 = vstv %s645
    %v647 = vmul.f32 %v646, %v87
    %v648 = vmul.f32 %v646, %v88
    %v649 = vmul.f32 %v646, %v89
    %v653 = vrot.slane %v647, 1
    %v654 = vrot.slane %v648, 1
    %v655 = vsel %vm136, %v653, %v654
    %v656 = vrot.slane %v649, 1
    %v657 = vsel %vm136, %v654, %v656
    %658 = vrot.lane.b32.xlu0 %v655, 126
    %v659 = vpop.permute.xlu0 %658
    %660 = vrot.lane.b32.xlu0 %v657, 126
    %v661 = vpop.permute.xlu0 %660
    %v664 = vadd.f32 %v643, %v659
    %v665 = vadd.f32 %v644, %v661
    %s666 = sld [smem:[#allocation6 + $0x89]]
    %v667 = vstv %s666
    %v668 = vmul.f32 %v667, %v113
    %v669 = vmul.f32 %v667, %v114
    %v670 = vmul.f32 %v667, %v115
    %v674 = vrot.slane %v668, 1
    %v675 = vrot.slane %v669, 1
    %v676 = vsel %vm136, %v674, %v675
    %v677 = vrot.slane %v670, 1
    %v678 = vsel %vm136, %v675, %v677
    %679 = vrot.lane.b32.xlu0 %v676, 126
    %v680 = vpop.permute.xlu0 %679
    %681 = vrot.lane.b32.xlu0 %v678, 126
    %v682 = vpop.permute.xlu0 %681
    %v685 = vadd.f32 %v664, %v680
    %v686 = vadd.f32 %v665, %v682
    %s687 = sld [smem:[#allocation6 + $0x10]]
    %v688 = vstv %s687
    %v689 = vmul.f32 %v688, %v87
    %v690 = vmul.f32 %v688, %v88
    %v691 = vmul.f32 %v688, %v89
    %v695 = vrot.slane %v689, 2
    %v696 = vrot.slane %v690, 2
    %v697 = vsel %vm171, %v695, %v696
    %v698 = vrot.slane %v691, 2
    %v699 = vsel %vm171, %v696, %v698
    %700 = vrot.lane.b32.xlu0 %v697, 126
    %v701 = vpop.permute.xlu0 %700
    %702 = vrot.lane.b32.xlu0 %v699, 126
    %v703 = vpop.permute.xlu0 %702
    %v706 = vadd.f32 %v685, %v701
    %v707 = vadd.f32 %v686, %v703
    %s708 = sld [smem:[#allocation6 + $0x90]]
    %v709 = vstv %s708
    %v710 = vmul.f32 %v709, %v113
    %v711 = vmul.f32 %v709, %v114
    %v712 = vmul.f32 %v709, %v115
    %v716 = vrot.slane %v710, 2
    %v717 = vrot.slane %v711, 2
    %v718 = vsel %vm171, %v716, %v717
    %v719 = vrot.slane %v712, 2
    %v720 = vsel %vm171, %v717, %v719
    %721 = vrot.lane.b32.xlu0 %v718, 126
    %v722 = vpop.permute.xlu0 %721
    %723 = vrot.lane.b32.xlu0 %v720, 126
    %v724 = vpop.permute.xlu0 %723
    %v727 = vadd.f32 %v706, %v722
    %v728 = vadd.f32 %v707, %v724
    %s729 = sld [smem:[#allocation6 + $0x17]]
    %v730 = vstv %s729
    %v731 = vmul.f32 %v730, %v87
    %v732 = vmul.f32 %v730, %v88
    %v733 = vmul.f32 %v730, %v89
    %v737 = vrot.slane %v731, 3
    %v738 = vrot.slane %v732, 3
    %v739 = vsel %vm206, %v737, %v738
    %v740 = vrot.slane %v733, 3
    %v741 = vsel %vm206, %v738, %v740
    %742 = vrot.lane.b32.xlu0 %v739, 126
    %v743 = vpop.permute.xlu0 %742
    %744 = vrot.lane.b32.xlu0 %v741, 126
    %v745 = vpop.permute.xlu0 %744
    %v748 = vadd.f32 %v727, %v743
    %v749 = vadd.f32 %v728, %v745
    %s750 = sld [smem:[#allocation6 + $0x97]]
    %v751 = vstv %s750
    %v752 = vmul.f32 %v751, %v113
    %v753 = vmul.f32 %v751, %v114
    %v754 = vmul.f32 %v751, %v115
    %v758 = vrot.slane %v752, 3
    %v759 = vrot.slane %v753, 3
    %v760 = vsel %vm206, %v758, %v759
    %v761 = vrot.slane %v754, 3
    %v762 = vsel %vm206, %v759, %v761
    %763 = vrot.lane.b32.xlu0 %v760, 126
    %v764 = vpop.permute.xlu0 %763
    %765 = vrot.lane.b32.xlu0 %v762, 126
    %v766 = vpop.permute.xlu0 %765
    %v769 = vadd.f32 %v748, %v764
    %v770 = vadd.f32 %v749, %v766
    %s771 = sld [smem:[#allocation6 + $0x1e]]
    %v772 = vstv %s771
    %v773 = vmul.f32 %v772, %v87
    %v774 = vmul.f32 %v772, %v88
    %v775 = vmul.f32 %v772, %v89
    %v779 = vrot.slane %v773, 4
    %v780 = vrot.slane %v774, 4
    %v781 = vsel %vm241, %v779, %v780
    %v782 = vrot.slane %v775, 4
    %v783 = vsel %vm241, %v780, %v782
    %784 = vrot.lane.b32.xlu0 %v781, 126
    %v785 = vpop.permute.xlu0 %784
    %786 = vrot.lane.b32.xlu0 %v783, 126
    %v787 = vpop.permute.xlu0 %786
    %v790 = vadd.f32 %v769, %v785
    %v791 = vadd.f32 %v770, %v787
    %s792 = sld [smem:[#allocation6 + $0x9e]]
    %v793 = vstv %s792
    %v794 = vmul.f32 %v793, %v113
    %v795 = vmul.f32 %v793, %v114
    %v796 = vmul.f32 %v793, %v115
    %v800 = vrot.slane %v794, 4
    %v801 = vrot.slane %v795, 4
    %v802 = vsel %vm241, %v800, %v801
    %v803 = vrot.slane %v796, 4
    %v804 = vsel %vm241, %v801, %v803
    %805 = vrot.lane.b32.xlu0 %v802, 126
    %v806 = vpop.permute.xlu0 %805
    %807 = vrot.lane.b32.xlu0 %v804, 126
    %v808 = vpop.permute.xlu0 %807
    %v811 = vadd.f32 %v790, %v806
    %v812 = vadd.f32 %v791, %v808
    %s813 = sld [smem:[#allocation6 + $0x25]]
    %v814 = vstv %s813
    %v815 = vmul.f32 %v814, %v87
    %v816 = vmul.f32 %v814, %v88
    %v817 = vmul.f32 %v814, %v89
    %v821 = vrot.slane %v815, 5
    %v822 = vrot.slane %v816, 5
    %v823 = vsel %vm63, %v821, %v822
    %v824 = vrot.slane %v817, 5
    %v825 = vsel %vm63, %v822, %v824
    %826 = vrot.lane.b32.xlu0 %v823, 126
    %v827 = vpop.permute.xlu0 %826
    %828 = vrot.lane.b32.xlu0 %v825, 126
    %v829 = vpop.permute.xlu0 %828
    %v832 = vadd.f32 %v811, %v827
    %v833 = vadd.f32 %v812, %v829
    %s834 = sld [smem:[#allocation6 + $0xa5]]
    %v835 = vstv %s834
    %v836 = vmul.f32 %v835, %v113
    %v837 = vmul.f32 %v835, %v114
    %v838 = vmul.f32 %v835, %v115
    %v842 = vrot.slane %v836, 5
    %v843 = vrot.slane %v837, 5
    %v844 = vsel %vm63, %v842, %v843
    %v845 = vrot.slane %v838, 5
    %v846 = vsel %vm63, %v843, %v845
    %847 = vrot.lane.b32.xlu0 %v844, 126
    %v848 = vpop.permute.xlu0 %847
    %849 = vrot.lane.b32.xlu0 %v846, 126
    %v850 = vpop.permute.xlu0 %849
    %v853 = vadd.f32 %v832, %v848
    %v854 = vadd.f32 %v833, %v850
    %s855 = sld [smem:[#allocation6 + $0x2c]]
    %v856 = vstv %s855
    %v857 = vmul.f32 %v856, %v87
    %v858 = vmul.f32 %v856, %v88
    %v859 = vmul.f32 %v856, %v89
    %v863 = vrot.slane %v857, 6
    %v864 = vrot.slane %v858, 6
    %v865 = vsel %vm310, %v863, %v864
    %v866 = vrot.slane %v859, 6
    %v867 = vsel %vm310, %v864, %v866
    %868 = vrot.lane.b32.xlu0 %v865, 126
    %v869 = vpop.permute.xlu0 %868
    %870 = vrot.lane.b32.xlu0 %v867, 126
    %v871 = vpop.permute.xlu0 %870
    %v874 = vadd.f32 %v853, %v869
    %v875 = vadd.f32 %v854, %v871
    %s876 = sld [smem:[#allocation6 + $0xac]]
    %v877 = vstv %s876
    %v878 = vmul.f32 %v877, %v113
    %v879 = vmul.f32 %v877, %v114
    %v880 = vmul.f32 %v877, %v115
    %v884 = vrot.slane %v878, 6
    %v885 = vrot.slane %v879, 6
    %v886 = vsel %vm310, %v884, %v885
    %v887 = vrot.slane %v880, 6
    %v888 = vsel %vm310, %v885, %v887
    %889 = vrot.lane.b32.xlu0 %v886, 126
    %v890 = vpop.permute.xlu0 %889
    %891 = vrot.lane.b32.xlu0 %v888, 126
    %v892 = vpop.permute.xlu0 %891
    %v895 = vadd.f32 %v874, %v890
    %v896 = vadd.f32 %v875, %v892
    %s897 = sld [smem:[#allocation6 + $0x3]]
    %v898 = vstv %s897
    %v899 = vmul.f32 %v898, %v87
    %v900 = vmul.f32 %v898, %v88
    %903 = vrot.lane.b32.xlu0 %v899, 125
    %v904 = vpop.permute.xlu0 %903
    %905 = vrot.lane.b32.xlu0 %v900, 125
    %v906 = vpop.permute.xlu0 %905
    %v909 = vadd.f32 %v895, %v904
    %v910 = vadd.f32 %v896, %v906
    %s911 = sld [smem:[#allocation6 + $0x83]]
    %v912 = vstv %s911
    %v913 = vmul.f32 %v912, %v113
    %v914 = vmul.f32 %v912, %v114
    %917 = vrot.lane.b32.xlu0 %v913, 125
    %v918 = vpop.permute.xlu0 %917
    %919 = vrot.lane.b32.xlu0 %v914, 125
    %v920 = vpop.permute.xlu0 %919
    %v923 = vadd.f32 %v909, %v918
    %v924 = vadd.f32 %v910, %v920
    %s925 = sld [smem:[#allocation6 + $0xa]]
    %v926 = vstv %s925
    %v927 = vmul.f32 %v926, %v87
    %v928 = vmul.f32 %v926, %v88
    %v929 = vmul.f32 %v926, %v89
    %v933 = vrot.slane %v927, 1
    %v934 = vrot.slane %v928, 1
    %v935 = vsel %vm136, %v933, %v934
    %v936 = vrot.slane %v929, 1
    %v937 = vsel %vm136, %v934, %v936
    %938 = vrot.lane.b32.xlu0 %v935, 125
    %v939 = vpop.permute.xlu0 %938
    %940 = vrot.lane.b32.xlu0 %v937, 125
    %v941 = vpop.permute.xlu0 %940
    %v944 = vadd.f32 %v923, %v939
    %v945 = vadd.f32 %v924, %v941
    %s946 = sld [smem:[#allocation6 + $0x8a]]
    %v947 = vstv %s946
    %v948 = vmul.f32 %v947, %v113
    %v949 = vmul.f32 %v947, %v114
    %v950 = vmul.f32 %v947, %v115
    %v954 = vrot.slane %v948, 1
    %v955 = vrot.slane %v949, 1
    %v956 = vsel %vm136, %v954, %v955
    %v957 = vrot.slane %v950, 1
    %v958 = vsel %vm136, %v955, %v957
    %959 = vrot.lane.b32.xlu0 %v956, 125
    %v960 = vpop.permute.xlu0 %959
    %961 = vrot.lane.b32.xlu0 %v958, 125
    %v962 = vpop.permute.xlu0 %961
    %v965 = vadd.f32 %v944, %v960
    %v966 = vadd.f32 %v945, %v962
    %s967 = sld [smem:[#allocation6 + $0x11]]
    %v968 = vstv %s967
    %v969 = vmul.f32 %v968, %v87
    %v970 = vmul.f32 %v968, %v88
    %v971 = vmul.f32 %v968, %v89
    %v975 = vrot.slane %v969, 2
    %v976 = vrot.slane %v970, 2
    %v977 = vsel %vm171, %v975, %v976
    %v978 = vrot.slane %v971, 2
    %v979 = vsel %vm171, %v976, %v978
    %980 = vrot.lane.b32.xlu0 %v977, 125
    %v981 = vpop.permute.xlu0 %980
    %982 = vrot.lane.b32.xlu0 %v979, 125
    %v983 = vpop.permute.xlu0 %982
    %v986 = vadd.f32 %v965, %v981
    %v987 = vadd.f32 %v966, %v983
    %s988 = sld [smem:[#allocation6 + $0x91]]
    %v989 = vstv %s988
    %v990 = vmul.f32 %v989, %v113
    %v991 = vmul.f32 %v989, %v114
    %v992 = vmul.f32 %v989, %v115
    %v996 = vrot.slane %v990, 2
    %v997 = vrot.slane %v991, 2
    %v998 = vsel %vm171, %v996, %v997
    %v999 = vrot.slane %v992, 2
    %v1000 = vsel %vm171, %v997, %v999
    %1001 = vrot.lane.b32.xlu0 %v998, 125
    %v1002 = vpop.permute.xlu0 %1001
    %1003 = vrot.lane.b32.xlu0 %v1000, 125
    %v1004 = vpop.permute.xlu0 %1003
    %v1007 = vadd.f32 %v986, %v1002
    %v1008 = vadd.f32 %v987, %v1004
    %s1009 = sld [smem:[#allocation6 + $0x18]]
    %v1010 = vstv %s1009
    %v1011 = vmul.f32 %v1010, %v87
    %v1012 = vmul.f32 %v1010, %v88
    %v1013 = vmul.f32 %v1010, %v89
    %v1017 = vrot.slane %v1011, 3
    %v1018 = vrot.slane %v1012, 3
    %v1019 = vsel %vm206, %v1017, %v1018
    %v1020 = vrot.slane %v1013, 3
    %v1021 = vsel %vm206, %v1018, %v1020
    %1022 = vrot.lane.b32.xlu0 %v1019, 125
    %v1023 = vpop.permute.xlu0 %1022
    %1024 = vrot.lane.b32.xlu0 %v1021, 125
    %v1025 = vpop.permute.xlu0 %1024
    %v1028 = vadd.f32 %v1007, %v1023
    %v1029 = vadd.f32 %v1008, %v1025
    %s1030 = sld [smem:[#allocation6 + $0x98]]
    %v1031 = vstv %s1030
    %v1032 = vmul.f32 %v1031, %v113
    %v1033 = vmul.f32 %v1031, %v114
    %v1034 = vmul.f32 %v1031, %v115
    %v1038 = vrot.slane %v1032, 3
    %v1039 = vrot.slane %v1033, 3
    %v1040 = vsel %vm206, %v1038, %v1039
    %v1041 = vrot.slane %v1034, 3
    %v1042 = vsel %vm206, %v1039, %v1041
    %1043 = vrot.lane.b32.xlu0 %v1040, 125
    %v1044 = vpop.permute.xlu0 %1043
    %1045 = vrot.lane.b32.xlu0 %v1042, 125
    %v1046 = vpop.permute.xlu0 %1045
    %v1049 = vadd.f32 %v1028, %v1044
    %v1050 = vadd.f32 %v1029, %v1046
    %s1051 = sld [smem:[#allocation6 + $0x1f]]
    %v1052 = vstv %s1051
    %v1053 = vmul.f32 %v1052, %v87
    %v1054 = vmul.f32 %v1052, %v88
    %v1055 = vmul.f32 %v1052, %v89
    %v1059 = vrot.slane %v1053, 4
    %v1060 = vrot.slane %v1054, 4
    %v1061 = vsel %vm241, %v1059, %v1060
    %v1062 = vrot.slane %v1055, 4
    %v1063 = vsel %vm241, %v1060, %v1062
    %1064 = vrot.lane.b32.xlu0 %v1061, 125
    %v1065 = vpop.permute.xlu0 %1064
    %1066 = vrot.lane.b32.xlu0 %v1063, 125
    %v1067 = vpop.permute.xlu0 %1066
    %v1070 = vadd.f32 %v1049, %v1065
    %v1071 = vadd.f32 %v1050, %v1067
    %s1072 = sld [smem:[#allocation6 + $0x9f]]
    %v1073 = vstv %s1072
    %v1074 = vmul.f32 %v1073, %v113
    %v1075 = vmul.f32 %v1073, %v114
    %v1076 = vmul.f32 %v1073, %v115
    %v1080 = vrot.slane %v1074, 4
    %v1081 = vrot.slane %v1075, 4
    %v1082 = vsel %vm241, %v1080, %v1081
    %v1083 = vrot.slane %v1076, 4
    %v1084 = vsel %vm241, %v1081, %v1083
    %1085 = vrot.lane.b32.xlu0 %v1082, 125
    %v1086 = vpop.permute.xlu0 %1085
    %1087 = vrot.lane.b32.xlu0 %v1084, 125
    %v1088 = vpop.permute.xlu0 %1087
    %v1091 = vadd.f32 %v1070, %v1086
    %v1092 = vadd.f32 %v1071, %v1088
    %s1093 = sld [smem:[#allocation6 + $0x26]]
    %v1094 = vstv %s1093
    %v1095 = vmul.f32 %v1094, %v87
    %v1096 = vmul.f32 %v1094, %v88
    %v1097 = vmul.f32 %v1094, %v89
    %v1101 = vrot.slane %v1095, 5
    %v1102 = vrot.slane %v1096, 5
    %v1103 = vsel %vm63, %v1101, %v1102
    %v1104 = vrot.slane %v1097, 5
    %v1105 = vsel %vm63, %v1102, %v1104
    %1106 = vrot.lane.b32.xlu0 %v1103, 125
    %v1107 = vpop.permute.xlu0 %1106
    %1108 = vrot.lane.b32.xlu0 %v1105, 125
    %v1109 = vpop.permute.xlu0 %1108
    %v1112 = vadd.f32 %v1091, %v1107
    %v1113 = vadd.f32 %v1092, %v1109
    %s1114 = sld [smem:[#allocation6 + $0xa6]]
    %v1115 = vstv %s1114
    %v1116 = vmul.f32 %v1115, %v113
    %v1117 = vmul.f32 %v1115, %v114
    %v1118 = vmul.f32 %v1115, %v115
    %v1122 = vrot.slane %v1116, 5
    %v1123 = vrot.slane %v1117, 5
    %v1124 = vsel %vm63, %v1122, %v1123
    %v1125 = vrot.slane %v1118, 5
    %v1126 = vsel %vm63, %v1123, %v1125
    %1127 = vrot.lane.b32.xlu0 %v1124, 125
    %v1128 = vpop.permute.xlu0 %1127
    %1129 = vrot.lane.b32.xlu0 %v1126, 125
    %v1130 = vpop.permute.xlu0 %1129
    %v1133 = vadd.f32 %v1112, %v1128
    %v1134 = vadd.f32 %v1113, %v1130
    %s1135 = sld [smem:[#allocation6 + $0x2d]]
    %v1136 = vstv %s1135
    %v1137 = vmul.f32 %v1136, %v87
    %v1138 = vmul.f32 %v1136, %v88
    %v1139 = vmul.f32 %v1136, %v89
    %v1143 = vrot.slane %v1137, 6
    %v1144 = vrot.slane %v1138, 6
    %v1145 = vsel %vm310, %v1143, %v1144
    %v1146 = vrot.slane %v1139, 6
    %v1147 = vsel %vm310, %v1144, %v1146
    %1148 = vrot.lane.b32.xlu0 %v1145, 125
    %v1149 = vpop.permute.xlu0 %1148
    %1150 = vrot.lane.b32.xlu0 %v1147, 125
    %v1151 = vpop.permute.xlu0 %1150
    %v1154 = vadd.f32 %v1133, %v1149
    %v1155 = vadd.f32 %v1134, %v1151
    %s1156 = sld [smem:[#allocation6 + $0xad]]
    %v1157 = vstv %s1156
    %v1158 = vmul.f32 %v1157, %v113
    %v1159 = vmul.f32 %v1157, %v114
    %v1160 = vmul.f32 %v1157, %v115
    %v1164 = vrot.slane %v1158, 6
    %v1165 = vrot.slane %v1159, 6
    %v1166 = vsel %vm310, %v1164, %v1165
    %v1167 = vrot.slane %v1160, 6
    %v1168 = vsel %vm310, %v1165, %v1167
    %1169 = vrot.lane.b32.xlu0 %v1166, 125
    %v1170 = vpop.permute.xlu0 %1169
    %1171 = vrot.lane.b32.xlu0 %v1168, 125
    %v1172 = vpop.permute.xlu0 %1171
    %v1175 = vadd.f32 %v1154, %v1170
    %v1176 = vadd.f32 %v1155, %v1172
    %s1177 = sld [smem:[#allocation6 + $0x4]]
    %v1178 = vstv %s1177
    %v1179 = vmul.f32 %v1178, %v87
    %v1180 = vmul.f32 %v1178, %v88
    %1183 = vrot.lane.b32.xlu0 %v1179, 124
    %v1184 = vpop.permute.xlu0 %1183
    %1185 = vrot.lane.b32.xlu0 %v1180, 124
    %v1186 = vpop.permute.xlu0 %1185
    %v1189 = vadd.f32 %v1175, %v1184
    %v1190 = vadd.f32 %v1176, %v1186
    %s1191 = sld [smem:[#allocation6 + $0x84]]
    %v1192 = vstv %s1191
    %v1193 = vmul.f32 %v1192, %v113
    %v1194 = vmul.f32 %v1192, %v114
    %1197 = vrot.lane.b32.xlu0 %v1193, 124
    %v1198 = vpop.permute.xlu0 %1197
    %1199 = vrot.lane.b32.xlu0 %v1194, 124
    %v1200 = vpop.permute.xlu0 %1199
    %v1203 = vadd.f32 %v1189, %v1198
    %v1204 = vadd.f32 %v1190, %v1200
    %s1205 = sld [smem:[#allocation6 + $0xb]]
    %v1206 = vstv %s1205
    %v1207 = vmul.f32 %v1206, %v87
    %v1208 = vmul.f32 %v1206, %v88
    %v1209 = vmul.f32 %v1206, %v89
    %v1213 = vrot.slane %v1207, 1
    %v1214 = vrot.slane %v1208, 1
    %v1215 = vsel %vm136, %v1213, %v1214
    %v1216 = vrot.slane %v1209, 1
    %v1217 = vsel %vm136, %v1214, %v1216
    %1218 = vrot.lane.b32.xlu0 %v1215, 124
    %v1219 = vpop.permute.xlu0 %1218
    %1220 = vrot.lane.b32.xlu0 %v1217, 124
    %v1221 = vpop.permute.xlu0 %1220
    %v1224 = vadd.f32 %v1203, %v1219
    %v1225 = vadd.f32 %v1204, %v1221
    %s1226 = sld [smem:[#allocation6 + $0x8b]]
    %v1227 = vstv %s1226
    %v1228 = vmul.f32 %v1227, %v113
    %v1229 = vmul.f32 %v1227, %v114
    %v1230 = vmul.f32 %v1227, %v115
    %v1234 = vrot.slane %v1228, 1
    %v1235 = vrot.slane %v1229, 1
    %v1236 = vsel %vm136, %v1234, %v1235
    %v1237 = vrot.slane %v1230, 1
    %v1238 = vsel %vm136, %v1235, %v1237
    %1239 = vrot.lane.b32.xlu0 %v1236, 124
    %v1240 = vpop.permute.xlu0 %1239
    %1241 = vrot.lane.b32.xlu0 %v1238, 124
    %v1242 = vpop.permute.xlu0 %1241
    %v1245 = vadd.f32 %v1224, %v1240
    %v1246 = vadd.f32 %v1225, %v1242
    %s1247 = sld [smem:[#allocation6 + $0x12]]
    %v1248 = vstv %s1247
    %v1249 = vmul.f32 %v1248, %v87
    %v1250 = vmul.f32 %v1248, %v88
    %v1251 = vmul.f32 %v1248, %v89
    %v1255 = vrot.slane %v1249, 2
    %v1256 = vrot.slane %v1250, 2
    %v1257 = vsel %vm171, %v1255, %v1256
    %v1258 = vrot.slane %v1251, 2
    %v1259 = vsel %vm171, %v1256, %v1258
    %1260 = vrot.lane.b32.xlu0 %v1257, 124
    %v1261 = vpop.permute.xlu0 %1260
    %1262 = vrot.lane.b32.xlu0 %v1259, 124
    %v1263 = vpop.permute.xlu0 %1262
    %v1266 = vadd.f32 %v1245, %v1261
    %v1267 = vadd.f32 %v1246, %v1263
    %s1268 = sld [smem:[#allocation6 + $0x92]]
    %v1269 = vstv %s1268
    %v1270 = vmul.f32 %v1269, %v113
    %v1271 = vmul.f32 %v1269, %v114
    %v1272 = vmul.f32 %v1269, %v115
    %v1276 = vrot.slane %v1270, 2
    %v1277 = vrot.slane %v1271, 2
    %v1278 = vsel %vm171, %v1276, %v1277
    %v1279 = vrot.slane %v1272, 2
    %v1280 = vsel %vm171, %v1277, %v1279
    %1281 = vrot.lane.b32.xlu0 %v1278, 124
    %v1282 = vpop.permute.xlu0 %1281
    %1283 = vrot.lane.b32.xlu0 %v1280, 124
    %v1284 = vpop.permute.xlu0 %1283
    %v1287 = vadd.f32 %v1266, %v1282
    %v1288 = vadd.f32 %v1267, %v1284
    %s1289 = sld [smem:[#allocation6 + $0x19]]
    %v1290 = vstv %s1289
    %v1291 = vmul.f32 %v1290, %v87
    %v1292 = vmul.f32 %v1290, %v88
    %v1293 = vmul.f32 %v1290, %v89
    %v1297 = vrot.slane %v1291, 3
    %v1298 = vrot.slane %v1292, 3
    %v1299 = vsel %vm206, %v1297, %v1298
    %v1300 = vrot.slane %v1293, 3
    %v1301 = vsel %vm206, %v1298, %v1300
    %1302 = vrot.lane.b32.xlu0 %v1299, 124
    %v1303 = vpop.permute.xlu0 %1302
    %1304 = vrot.lane.b32.xlu0 %v1301, 124
    %v1305 = vpop.permute.xlu0 %1304
    %v1308 = vadd.f32 %v1287, %v1303
    %v1309 = vadd.f32 %v1288, %v1305
    %s1310 = sld [smem:[#allocation6 + $0x99]]
    %v1311 = vstv %s1310
    %v1312 = vmul.f32 %v1311, %v113
    %v1313 = vmul.f32 %v1311, %v114
    %v1314 = vmul.f32 %v1311, %v115
    %v1318 = vrot.slane %v1312, 3
    %v1319 = vrot.slane %v1313, 3
    %v1320 = vsel %vm206, %v1318, %v1319
    %v1321 = vrot.slane %v1314, 3
    %v1322 = vsel %vm206, %v1319, %v1321
    %1323 = vrot.lane.b32.xlu0 %v1320, 124
    %v1324 = vpop.permute.xlu0 %1323
    %1325 = vrot.lane.b32.xlu0 %v1322, 124
    %v1326 = vpop.permute.xlu0 %1325
    %v1329 = vadd.f32 %v1308, %v1324
    %v1330 = vadd.f32 %v1309, %v1326
    %s1331 = sld [smem:[#allocation6 + $0x20]]
    %v1332 = vstv %s1331
    %v1333 = vmul.f32 %v1332, %v87
    %v1334 = vmul.f32 %v1332, %v88
    %v1335 = vmul.f32 %v1332, %v89
    %v1339 = vrot.slane %v1333, 4
    %v1340 = vrot.slane %v1334, 4
    %v1341 = vsel %vm241, %v1339, %v1340
    %v1342 = vrot.slane %v1335, 4
    %v1343 = vsel %vm241, %v1340, %v1342
    %1344 = vrot.lane.b32.xlu0 %v1341, 124
    %v1345 = vpop.permute.xlu0 %1344
    %1346 = vrot.lane.b32.xlu0 %v1343, 124
    %v1347 = vpop.permute.xlu0 %1346
    %v1350 = vadd.f32 %v1329, %v1345
    %v1351 = vadd.f32 %v1330, %v1347
    %s1352 = sld [smem:[#allocation6 + $0xa0]]
    %v1353 = vstv %s1352
    %v1354 = vmul.f32 %v1353, %v113
    %v1355 = vmul.f32 %v1353, %v114
    %v1356 = vmul.f32 %v1353, %v115
    %v1360 = vrot.slane %v1354, 4
    %v1361 = vrot.slane %v1355, 4
    %v1362 = vsel %vm241, %v1360, %v1361
    %v1363 = vrot.slane %v1356, 4
    %v1364 = vsel %vm241, %v1361, %v1363
    %1365 = vrot.lane.b32.xlu0 %v1362, 124
    %v1366 = vpop.permute.xlu0 %1365
    %1367 = vrot.lane.b32.xlu0 %v1364, 124
    %v1368 = vpop.permute.xlu0 %1367
    %v1371 = vadd.f32 %v1350, %v1366
    %v1372 = vadd.f32 %v1351, %v1368
    %s1373 = sld [smem:[#allocation6 + $0x27]]
    %v1374 = vstv %s1373
    %v1375 = vmul.f32 %v1374, %v87
    %v1376 = vmul.f32 %v1374, %v88
    %v1377 = vmul.f32 %v1374, %v89
    %v1381 = vrot.slane %v1375, 5
    %v1382 = vrot.slane %v1376, 5
    %v1383 = vsel %vm63, %v1381, %v1382
    %v1384 = vrot.slane %v1377, 5
    %v1385 = vsel %vm63, %v1382, %v1384
    %1386 = vrot.lane.b32.xlu0 %v1383, 124
    %v1387 = vpop.permute.xlu0 %1386
    %1388 = vrot.lane.b32.xlu0 %v1385, 124
    %v1389 = vpop.permute.xlu0 %1388
    %v1392 = vadd.f32 %v1371, %v1387
    %v1393 = vadd.f32 %v1372, %v1389
    %s1394 = sld [smem:[#allocation6 + $0xa7]]
    %v1395 = vstv %s1394
    %v1396 = vmul.f32 %v1395, %v113
    %v1397 = vmul.f32 %v1395, %v114
    %v1398 = vmul.f32 %v1395, %v115
    %v1402 = vrot.slane %v1396, 5
    %v1403 = vrot.slane %v1397, 5
    %v1404 = vsel %vm63, %v1402, %v1403
    %v1405 = vrot.slane %v1398, 5
    %v1406 = vsel %vm63, %v1403, %v1405
    %1407 = vrot.lane.b32.xlu0 %v1404, 124
    %v1408 = vpop.permute.xlu0 %1407
    %1409 = vrot.lane.b32.xlu0 %v1406, 124
    %v1410 = vpop.permute.xlu0 %1409
    %v1413 = vadd.f32 %v1392, %v1408
    %v1414 = vadd.f32 %v1393, %v1410
    %s1415 = sld [smem:[#allocation6 + $0x2e]]
    %v1416 = vstv %s1415
    %v1417 = vmul.f32 %v1416, %v87
    %v1418 = vmul.f32 %v1416, %v88
    %v1419 = vmul.f32 %v1416, %v89
    %v1423 = vrot.slane %v1417, 6
    %v1424 = vrot.slane %v1418, 6
    %v1425 = vsel %vm310, %v1423, %v1424
    %v1426 = vrot.slane %v1419, 6
    %v1427 = vsel %vm310, %v1424, %v1426
    %1428 = vrot.lane.b32.xlu0 %v1425, 124
    %v1429 = vpop.permute.xlu0 %1428
    %1430 = vrot.lane.b32.xlu0 %v1427, 124
    %v1431 = vpop.permute.xlu0 %1430
    %v1434 = vadd.f32 %v1413, %v1429
    %v1435 = vadd.f32 %v1414, %v1431
    %s1436 = sld [smem:[#allocation6 + $0xae]]
    %v1437 = vstv %s1436
    %v1438 = vmul.f32 %v1437, %v113
    %v1439 = vmul.f32 %v1437, %v114
    %v1440 = vmul.f32 %v1437, %v115
    %v1444 = vrot.slane %v1438, 6
    %v1445 = vrot.slane %v1439, 6
    %v1446 = vsel %vm310, %v1444, %v1445
    %v1447 = vrot.slane %v1440, 6
    %v1448 = vsel %vm310, %v1445, %v1447
    %1449 = vrot.lane.b32.xlu0 %v1446, 124
    %v1450 = vpop.permute.xlu0 %1449
    %1451 = vrot.lane.b32.xlu0 %v1448, 124
    %v1452 = vpop.permute.xlu0 %1451
    %v1455 = vadd.f32 %v1434, %v1450
    %v1456 = vadd.f32 %v1435, %v1452
    %s1457 = sld [smem:[#allocation6 + $0x5]]
    %v1458 = vstv %s1457
    %v1459 = vmul.f32 %v1458, %v87
    %v1460 = vmul.f32 %v1458, %v88
    %1463 = vrot.lane.b32.xlu0 %v1459, 123
    %v1464 = vpop.permute.xlu0 %1463
    %1465 = vrot.lane.b32.xlu0 %v1460, 123
    %v1466 = vpop.permute.xlu0 %1465
    %v1469 = vadd.f32 %v1455, %v1464
    %v1470 = vadd.f32 %v1456, %v1466
    %s1471 = sld [smem:[#allocation6 + $0x85]]
    %v1472 = vstv %s1471
    %v1473 = vmul.f32 %v1472, %v113
    %v1474 = vmul.f32 %v1472, %v114
    %1477 = vrot.lane.b32.xlu0 %v1473, 123
    %v1478 = vpop.permute.xlu0 %1477
    %1479 = vrot.lane.b32.xlu0 %v1474, 123
    %v1480 = vpop.permute.xlu0 %1479
    %v1483 = vadd.f32 %v1469, %v1478
    %v1484 = vadd.f32 %v1470, %v1480
    %s1485 = sld [smem:[#allocation6 + $0xc]]
    %v1486 = vstv %s1485
    %v1487 = vmul.f32 %v1486, %v87
    %v1488 = vmul.f32 %v1486, %v88
    %v1489 = vmul.f32 %v1486, %v89
    %v1493 = vrot.slane %v1487, 1
    %v1494 = vrot.slane %v1488, 1
    %v1495 = vsel %vm136, %v1493, %v1494
    %v1496 = vrot.slane %v1489, 1
    %v1497 = vsel %vm136, %v1494, %v1496
    %1498 = vrot.lane.b32.xlu0 %v1495, 123
    %v1499 = vpop.permute.xlu0 %1498
    %1500 = vrot.lane.b32.xlu0 %v1497, 123
    %v1501 = vpop.permute.xlu0 %1500
    %v1504 = vadd.f32 %v1483, %v1499
    %v1505 = vadd.f32 %v1484, %v1501
    %s1506 = sld [smem:[#allocation6 + $0x8c]]
    %v1507 = vstv %s1506
    %v1508 = vmul.f32 %v1507, %v113
    %v1509 = vmul.f32 %v1507, %v114
    %v1510 = vmul.f32 %v1507, %v115
    %v1514 = vrot.slane %v1508, 1
    %v1515 = vrot.slane %v1509, 1
    %v1516 = vsel %vm136, %v1514, %v1515
    %v1517 = vrot.slane %v1510, 1
    %v1518 = vsel %vm136, %v1515, %v1517
    %1519 = vrot.lane.b32.xlu0 %v1516, 123
    %v1520 = vpop.permute.xlu0 %1519
    %1521 = vrot.lane.b32.xlu0 %v1518, 123
    %v1522 = vpop.permute.xlu0 %1521
    %v1525 = vadd.f32 %v1504, %v1520
    %v1526 = vadd.f32 %v1505, %v1522
    %s1527 = sld [smem:[#allocation6 + $0x13]]
    %v1528 = vstv %s1527
    %v1529 = vmul.f32 %v1528, %v87
    %v1530 = vmul.f32 %v1528, %v88
    %v1531 = vmul.f32 %v1528, %v89
    %v1535 = vrot.slane %v1529, 2
    %v1536 = vrot.slane %v1530, 2
    %v1537 = vsel %vm171, %v1535, %v1536
    %v1538 = vrot.slane %v1531, 2
    %v1539 = vsel %vm171, %v1536, %v1538
    %1540 = vrot.lane.b32.xlu0 %v1537, 123
    %v1541 = vpop.permute.xlu0 %1540
    %1542 = vrot.lane.b32.xlu0 %v1539, 123
    %v1543 = vpop.permute.xlu0 %1542
    %v1546 = vadd.f32 %v1525, %v1541
    %v1547 = vadd.f32 %v1526, %v1543
    %s1548 = sld [smem:[#allocation6 + $0x93]]
    %v1549 = vstv %s1548
    %v1550 = vmul.f32 %v1549, %v113
    %v1551 = vmul.f32 %v1549, %v114
    %v1552 = vmul.f32 %v1549, %v115
    %v1556 = vrot.slane %v1550, 2
    %v1557 = vrot.slane %v1551, 2
    %v1558 = vsel %vm171, %v1556, %v1557
    %v1559 = vrot.slane %v1552, 2
    %v1560 = vsel %vm171, %v1557, %v1559
    %1561 = vrot.lane.b32.xlu0 %v1558, 123
    %v1562 = vpop.permute.xlu0 %1561
    %1563 = vrot.lane.b32.xlu0 %v1560, 123
    %v1564 = vpop.permute.xlu0 %1563
    %v1567 = vadd.f32 %v1546, %v1562
    %v1568 = vadd.f32 %v1547, %v1564
    %s1569 = sld [smem:[#allocation6 + $0x1a]]
    %v1570 = vstv %s1569
    %v1571 = vmul.f32 %v1570, %v87
    %v1572 = vmul.f32 %v1570, %v88
    %v1573 = vmul.f32 %v1570, %v89
    %v1577 = vrot.slane %v1571, 3
    %v1578 = vrot.slane %v1572, 3
    %v1579 = vsel %vm206, %v1577, %v1578
    %v1580 = vrot.slane %v1573, 3
    %v1581 = vsel %vm206, %v1578, %v1580
    %1582 = vrot.lane.b32.xlu0 %v1579, 123
    %v1583 = vpop.permute.xlu0 %1582
    %1584 = vrot.lane.b32.xlu0 %v1581, 123
    %v1585 = vpop.permute.xlu0 %1584
    %v1588 = vadd.f32 %v1567, %v1583
    %v1589 = vadd.f32 %v1568, %v1585
    %s1590 = sld [smem:[#allocation6 + $0x9a]]
    %v1591 = vstv %s1590
    %v1592 = vmul.f32 %v1591, %v113
    %v1593 = vmul.f32 %v1591, %v114
    %v1594 = vmul.f32 %v1591, %v115
    %v1598 = vrot.slane %v1592, 3
    %v1599 = vrot.slane %v1593, 3
    %v1600 = vsel %vm206, %v1598, %v1599
    %v1601 = vrot.slane %v1594, 3
    %v1602 = vsel %vm206, %v1599, %v1601
    %1603 = vrot.lane.b32.xlu0 %v1600, 123
    %v1604 = vpop.permute.xlu0 %1603
    %1605 = vrot.lane.b32.xlu0 %v1602, 123
    %v1606 = vpop.permute.xlu0 %1605
    %v1609 = vadd.f32 %v1588, %v1604
    %v1610 = vadd.f32 %v1589, %v1606
    %s1611 = sld [smem:[#allocation6 + $0x21]]
    %v1612 = vstv %s1611
    %v1613 = vmul.f32 %v1612, %v87
    %v1614 = vmul.f32 %v1612, %v88
    %v1615 = vmul.f32 %v1612, %v89
    %v1619 = vrot.slane %v1613, 4
    %v1620 = vrot.slane %v1614, 4
    %v1621 = vsel %vm241, %v1619, %v1620
    %v1622 = vrot.slane %v1615, 4
    %v1623 = vsel %vm241, %v1620, %v1622
    %1624 = vrot.lane.b32.xlu0 %v1621, 123
    %v1625 = vpop.permute.xlu0 %1624
    %1626 = vrot.lane.b32.xlu0 %v1623, 123
    %v1627 = vpop.permute.xlu0 %1626
    %v1630 = vadd.f32 %v1609, %v1625
    %v1631 = vadd.f32 %v1610, %v1627
    %s1632 = sld [smem:[#allocation6 + $0xa1]]
    %v1633 = vstv %s1632
    %v1634 = vmul.f32 %v1633, %v113
    %v1635 = vmul.f32 %v1633, %v114
    %v1636 = vmul.f32 %v1633, %v115
    %v1640 = vrot.slane %v1634, 4
    %v1641 = vrot.slane %v1635, 4
    %v1642 = vsel %vm241, %v1640, %v1641
    %v1643 = vrot.slane %v1636, 4
    %v1644 = vsel %vm241, %v1641, %v1643
    %1645 = vrot.lane.b32.xlu0 %v1642, 123
    %v1646 = vpop.permute.xlu0 %1645
    %1647 = vrot.lane.b32.xlu0 %v1644, 123
    %v1648 = vpop.permute.xlu0 %1647
    %v1651 = vadd.f32 %v1630, %v1646
    %v1652 = vadd.f32 %v1631, %v1648
    %s1653 = sld [smem:[#allocation6 + $0x28]]
    %v1654 = vstv %s1653
    %v1655 = vmul.f32 %v1654, %v87
    %v1656 = vmul.f32 %v1654, %v88
    %v1657 = vmul.f32 %v1654, %v89
    %v1661 = vrot.slane %v1655, 5
    %v1662 = vrot.slane %v1656, 5
    %v1663 = vsel %vm63, %v1661, %v1662
    %v1664 = vrot.slane %v1657, 5
    %v1665 = vsel %vm63, %v1662, %v1664
    %1666 = vrot.lane.b32.xlu0 %v1663, 123
    %v1667 = vpop.permute.xlu0 %1666
    %1668 = vrot.lane.b32.xlu0 %v1665, 123
    %v1669 = vpop.permute.xlu0 %1668
    %v1672 = vadd.f32 %v1651, %v1667
    %v1673 = vadd.f32 %v1652, %v1669
    %s1674 = sld [smem:[#allocation6 + $0xa8]]
    %v1675 = vstv %s1674
    %v1676 = vmul.f32 %v1675, %v113
    %v1677 = vmul.f32 %v1675, %v114
    %v1678 = vmul.f32 %v1675, %v115
    %v1682 = vrot.slane %v1676, 5
    %v1683 = vrot.slane %v1677, 5
    %v1684 = vsel %vm63, %v1682, %v1683
    %v1685 = vrot.slane %v1678, 5
    %v1686 = vsel %vm63, %v1683, %v1685
    %1687 = vrot.lane.b32.xlu0 %v1684, 123
    %v1688 = vpop.permute.xlu0 %1687
    %1689 = vrot.lane.b32.xlu0 %v1686, 123
    %v1690 = vpop.permute.xlu0 %1689
    %v1693 = vadd.f32 %v1672, %v1688
    %v1694 = vadd.f32 %v1673, %v1690
    %s1695 = sld [smem:[#allocation6 + $0x2f]]
    %v1696 = vstv %s1695
    %v1697 = vmul.f32 %v1696, %v87
    %v1698 = vmul.f32 %v1696, %v88
    %v1699 = vmul.f32 %v1696, %v89
    %v1703 = vrot.slane %v1697, 6
    %v1704 = vrot.slane %v1698, 6
    %v1705 = vsel %vm310, %v1703, %v1704
    %v1706 = vrot.slane %v1699, 6
    %v1707 = vsel %vm310, %v1704, %v1706
    %1708 = vrot.lane.b32.xlu0 %v1705, 123
    %v1709 = vpop.permute.xlu0 %1708
    %1710 = vrot.lane.b32.xlu0 %v1707, 123
    %v1711 = vpop.permute.xlu0 %1710
    %v1714 = vadd.f32 %v1693, %v1709
    %v1715 = vadd.f32 %v1694, %v1711
    %s1716 = sld [smem:[#allocation6 + $0xaf]]
    %v1717 = vstv %s1716
    %v1718 = vmul.f32 %v1717, %v113
    %v1719 = vmul.f32 %v1717, %v114
    %v1720 = vmul.f32 %v1717, %v115
    %v1724 = vrot.slane %v1718, 6
    %v1725 = vrot.slane %v1719, 6
    %v1726 = vsel %vm310, %v1724, %v1725
    %v1727 = vrot.slane %v1720, 6
    %v1728 = vsel %vm310, %v1725, %v1727
    %1729 = vrot.lane.b32.xlu0 %v1726, 123
    %v1730 = vpop.permute.xlu0 %1729
    %1731 = vrot.lane.b32.xlu0 %v1728, 123
    %v1732 = vpop.permute.xlu0 %1731
    %v1735 = vadd.f32 %v1714, %v1730
    %v1736 = vadd.f32 %v1715, %v1732
    %s1737 = sld [smem:[#allocation6 + $0x6]]
    %v1738 = vstv %s1737
    %v1739 = vmul.f32 %v1738, %v87
    %v1740 = vmul.f32 %v1738, %v88
    %1743 = vrot.lane.b32.xlu0 %v1739, 122
    %v1744 = vpop.permute.xlu0 %1743
    %1745 = vrot.lane.b32.xlu0 %v1740, 122
    %v1746 = vpop.permute.xlu0 %1745
    %v1749 = vadd.f32 %v1735, %v1744
    %v1750 = vadd.f32 %v1736, %v1746
    %s1751 = sld [smem:[#allocation6 + $0x86]]
    %v1752 = vstv %s1751
    %v1753 = vmul.f32 %v1752, %v113
    %v1754 = vmul.f32 %v1752, %v114
    %1757 = vrot.lane.b32.xlu0 %v1753, 122
    %v1758 = vpop.permute.xlu0 %1757
    %1759 = vrot.lane.b32.xlu0 %v1754, 122
    %v1760 = vpop.permute.xlu0 %1759
    %v1763 = vadd.f32 %v1749, %v1758
    %v1764 = vadd.f32 %v1750, %v1760
    %s1765 = sld [smem:[#allocation6 + $0xd]]
    %v1766 = vstv %s1765
    %v1767 = vmul.f32 %v1766, %v87
    %v1768 = vmul.f32 %v1766, %v88
    %v1769 = vmul.f32 %v1766, %v89
    %v1773 = vrot.slane %v1767, 1
    %v1774 = vrot.slane %v1768, 1
    %v1775 = vsel %vm136, %v1773, %v1774
    %v1776 = vrot.slane %v1769, 1
    %v1777 = vsel %vm136, %v1774, %v1776
    %1778 = vrot.lane.b32.xlu0 %v1775, 122
    %v1779 = vpop.permute.xlu0 %1778
    %1780 = vrot.lane.b32.xlu0 %v1777, 122
    %v1781 = vpop.permute.xlu0 %1780
    %v1784 = vadd.f32 %v1763, %v1779
    %v1785 = vadd.f32 %v1764, %v1781
    %s1786 = sld [smem:[#allocation6 + $0x8d]]
    %v1787 = vstv %s1786
    %v1788 = vmul.f32 %v1787, %v113
    %v1789 = vmul.f32 %v1787, %v114
    %v1790 = vmul.f32 %v1787, %v115
    %v1794 = vrot.slane %v1788, 1
    %v1795 = vrot.slane %v1789, 1
    %v1796 = vsel %vm136, %v1794, %v1795
    %v1797 = vrot.slane %v1790, 1
    %v1798 = vsel %vm136, %v1795, %v1797
    %1799 = vrot.lane.b32.xlu0 %v1796, 122
    %v1800 = vpop.permute.xlu0 %1799
    %1801 = vrot.lane.b32.xlu0 %v1798, 122
    %v1802 = vpop.permute.xlu0 %1801
    %v1805 = vadd.f32 %v1784, %v1800
    %v1806 = vadd.f32 %v1785, %v1802
    %s1807 = sld [smem:[#allocation6 + $0x14]]
    %v1808 = vstv %s1807
    %v1809 = vmul.f32 %v1808, %v87
    %v1810 = vmul.f32 %v1808, %v88
    %v1811 = vmul.f32 %v1808, %v89
    %v1815 = vrot.slane %v1809, 2
    %v1816 = vrot.slane %v1810, 2
    %v1817 = vsel %vm171, %v1815, %v1816
    %v1818 = vrot.slane %v1811, 2
    %v1819 = vsel %vm171, %v1816, %v1818
    %1820 = vrot.lane.b32.xlu0 %v1817, 122
    %v1821 = vpop.permute.xlu0 %1820
    %1822 = vrot.lane.b32.xlu0 %v1819, 122
    %v1823 = vpop.permute.xlu0 %1822
    %v1826 = vadd.f32 %v1805, %v1821
    %v1827 = vadd.f32 %v1806, %v1823
    %s1828 = sld [smem:[#allocation6 + $0x94]]
    %v1829 = vstv %s1828
    %v1830 = vmul.f32 %v1829, %v113
    %v1831 = vmul.f32 %v1829, %v114
    %v1832 = vmul.f32 %v1829, %v115
    %v1836 = vrot.slane %v1830, 2
    %v1837 = vrot.slane %v1831, 2
    %v1838 = vsel %vm171, %v1836, %v1837
    %v1839 = vrot.slane %v1832, 2
    %v1840 = vsel %vm171, %v1837, %v1839
    %1841 = vrot.lane.b32.xlu0 %v1838, 122
    %v1842 = vpop.permute.xlu0 %1841
    %1843 = vrot.lane.b32.xlu0 %v1840, 122
    %v1844 = vpop.permute.xlu0 %1843
    %v1847 = vadd.f32 %v1826, %v1842
    %v1848 = vadd.f32 %v1827, %v1844
    %s1849 = sld [smem:[#allocation6 + $0x1b]]
    %v1850 = vstv %s1849
    %v1851 = vmul.f32 %v1850, %v87
    %v1852 = vmul.f32 %v1850, %v88
    %v1853 = vmul.f32 %v1850, %v89
    %v1857 = vrot.slane %v1851, 3
    %v1858 = vrot.slane %v1852, 3
    %v1859 = vsel %vm206, %v1857, %v1858
    %v1860 = vrot.slane %v1853, 3
    %v1861 = vsel %vm206, %v1858, %v1860
    %1862 = vrot.lane.b32.xlu0 %v1859, 122
    %v1863 = vpop.permute.xlu0 %1862
    %1864 = vrot.lane.b32.xlu0 %v1861, 122
    %v1865 = vpop.permute.xlu0 %1864
    %v1868 = vadd.f32 %v1847, %v1863
    %v1869 = vadd.f32 %v1848, %v1865
    %s1870 = sld [smem:[#allocation6 + $0x9b]]
    %v1871 = vstv %s1870
    %v1872 = vmul.f32 %v1871, %v113
    %v1873 = vmul.f32 %v1871, %v114
    %v1874 = vmul.f32 %v1871, %v115
    %v1878 = vrot.slane %v1872, 3
    %v1879 = vrot.slane %v1873, 3
    %v1880 = vsel %vm206, %v1878, %v1879
    %v1881 = vrot.slane %v1874, 3
    %v1882 = vsel %vm206, %v1879, %v1881
    %1883 = vrot.lane.b32.xlu0 %v1880, 122
    %v1884 = vpop.permute.xlu0 %1883
    %1885 = vrot.lane.b32.xlu0 %v1882, 122
    %v1886 = vpop.permute.xlu0 %1885
    %v1889 = vadd.f32 %v1868, %v1884
    %v1890 = vadd.f32 %v1869, %v1886
    %s1891 = sld [smem:[#allocation6 + $0x22]]
    %v1892 = vstv %s1891
    %v1893 = vmul.f32 %v1892, %v87
    %v1894 = vmul.f32 %v1892, %v88
    %v1895 = vmul.f32 %v1892, %v89
    %v1899 = vrot.slane %v1893, 4
    %v1900 = vrot.slane %v1894, 4
    %v1901 = vsel %vm241, %v1899, %v1900
    %v1902 = vrot.slane %v1895, 4
    %v1903 = vsel %vm241, %v1900, %v1902
    %1904 = vrot.lane.b32.xlu0 %v1901, 122
    %v1905 = vpop.permute.xlu0 %1904
    %1906 = vrot.lane.b32.xlu0 %v1903, 122
    %v1907 = vpop.permute.xlu0 %1906
    %v1910 = vadd.f32 %v1889, %v1905
    %v1911 = vadd.f32 %v1890, %v1907
    %s1912 = sld [smem:[#allocation6 + $0xa2]]
    %v1913 = vstv %s1912
    %v1914 = vmul.f32 %v1913, %v113
    %v1915 = vmul.f32 %v1913, %v114
    %v1916 = vmul.f32 %v1913, %v115
    %v1920 = vrot.slane %v1914, 4
    %v1921 = vrot.slane %v1915, 4
    %v1922 = vsel %vm241, %v1920, %v1921
    %v1923 = vrot.slane %v1916, 4
    %v1924 = vsel %vm241, %v1921, %v1923
    %1925 = vrot.lane.b32.xlu0 %v1922, 122
    %v1926 = vpop.permute.xlu0 %1925
    %1927 = vrot.lane.b32.xlu0 %v1924, 122
    %v1928 = vpop.permute.xlu0 %1927
    %v1931 = vadd.f32 %v1910, %v1926
    %v1932 = vadd.f32 %v1911, %v1928
    %s1933 = sld [smem:[#allocation6 + $0x29]]
    %v1934 = vstv %s1933
    %v1935 = vmul.f32 %v1934, %v87
    %v1936 = vmul.f32 %v1934, %v88
    %v1937 = vmul.f32 %v1934, %v89
    %v1941 = vrot.slane %v1935, 5
    %v1942 = vrot.slane %v1936, 5
    %v1943 = vsel %vm63, %v1941, %v1942
    %v1944 = vrot.slane %v1937, 5
    %v1945 = vsel %vm63, %v1942, %v1944
    %1946 = vrot.lane.b32.xlu0 %v1943, 122
    %v1947 = vpop.permute.xlu0 %1946
    %1948 = vrot.lane.b32.xlu0 %v1945, 122
    %v1949 = vpop.permute.xlu0 %1948
    %v1952 = vadd.f32 %v1931, %v1947
    %v1953 = vadd.f32 %v1932, %v1949
    %s1954 = sld [smem:[#allocation6 + $0xa9]]
    %v1955 = vstv %s1954
    %v1956 = vmul.f32 %v1955, %v113
    %v1957 = vmul.f32 %v1955, %v114
    %v1958 = vmul.f32 %v1955, %v115
    %v1962 = vrot.slane %v1956, 5
    %v1963 = vrot.slane %v1957, 5
    %v1964 = vsel %vm63, %v1962, %v1963
    %v1965 = vrot.slane %v1958, 5
    %v1966 = vsel %vm63, %v1963, %v1965
    %1967 = vrot.lane.b32.xlu0 %v1964, 122
    %v1968 = vpop.permute.xlu0 %1967
    %1969 = vrot.lane.b32.xlu0 %v1966, 122
    %v1970 = vpop.permute.xlu0 %1969
    %v1973 = vadd.f32 %v1952, %v1968
    %v1974 = vadd.f32 %v1953, %v1970
    %s1975 = sld [smem:[#allocation6 + $0x30]]
    %v1976 = vstv %s1975
    %v1977 = vmul.f32 %v1976, %v87
    %v1978 = vmul.f32 %v1976, %v88
    %v1979 = vmul.f32 %v1976, %v89
    %v1983 = vrot.slane %v1977, 6
    %v1984 = vrot.slane %v1978, 6
    %v1985 = vsel %vm310, %v1983, %v1984
    %v1986 = vrot.slane %v1979, 6
    %v1987 = vsel %vm310, %v1984, %v1986
    %1988 = vrot.lane.b32.xlu0 %v1985, 122
    %v1989 = vpop.permute.xlu0 %1988
    %1990 = vrot.lane.b32.xlu0 %v1987, 122
    %v1991 = vpop.permute.xlu0 %1990
    %v1994 = vadd.f32 %v1973, %v1989
    %v1995 = vadd.f32 %v1974, %v1991
    %s1996 = sld [smem:[#allocation6 + $0xb0]]
    %v1997 = vstv %s1996
    %v1998 = vmul.f32 %v1997, %v113
    %v1999 = vmul.f32 %v1997, %v114
    %v2000 = vmul.f32 %v1997, %v115
    %v2004 = vrot.slane %v1998, 6
    %v2005 = vrot.slane %v1999, 6
    %v2006 = vsel %vm310, %v2004, %v2005
    %v2007 = vrot.slane %v2000, 6
    %v2008 = vsel %vm310, %v2005, %v2007
    %2009 = vrot.lane.b32.xlu0 %v2006, 122
    %v2010 = vpop.permute.xlu0 %2009
    %2011 = vrot.lane.b32.xlu0 %v2008, 122
    %v2012 = vpop.permute.xlu0 %2011
    %v2015 = vadd.f32 %v1994, %v2010
    %v2016 = vadd.f32 %v1995, %v2012
    %v2017 = vsub.f32 0.0, %v2015
    %v2018 = vsub.f32 0.0, %v2016
    %v2019 = vmul.f32 %v2017, 1.442695
    %v2020 = vpow.pop %v2019
    %v2021 = vmul.f32 %v2018, 1.442695
    %v2022 = vpow.pop %v2021
    %v2023 = vadd.f32 %v2020, 1.0
    %v2024 = vadd.f32 %v2022, 1.0
    %v2025 = vrcp.pop %v2023
    %v2026 = vmul.f32 1.0, %v2025
    %v2027 = vrcp.pop %v2024
    %v2028 = vmul.f32 1.0, %v2027
    %vm2029 = vcmask 130048
    %2030 = vst.msk [vmem:[#allocation7] sm:$0xff] %vm2029, %v2026
    %2031 = vst.msk [vmem:[#allocation7 + $0x8] sm:$0xff] %vm2029, %v2028
    %s2032 = scalar_lea.vmem [#allocation2], 64
    %v2033 = vld [vmem:[%s2032] sm:$0xff]
    %v2034 = vld [vmem:[%s2032 + $0x8] sm:$0xff]
    loop: start=1, step=1, limit=4
    $region25: #{spatial_attention.1} parent=1 // loop_pre_header
      _
    $region26: #{spatial_attention.1} parent=1 // loop_header
      %s2036 = sphi 1, %s2040
      %p2037 = scmp.ge.s32.totalorder %s2036, 4
      %v2041 = vphi %v2033, %v2050
      %v2042 = vphi %v2034, %v2051
      %v2043 = vphi %v2033, %v2052
      %v2044 = vphi %v2034, %v2053
    $region27: #{spatial_attention.1} parent=1 // loop_header_branch
      %2039 = sbr.rel (%p2037) target = $region31
    $region28: #{spatial_attention.1} parent=1 // loop_body
      %s2045 = smul.u32 %s2036, 16
      %s2046 = sadd.s32 %s2045, 64
      %s2047 = scalar_lea.vmem [#allocation2], %s2046
      %v2048 = vld [vmem:[%s2047] sm:$0xff]
      %v2049 = vld [vmem:[%s2047 + $0x8] sm:$0xff]
      %v2050 = vadd.f32 %v2041, %v2048
      %v2051 = vadd.f32 %v2042, %v2049
      %v2052 = vmax.f32 %v2043, %v2048
      %v2053 = vmax.f32 %v2044, %v2049
    $region29: #{spatial_attention.1} parent=1 // loop_footer
      %s2040 = sadd.s32 1, %s2036
    $region30: #{spatial_attention.1} parent=1 // loop_footer_branch
      %2035 = sbr.rel target = $region26
    $region31: #{spatial_attention.1} parent=1 // loop_exit
      _
    %v2054 = vmul.f32 %v2041, 0.25
    %v2055 = vmul.f32 %v2042, 0.25
    %v2058 = vrot.slane %v2054, 5
    %v2059 = vrot.slane %v2055, 5
    %v2060 = vsel %vm63, %v2058, %v2059
    %v2063 = vsel %vm63, 0.0, %v2058
    %v2064 = vsel %vm63, %v2059, 0.0
    %2067 = vrot.lane.b32.xlu0 %v2063, 3
    %v2068 = vpop.permute.xlu0 %2067
    %2069 = vrot.lane.b32.xlu0 %v2060, 3
    %v2070 = vpop.permute.xlu0 %2069
    %2071 = vrot.lane.b32.xlu0 %v2064, 3
    %v2072 = vpop.permute.xlu0 %2071
    %v2076 = vsel %vm82, 0.0, %v2068
    %v2077 = vsel %vm82, 0.0, %v2070
    %v2078 = vsel %vm82, 0.0, %v2072
    %v2079 = vsel %vm86, %v2076, 0.0
    %v2080 = vsel %vm86, %v2077, 0.0
    %v2081 = vsel %vm86, %v2078, 0.0
    %v2084 = vrot.slane %v2043, 5
    %v2085 = vrot.slane %v2044, 5
    %v2086 = vsel %vm63, %v2084, %v2085
    %v2089 = vsel %vm63, 0.0, %v2084
    %v2090 = vsel %vm63, %v2085, 0.0
    %2093 = vrot.lane.b32.xlu0 %v2089, 3
    %v2094 = vpop.permute.xlu0 %2093
    %2095 = vrot.lane.b32.xlu0 %v2086, 3
    %v2096 = vpop.permute.xlu0 %2095
    %2097 = vrot.lane.b32.xlu0 %v2090, 3
    %v2098 = vpop.permute.xlu0 %2097
    %v2102 = vsel %vm82, 0.0, %v2094
    %v2103 = vsel %vm82, 0.0, %v2096
    %v2104 = vsel %vm82, 0.0, %v2098
    %v2105 = vsel %vm86, %v2102, 0.0
    %v2106 = vsel %vm86, %v2103, 0.0
    %v2107 = vsel %vm86, %v2104, 0.0
    %s2108 = sld [smem:[#allocation6]]
    %v2109 = vstv %s2108
    %v2110 = vmul.f32 %v2109, %v2079
    %v2111 = vmul.f32 %v2109, %v2080
    %v2112 = vadd.f32 %v2110, 0.0
    %v2113 = vadd.f32 %v2111, 0.0
    %s2114 = sld [smem:[#allocation6 + $0x80]]
    %v2115 = vstv %s2114
    %v2116 = vmul.f32 %v2115, %v2105
    %v2117 = vmul.f32 %v2115, %v2106
    %v2118 = vadd.f32 %v2112, %v2116
    %v2119 = vadd.f32 %v2113, %v2117
    %s2120 = sld [smem:[#allocation6 + $0x7]]
    %v2121 = vstv %s2120
    %v2122 = vmul.f32 %v2121, %v2079
    %v2123 = vmul.f32 %v2121, %v2080
    %v2124 = vmul.f32 %v2121, %v2081
    %v2128 = vrot.slane %v2122, 1
    %v2129 = vrot.slane %v2123, 1
    %v2130 = vsel %vm136, %v2128, %v2129
    %v2131 = vrot.slane %v2124, 1
    %v2132 = vsel %vm136, %v2129, %v2131
    %v2135 = vadd.f32 %v2118, %v2130
    %v2136 = vadd.f32 %v2119, %v2132
    %s2137 = sld [smem:[#allocation6 + $0x87]]
    %v2138 = vstv %s2137
    %v2139 = vmul.f32 %v2138, %v2105
    %v2140 = vmul.f32 %v2138, %v2106
    %v2141 = vmul.f32 %v2138, %v2107
    %v2145 = vrot.slane %v2139, 1
    %v2146 = vrot.slane %v2140, 1
    %v2147 = vsel %vm136, %v2145, %v2146
    %v2148 = vrot.slane %v2141, 1
    %v2149 = vsel %vm136, %v2146, %v2148
    %v2152 = vadd.f32 %v2135, %v2147
    %v2153 = vadd.f32 %v2136, %v2149
    %s2154 = sld [smem:[#allocation6 + $0xe]]
    %v2155 = vstv %s2154
    %v2156 = vmul.f32 %v2155, %v2079
    %v2157 = vmul.f32 %v2155, %v2080
    %v2158 = vmul.f32 %v2155, %v2081
    %v2162 = vrot.slane %v2156, 2
    %v2163 = vrot.slane %v2157, 2
    %v2164 = vsel %vm171, %v2162, %v2163
    %v2165 = vrot.slane %v2158, 2
    %v2166 = vsel %vm171, %v2163, %v2165
    %v2169 = vadd.f32 %v2152, %v2164
    %v2170 = vadd.f32 %v2153, %v2166
    %s2171 = sld [smem:[#allocation6 + $0x8e]]
    %v2172 = vstv %s2171
    %v2173 = vmul.f32 %v2172, %v2105
    %v2174 = vmul.f32 %v2172, %v2106
    %v2175 = vmul.f32 %v2172, %v2107
    %v2179 = vrot.slane %v2173, 2
    %v2180 = vrot.slane %v2174, 2
    %v2181 = vsel %vm171, %v2179, %v2180
    %v2182 = vrot.slane %v2175, 2
    %v2183 = vsel %vm171, %v2180, %v2182
    %v2186 = vadd.f32 %v2169, %v2181
    %v2187 = vadd.f32 %v2170, %v2183
    %s2188 = sld [smem:[#allocation6 + $0x15]]
    %v2189 = vstv %s2188
    %v2190 = vmul.f32 %v2189, %v2079
    %v2191 = vmul.f32 %v2189, %v2080
    %v2192 = vmul.f32 %v2189, %v2081
    %v2196 = vrot.slane %v2190, 3
    %v2197 = vrot.slane %v2191, 3
    %v2198 = vsel %vm206, %v2196, %v2197
    %v2199 = vrot.slane %v2192, 3
    %v2200 = vsel %vm206, %v2197, %v2199
    %v2203 = vadd.f32 %v2186, %v2198
    %v2204 = vadd.f32 %v2187, %v2200
    %s2205 = sld [smem:[#allocation6 + $0x95]]
    %v2206 = vstv %s2205
    %v2207 = vmul.f32 %v2206, %v2105
    %v2208 = vmul.f32 %v2206, %v2106
    %v2209 = vmul.f32 %v2206, %v2107
    %v2213 = vrot.slane %v2207, 3
    %v2214 = vrot.slane %v2208, 3
    %v2215 = vsel %vm206, %v2213, %v2214
    %v2216 = vrot.slane %v2209, 3
    %v2217 = vsel %vm206, %v2214, %v2216
    %v2220 = vadd.f32 %v2203, %v2215
    %v2221 = vadd.f32 %v2204, %v2217
    %s2222 = sld [smem:[#allocation6 + $0x1c]]
    %v2223 = vstv %s2222
    %v2224 = vmul.f32 %v2223, %v2079
    %v2225 = vmul.f32 %v2223, %v2080
    %v2226 = vmul.f32 %v2223, %v2081
    %v2230 = vrot.slane %v2224, 4
    %v2231 = vrot.slane %v2225, 4
    %v2232 = vsel %vm241, %v2230, %v2231
    %v2233 = vrot.slane %v2226, 4
    %v2234 = vsel %vm241, %v2231, %v2233
    %v2237 = vadd.f32 %v2220, %v2232
    %v2238 = vadd.f32 %v2221, %v2234
    %s2239 = sld [smem:[#allocation6 + $0x9c]]
    %v2240 = vstv %s2239
    %v2241 = vmul.f32 %v2240, %v2105
    %v2242 = vmul.f32 %v2240, %v2106
    %v2243 = vmul.f32 %v2240, %v2107
    %v2247 = vrot.slane %v2241, 4
    %v2248 = vrot.slane %v2242, 4
    %v2249 = vsel %vm241, %v2247, %v2248
    %v2250 = vrot.slane %v2243, 4
    %v2251 = vsel %vm241, %v2248, %v2250
    %v2254 = vadd.f32 %v2237, %v2249
    %v2255 = vadd.f32 %v2238, %v2251
    %s2256 = sld [smem:[#allocation6 + $0x23]]
    %v2257 = vstv %s2256
    %v2258 = vmul.f32 %v2257, %v2079
    %v2259 = vmul.f32 %v2257, %v2080
    %v2260 = vmul.f32 %v2257, %v2081
    %v2264 = vrot.slane %v2258, 5
    %v2265 = vrot.slane %v2259, 5
    %v2266 = vsel %vm63, %v2264, %v2265
    %v2267 = vrot.slane %v2260, 5
    %v2268 = vsel %vm63, %v2265, %v2267
    %v2271 = vadd.f32 %v2254, %v2266
    %v2272 = vadd.f32 %v2255, %v2268
    %s2273 = sld [smem:[#allocation6 + $0xa3]]
    %v2274 = vstv %s2273
    %v2275 = vmul.f32 %v2274, %v2105
    %v2276 = vmul.f32 %v2274, %v2106
    %v2277 = vmul.f32 %v2274, %v2107
    %v2281 = vrot.slane %v2275, 5
    %v2282 = vrot.slane %v2276, 5
    %v2283 = vsel %vm63, %v2281, %v2282
    %v2284 = vrot.slane %v2277, 5
    %v2285 = vsel %vm63, %v2282, %v2284
    %v2288 = vadd.f32 %v2271, %v2283
    %v2289 = vadd.f32 %v2272, %v2285
    %s2290 = sld [smem:[#allocation6 + $0x2a]]
    %v2291 = vstv %s2290
    %v2292 = vmul.f32 %v2291, %v2079
    %v2293 = vmul.f32 %v2291, %v2080
    %v2294 = vmul.f32 %v2291, %v2081
    %v2298 = vrot.slane %v2292, 6
    %v2299 = vrot.slane %v2293, 6
    %v2300 = vsel %vm310, %v2298, %v2299
    %v2301 = vrot.slane %v2294, 6
    %v2302 = vsel %vm310, %v2299, %v2301
    %v2305 = vadd.f32 %v2288, %v2300
    %v2306 = vadd.f32 %v2289, %v2302
    %s2307 = sld [smem:[#allocation6 + $0xaa]]
    %v2308 = vstv %s2307
    %v2309 = vmul.f32 %v2308, %v2105
    %v2310 = vmul.f32 %v2308, %v2106
    %v2311 = vmul.f32 %v2308, %v2107
    %v2315 = vrot.slane %v2309, 6
    %v2316 = vrot.slane %v2310, 6
    %v2317 = vsel %vm310, %v2315, %v2316
    %v2318 = vrot.slane %v2311, 6
    %v2319 = vsel %vm310, %v2316, %v2318
    %v2322 = vadd.f32 %v2305, %v2317
    %v2323 = vadd.f32 %v2306, %v2319
    %s2324 = sld [smem:[#allocation6 + $0x1]]
    %v2325 = vstv %s2324
    %v2326 = vmul.f32 %v2325, %v2079
    %v2327 = vmul.f32 %v2325, %v2080
    %2330 = vrot.lane.b32.xlu0 %v2326, 127
    %v2331 = vpop.permute.xlu0 %2330
    %2332 = vrot.lane.b32.xlu0 %v2327, 127
    %v2333 = vpop.permute.xlu0 %2332
    %v2336 = vadd.f32 %v2322, %v2331
    %v2337 = vadd.f32 %v2323, %v2333
    %s2338 = sld [smem:[#allocation6 + $0x81]]
    %v2339 = vstv %s2338
    %v2340 = vmul.f32 %v2339, %v2105
    %v2341 = vmul.f32 %v2339, %v2106
    %2344 = vrot.lane.b32.xlu0 %v2340, 127
    %v2345 = vpop.permute.xlu0 %2344
    %2346 = vrot.lane.b32.xlu0 %v2341, 127
    %v2347 = vpop.permute.xlu0 %2346
    %v2350 = vadd.f32 %v2336, %v2345
    %v2351 = vadd.f32 %v2337, %v2347
    %s2352 = sld [smem:[#allocation6 + $0x8]]
    %v2353 = vstv %s2352
    %v2354 = vmul.f32 %v2353, %v2079
    %v2355 = vmul.f32 %v2353, %v2080
    %v2356 = vmul.f32 %v2353, %v2081
    %v2360 = vrot.slane %v2354, 1
    %v2361 = vrot.slane %v2355, 1
    %v2362 = vsel %vm136, %v2360, %v2361
    %v2363 = vrot.slane %v2356, 1
    %v2364 = vsel %vm136, %v2361, %v2363
    %2365 = vrot.lane.b32.xlu0 %v2362, 127
    %v2366 = vpop.permute.xlu0 %2365
    %2367 = vrot.lane.b32.xlu0 %v2364, 127
    %v2368 = vpop.permute.xlu0 %2367
    %v2371 = vadd.f32 %v2350, %v2366
    %v2372 = vadd.f32 %v2351, %v2368
    %s2373 = sld [smem:[#allocation6 + $0x88]]
    %v2374 = vstv %s2373
    %v2375 = vmul.f32 %v2374, %v2105
    %v2376 = vmul.f32 %v2374, %v2106
    %v2377 = vmul.f32 %v2374, %v2107
    %v2381 = vrot.slane %v2375, 1
    %v2382 = vrot.slane %v2376, 1
    %v2383 = vsel %vm136, %v2381, %v2382
    %v2384 = vrot.slane %v2377, 1
    %v2385 = vsel %vm136, %v2382, %v2384
    %2386 = vrot.lane.b32.xlu0 %v2383, 127
    %v2387 = vpop.permute.xlu0 %2386
    %2388 = vrot.lane.b32.xlu0 %v2385, 127
    %v2389 = vpop.permute.xlu0 %2388
    %v2392 = vadd.f32 %v2371, %v2387
    %v2393 = vadd.f32 %v2372, %v2389
    %s2394 = sld [smem:[#allocation6 + $0xf]]
    %v2395 = vstv %s2394
    %v2396 = vmul.f32 %v2395, %v2079
    %v2397 = vmul.f32 %v2395, %v2080
    %v2398 = vmul.f32 %v2395, %v2081
    %v2402 = vrot.slane %v2396, 2
    %v2403 = vrot.slane %v2397, 2
    %v2404 = vsel %vm171, %v2402, %v2403
    %v2405 = vrot.slane %v2398, 2
    %v2406 = vsel %vm171, %v2403, %v2405
    %2407 = vrot.lane.b32.xlu0 %v2404, 127
    %v2408 = vpop.permute.xlu0 %2407
    %2409 = vrot.lane.b32.xlu0 %v2406, 127
    %v2410 = vpop.permute.xlu0 %2409
    %v2413 = vadd.f32 %v2392, %v2408
    %v2414 = vadd.f32 %v2393, %v2410
    %s2415 = sld [smem:[#allocation6 + $0x8f]]
    %v2416 = vstv %s2415
    %v2417 = vmul.f32 %v2416, %v2105
    %v2418 = vmul.f32 %v2416, %v2106
    %v2419 = vmul.f32 %v2416, %v2107
    %v2423 = vrot.slane %v2417, 2
    %v2424 = vrot.slane %v2418, 2
    %v2425 = vsel %vm171, %v2423, %v2424
    %v2426 = vrot.slane %v2419, 2
    %v2427 = vsel %vm171, %v2424, %v2426
    %2428 = vrot.lane.b32.xlu0 %v2425, 127
    %v2429 = vpop.permute.xlu0 %2428
    %2430 = vrot.lane.b32.xlu0 %v2427, 127
    %v2431 = vpop.permute.xlu0 %2430
    %v2434 = vadd.f32 %v2413, %v2429
    %v2435 = vadd.f32 %v2414, %v2431
    %s2436 = sld [smem:[#allocation6 + $0x16]]
    %v2437 = vstv %s2436
    %v2438 = vmul.f32 %v2437, %v2079
    %v2439 = vmul.f32 %v2437, %v2080
    %v2440 = vmul.f32 %v2437, %v2081
    %v2444 = vrot.slane %v2438, 3
    %v2445 = vrot.slane %v2439, 3
    %v2446 = vsel %vm206, %v2444, %v2445
    %v2447 = vrot.slane %v2440, 3
    %v2448 = vsel %vm206, %v2445, %v2447
    %2449 = vrot.lane.b32.xlu0 %v2446, 127
    %v2450 = vpop.permute.xlu0 %2449
    %2451 = vrot.lane.b32.xlu0 %v2448, 127
    %v2452 = vpop.permute.xlu0 %2451
    %v2455 = vadd.f32 %v2434, %v2450
    %v2456 = vadd.f32 %v2435, %v2452
    %s2457 = sld [smem:[#allocation6 + $0x96]]
    %v2458 = vstv %s2457
    %v2459 = vmul.f32 %v2458, %v2105
    %v2460 = vmul.f32 %v2458, %v2106
    %v2461 = vmul.f32 %v2458, %v2107
    %v2465 = vrot.slane %v2459, 3
    %v2466 = vrot.slane %v2460, 3
    %v2467 = vsel %vm206, %v2465, %v2466
    %v2468 = vrot.slane %v2461, 3
    %v2469 = vsel %vm206, %v2466, %v2468
    %2470 = vrot.lane.b32.xlu0 %v2467, 127
    %v2471 = vpop.permute.xlu0 %2470
    %2472 = vrot.lane.b32.xlu0 %v2469, 127
    %v2473 = vpop.permute.xlu0 %2472
    %v2476 = vadd.f32 %v2455, %v2471
    %v2477 = vadd.f32 %v2456, %v2473
    %s2478 = sld [smem:[#allocation6 + $0x1d]]
    %v2479 = vstv %s2478
    %v2480 = vmul.f32 %v2479, %v2079
    %v2481 = vmul.f32 %v2479, %v2080
    %v2482 = vmul.f32 %v2479, %v2081
    %v2486 = vrot.slane %v2480, 4
    %v2487 = vrot.slane %v2481, 4
    %v2488 = vsel %vm241, %v2486, %v2487
    %v2489 = vrot.slane %v2482, 4
    %v2490 = vsel %vm241, %v2487, %v2489
    %2491 = vrot.lane.b32.xlu0 %v2488, 127
    %v2492 = vpop.permute.xlu0 %2491
    %2493 = vrot.lane.b32.xlu0 %v2490, 127
    %v2494 = vpop.permute.xlu0 %2493
    %v2497 = vadd.f32 %v2476, %v2492
    %v2498 = vadd.f32 %v2477, %v2494
    %s2499 = sld [smem:[#allocation6 + $0x9d]]
    %v2500 = vstv %s2499
    %v2501 = vmul.f32 %v2500, %v2105
    %v2502 = vmul.f32 %v2500, %v2106
    %v2503 = vmul.f32 %v2500, %v2107
    %v2507 = vrot.slane %v2501, 4
    %v2508 = vrot.slane %v2502, 4
    %v2509 = vsel %vm241, %v2507, %v2508
    %v2510 = vrot.slane %v2503, 4
    %v2511 = vsel %vm241, %v2508, %v2510
    %2512 = vrot.lane.b32.xlu0 %v2509, 127
    %v2513 = vpop.permute.xlu0 %2512
    %2514 = vrot.lane.b32.xlu0 %v2511, 127
    %v2515 = vpop.permute.xlu0 %2514
    %v2518 = vadd.f32 %v2497, %v2513
    %v2519 = vadd.f32 %v2498, %v2515
    %s2520 = sld [smem:[#allocation6 + $0x24]]
    %v2521 = vstv %s2520
    %v2522 = vmul.f32 %v2521, %v2079
    %v2523 = vmul.f32 %v2521, %v2080
    %v2524 = vmul.f32 %v2521, %v2081
    %v2528 = vrot.slane %v2522, 5
    %v2529 = vrot.slane %v2523, 5
    %v2530 = vsel %vm63, %v2528, %v2529
    %v2531 = vrot.slane %v2524, 5
    %v2532 = vsel %vm63, %v2529, %v2531
    %2533 = vrot.lane.b32.xlu0 %v2530, 127
    %v2534 = vpop.permute.xlu0 %2533
    %2535 = vrot.lane.b32.xlu0 %v2532, 127
    %v2536 = vpop.permute.xlu0 %2535
    %v2539 = vadd.f32 %v2518, %v2534
    %v2540 = vadd.f32 %v2519, %v2536
    %s2541 = sld [smem:[#allocation6 + $0xa4]]
    %v2542 = vstv %s2541
    %v2543 = vmul.f32 %v2542, %v2105
    %v2544 = vmul.f32 %v2542, %v2106
    %v2545 = vmul.f32 %v2542, %v2107
    %v2549 = vrot.slane %v2543, 5
    %v2550 = vrot.slane %v2544, 5
    %v2551 = vsel %vm63, %v2549, %v2550
    %v2552 = vrot.slane %v2545, 5
    %v2553 = vsel %vm63, %v2550, %v2552
    %2554 = vrot.lane.b32.xlu0 %v2551, 127
    %v2555 = vpop.permute.xlu0 %2554
    %2556 = vrot.lane.b32.xlu0 %v2553, 127
    %v2557 = vpop.permute.xlu0 %2556
    %v2560 = vadd.f32 %v2539, %v2555
    %v2561 = vadd.f32 %v2540, %v2557
    %s2562 = sld [smem:[#allocation6 + $0x2b]]
    %v2563 = vstv %s2562
    %v2564 = vmul.f32 %v2563, %v2079
    %v2565 = vmul.f32 %v2563, %v2080
    %v2566 = vmul.f32 %v2563, %v2081
    %v2570 = vrot.slane %v2564, 6
    %v2571 = vrot.slane %v2565, 6
    %v2572 = vsel %vm310, %v2570, %v2571
    %v2573 = vrot.slane %v2566, 6
    %v2574 = vsel %vm310, %v2571, %v2573
    %2575 = vrot.lane.b32.xlu0 %v2572, 127
    %v2576 = vpop.permute.xlu0 %2575
    %2577 = vrot.lane.b32.xlu0 %v2574, 127
    %v2578 = vpop.permute.xlu0 %2577
    %v2581 = vadd.f32 %v2560, %v2576
    %v2582 = vadd.f32 %v2561, %v2578
    %s2583 = sld [smem:[#allocation6 + $0xab]]
    %v2584 = vstv %s2583
    %v2585 = vmul.f32 %v2584, %v2105
    %v2586 = vmul.f32 %v2584, %v2106
    %v2587 = vmul.f32 %v2584, %v2107
    %v2591 = vrot.slane %v2585, 6
    %v2592 = vrot.slane %v2586, 6
    %v2593 = vsel %vm310, %v2591, %v2592
    %v2594 = vrot.slane %v2587, 6
    %v2595 = vsel %vm310, %v2592, %v2594
    %2596 = vrot.lane.b32.xlu0 %v2593, 127
    %v2597 = vpop.permute.xlu0 %2596
    %2598 = vrot.lane.b32.xlu0 %v2595, 127
    %v2599 = vpop.permute.xlu0 %2598
    %v2602 = vadd.f32 %v2581, %v2597
    %v2603 = vadd.f32 %v2582, %v2599
    %s2604 = sld [smem:[#allocation6 + $0x2]]
    %v2605 = vstv %s2604
    %v2606 = vmul.f32 %v2605, %v2079
    %v2607 = vmul.f32 %v2605, %v2080
    %2610 = vrot.lane.b32.xlu0 %v2606, 126
    %v2611 = vpop.permute.xlu0 %2610
    %2612 = vrot.lane.b32.xlu0 %v2607, 126
    %v2613 = vpop.permute.xlu0 %2612
    %v2616 = vadd.f32 %v2602, %v2611
    %v2617 = vadd.f32 %v2603, %v2613
    %s2618 = sld [smem:[#allocation6 + $0x82]]
    %v2619 = vstv %s2618
    %v2620 = vmul.f32 %v2619, %v2105
    %v2621 = vmul.f32 %v2619, %v2106
    %2624 = vrot.lane.b32.xlu0 %v2620, 126
    %v2625 = vpop.permute.xlu0 %2624
    %2626 = vrot.lane.b32.xlu0 %v2621, 126
    %v2627 = vpop.permute.xlu0 %2626
    %v2630 = vadd.f32 %v2616, %v2625
    %v2631 = vadd.f32 %v2617, %v2627
    %s2632 = sld [smem:[#allocation6 + $0x9]]
    %v2633 = vstv %s2632
    %v2634 = vmul.f32 %v2633, %v2079
    %v2635 = vmul.f32 %v2633, %v2080
    %v2636 = vmul.f32 %v2633, %v2081
    %v2640 = vrot.slane %v2634, 1
    %v2641 = vrot.slane %v2635, 1
    %v2642 = vsel %vm136, %v2640, %v2641
    %v2643 = vrot.slane %v2636, 1
    %v2644 = vsel %vm136, %v2641, %v2643
    %2645 = vrot.lane.b32.xlu0 %v2642, 126
    %v2646 = vpop.permute.xlu0 %2645
    %2647 = vrot.lane.b32.xlu0 %v2644, 126
    %v2648 = vpop.permute.xlu0 %2647
    %v2651 = vadd.f32 %v2630, %v2646
    %v2652 = vadd.f32 %v2631, %v2648
    %s2653 = sld [smem:[#allocation6 + $0x89]]
    %v2654 = vstv %s2653
    %v2655 = vmul.f32 %v2654, %v2105
    %v2656 = vmul.f32 %v2654, %v2106
    %v2657 = vmul.f32 %v2654, %v2107
    %v2661 = vrot.slane %v2655, 1
    %v2662 = vrot.slane %v2656, 1
    %v2663 = vsel %vm136, %v2661, %v2662
    %v2664 = vrot.slane %v2657, 1
    %v2665 = vsel %vm136, %v2662, %v2664
    %2666 = vrot.lane.b32.xlu0 %v2663, 126
    %v2667 = vpop.permute.xlu0 %2666
    %2668 = vrot.lane.b32.xlu0 %v2665, 126
    %v2669 = vpop.permute.xlu0 %2668
    %v2672 = vadd.f32 %v2651, %v2667
    %v2673 = vadd.f32 %v2652, %v2669
    %s2674 = sld [smem:[#allocation6 + $0x10]]
    %v2675 = vstv %s2674
    %v2676 = vmul.f32 %v2675, %v2079
    %v2677 = vmul.f32 %v2675, %v2080
    %v2678 = vmul.f32 %v2675, %v2081
    %v2682 = vrot.slane %v2676, 2
    %v2683 = vrot.slane %v2677, 2
    %v2684 = vsel %vm171, %v2682, %v2683
    %v2685 = vrot.slane %v2678, 2
    %v2686 = vsel %vm171, %v2683, %v2685
    %2687 = vrot.lane.b32.xlu0 %v2684, 126
    %v2688 = vpop.permute.xlu0 %2687
    %2689 = vrot.lane.b32.xlu0 %v2686, 126
    %v2690 = vpop.permute.xlu0 %2689
    %v2693 = vadd.f32 %v2672, %v2688
    %v2694 = vadd.f32 %v2673, %v2690
    %s2695 = sld [smem:[#allocation6 + $0x90]]
    %v2696 = vstv %s2695
    %v2697 = vmul.f32 %v2696, %v2105
    %v2698 = vmul.f32 %v2696, %v2106
    %v2699 = vmul.f32 %v2696, %v2107
    %v2703 = vrot.slane %v2697, 2
    %v2704 = vrot.slane %v2698, 2
    %v2705 = vsel %vm171, %v2703, %v2704
    %v2706 = vrot.slane %v2699, 2
    %v2707 = vsel %vm171, %v2704, %v2706
    %2708 = vrot.lane.b32.xlu0 %v2705, 126
    %v2709 = vpop.permute.xlu0 %2708
    %2710 = vrot.lane.b32.xlu0 %v2707, 126
    %v2711 = vpop.permute.xlu0 %2710
    %v2714 = vadd.f32 %v2693, %v2709
    %v2715 = vadd.f32 %v2694, %v2711
    %s2716 = sld [smem:[#allocation6 + $0x17]]
    %v2717 = vstv %s2716
    %v2718 = vmul.f32 %v2717, %v2079
    %v2719 = vmul.f32 %v2717, %v2080
    %v2720 = vmul.f32 %v2717, %v2081
    %v2724 = vrot.slane %v2718, 3
    %v2725 = vrot.slane %v2719, 3
    %v2726 = vsel %vm206, %v2724, %v2725
    %v2727 = vrot.slane %v2720, 3
    %v2728 = vsel %vm206, %v2725, %v2727
    %2729 = vrot.lane.b32.xlu0 %v2726, 126
    %v2730 = vpop.permute.xlu0 %2729
    %2731 = vrot.lane.b32.xlu0 %v2728, 126
    %v2732 = vpop.permute.xlu0 %2731
    %v2735 = vadd.f32 %v2714, %v2730
    %v2736 = vadd.f32 %v2715, %v2732
    %s2737 = sld [smem:[#allocation6 + $0x97]]
    %v2738 = vstv %s2737
    %v2739 = vmul.f32 %v2738, %v2105
    %v2740 = vmul.f32 %v2738, %v2106
    %v2741 = vmul.f32 %v2738, %v2107
    %v2745 = vrot.slane %v2739, 3
    %v2746 = vrot.slane %v2740, 3
    %v2747 = vsel %vm206, %v2745, %v2746
    %v2748 = vrot.slane %v2741, 3
    %v2749 = vsel %vm206, %v2746, %v2748
    %2750 = vrot.lane.b32.xlu0 %v2747, 126
    %v2751 = vpop.permute.xlu0 %2750
    %2752 = vrot.lane.b32.xlu0 %v2749, 126
    %v2753 = vpop.permute.xlu0 %2752
    %v2756 = vadd.f32 %v2735, %v2751
    %v2757 = vadd.f32 %v2736, %v2753
    %s2758 = sld [smem:[#allocation6 + $0x1e]]
    %v2759 = vstv %s2758
    %v2760 = vmul.f32 %v2759, %v2079
    %v2761 = vmul.f32 %v2759, %v2080
    %v2762 = vmul.f32 %v2759, %v2081
    %v2766 = vrot.slane %v2760, 4
    %v2767 = vrot.slane %v2761, 4
    %v2768 = vsel %vm241, %v2766, %v2767
    %v2769 = vrot.slane %v2762, 4
    %v2770 = vsel %vm241, %v2767, %v2769
    %2771 = vrot.lane.b32.xlu0 %v2768, 126
    %v2772 = vpop.permute.xlu0 %2771
    %2773 = vrot.lane.b32.xlu0 %v2770, 126
    %v2774 = vpop.permute.xlu0 %2773
    %v2777 = vadd.f32 %v2756, %v2772
    %v2778 = vadd.f32 %v2757, %v2774
    %s2779 = sld [smem:[#allocation6 + $0x9e]]
    %v2780 = vstv %s2779
    %v2781 = vmul.f32 %v2780, %v2105
    %v2782 = vmul.f32 %v2780, %v2106
    %v2783 = vmul.f32 %v2780, %v2107
    %v2787 = vrot.slane %v2781, 4
    %v2788 = vrot.slane %v2782, 4
    %v2789 = vsel %vm241, %v2787, %v2788
    %v2790 = vrot.slane %v2783, 4
    %v2791 = vsel %vm241, %v2788, %v2790
    %2792 = vrot.lane.b32.xlu0 %v2789, 126
    %v2793 = vpop.permute.xlu0 %2792
    %2794 = vrot.lane.b32.xlu0 %v2791, 126
    %v2795 = vpop.permute.xlu0 %2794
    %v2798 = vadd.f32 %v2777, %v2793
    %v2799 = vadd.f32 %v2778, %v2795
    %s2800 = sld [smem:[#allocation6 + $0x25]]
    %v2801 = vstv %s2800
    %v2802 = vmul.f32 %v2801, %v2079
    %v2803 = vmul.f32 %v2801, %v2080
    %v2804 = vmul.f32 %v2801, %v2081
    %v2808 = vrot.slane %v2802, 5
    %v2809 = vrot.slane %v2803, 5
    %v2810 = vsel %vm63, %v2808, %v2809
    %v2811 = vrot.slane %v2804, 5
    %v2812 = vsel %vm63, %v2809, %v2811
    %2813 = vrot.lane.b32.xlu0 %v2810, 126
    %v2814 = vpop.permute.xlu0 %2813
    %2815 = vrot.lane.b32.xlu0 %v2812, 126
    %v2816 = vpop.permute.xlu0 %2815
    %v2819 = vadd.f32 %v2798, %v2814
    %v2820 = vadd.f32 %v2799, %v2816
    %s2821 = sld [smem:[#allocation6 + $0xa5]]
    %v2822 = vstv %s2821
    %v2823 = vmul.f32 %v2822, %v2105
    %v2824 = vmul.f32 %v2822, %v2106
    %v2825 = vmul.f32 %v2822, %v2107
    %v2829 = vrot.slane %v2823, 5
    %v2830 = vrot.slane %v2824, 5
    %v2831 = vsel %vm63, %v2829, %v2830
    %v2832 = vrot.slane %v2825, 5
    %v2833 = vsel %vm63, %v2830, %v2832
    %2834 = vrot.lane.b32.xlu0 %v2831, 126
    %v2835 = vpop.permute.xlu0 %2834
    %2836 = vrot.lane.b32.xlu0 %v2833, 126
    %v2837 = vpop.permute.xlu0 %2836
    %v2840 = vadd.f32 %v2819, %v2835
    %v2841 = vadd.f32 %v2820, %v2837
    %s2842 = sld [smem:[#allocation6 + $0x2c]]
    %v2843 = vstv %s2842
    %v2844 = vmul.f32 %v2843, %v2079
    %v2845 = vmul.f32 %v2843, %v2080
    %v2846 = vmul.f32 %v2843, %v2081
    %v2850 = vrot.slane %v2844, 6
    %v2851 = vrot.slane %v2845, 6
    %v2852 = vsel %vm310, %v2850, %v2851
    %v2853 = vrot.slane %v2846, 6
    %v2854 = vsel %vm310, %v2851, %v2853
    %2855 = vrot.lane.b32.xlu0 %v2852, 126
    %v2856 = vpop.permute.xlu0 %2855
    %2857 = vrot.lane.b32.xlu0 %v2854, 126
    %v2858 = vpop.permute.xlu0 %2857
    %v2861 = vadd.f32 %v2840, %v2856
    %v2862 = vadd.f32 %v2841, %v2858
    %s2863 = sld [smem:[#allocation6 + $0xac]]
    %v2864 = vstv %s2863
    %v2865 = vmul.f32 %v2864, %v2105
    %v2866 = vmul.f32 %v2864, %v2106
    %v2867 = vmul.f32 %v2864, %v2107
    %v2871 = vrot.slane %v2865, 6
    %v2872 = vrot.slane %v2866, 6
    %v2873 = vsel %vm310, %v2871, %v2872
    %v2874 = vrot.slane %v2867, 6
    %v2875 = vsel %vm310, %v2872, %v2874
    %2876 = vrot.lane.b32.xlu0 %v2873, 126
    %v2877 = vpop.permute.xlu0 %2876
    %2878 = vrot.lane.b32.xlu0 %v2875, 126
    %v2879 = vpop.permute.xlu0 %2878
    %v2882 = vadd.f32 %v2861, %v2877
    %v2883 = vadd.f32 %v2862, %v2879
    %s2884 = sld [smem:[#allocation6 + $0x3]]
    %v2885 = vstv %s2884
    %v2886 = vmul.f32 %v2885, %v2079
    %v2887 = vmul.f32 %v2885, %v2080
    %2890 = vrot.lane.b32.xlu0 %v2886, 125
    %v2891 = vpop.permute.xlu0 %2890
    %2892 = vrot.lane.b32.xlu0 %v2887, 125
    %v2893 = vpop.permute.xlu0 %2892
    %v2896 = vadd.f32 %v2882, %v2891
    %v2897 = vadd.f32 %v2883, %v2893
    %s2898 = sld [smem:[#allocation6 + $0x83]]
    %v2899 = vstv %s2898
    %v2900 = vmul.f32 %v2899, %v2105
    %v2901 = vmul.f32 %v2899, %v2106
    %2904 = vrot.lane.b32.xlu0 %v2900, 125
    %v2905 = vpop.permute.xlu0 %2904
    %2906 = vrot.lane.b32.xlu0 %v2901, 125
    %v2907 = vpop.permute.xlu0 %2906
    %v2910 = vadd.f32 %v2896, %v2905
    %v2911 = vadd.f32 %v2897, %v2907
    %s2912 = sld [smem:[#allocation6 + $0xa]]
    %v2913 = vstv %s2912
    %v2914 = vmul.f32 %v2913, %v2079
    %v2915 = vmul.f32 %v2913, %v2080
    %v2916 = vmul.f32 %v2913, %v2081
    %v2920 = vrot.slane %v2914, 1
    %v2921 = vrot.slane %v2915, 1
    %v2922 = vsel %vm136, %v2920, %v2921
    %v2923 = vrot.slane %v2916, 1
    %v2924 = vsel %vm136, %v2921, %v2923
    %2925 = vrot.lane.b32.xlu0 %v2922, 125
    %v2926 = vpop.permute.xlu0 %2925
    %2927 = vrot.lane.b32.xlu0 %v2924, 125
    %v2928 = vpop.permute.xlu0 %2927
    %v2931 = vadd.f32 %v2910, %v2926
    %v2932 = vadd.f32 %v2911, %v2928
    %s2933 = sld [smem:[#allocation6 + $0x8a]]
    %v2934 = vstv %s2933
    %v2935 = vmul.f32 %v2934, %v2105
    %v2936 = vmul.f32 %v2934, %v2106
    %v2937 = vmul.f32 %v2934, %v2107
    %v2941 = vrot.slane %v2935, 1
    %v2942 = vrot.slane %v2936, 1
    %v2943 = vsel %vm136, %v2941, %v2942
    %v2944 = vrot.slane %v2937, 1
    %v2945 = vsel %vm136, %v2942, %v2944
    %2946 = vrot.lane.b32.xlu0 %v2943, 125
    %v2947 = vpop.permute.xlu0 %2946
    %2948 = vrot.lane.b32.xlu0 %v2945, 125
    %v2949 = vpop.permute.xlu0 %2948
    %v2952 = vadd.f32 %v2931, %v2947
    %v2953 = vadd.f32 %v2932, %v2949
    %s2954 = sld [smem:[#allocation6 + $0x11]]
    %v2955 = vstv %s2954
    %v2956 = vmul.f32 %v2955, %v2079
    %v2957 = vmul.f32 %v2955, %v2080
    %v2958 = vmul.f32 %v2955, %v2081
    %v2962 = vrot.slane %v2956, 2
    %v2963 = vrot.slane %v2957, 2
    %v2964 = vsel %vm171, %v2962, %v2963
    %v2965 = vrot.slane %v2958, 2
    %v2966 = vsel %vm171, %v2963, %v2965
    %2967 = vrot.lane.b32.xlu0 %v2964, 125
    %v2968 = vpop.permute.xlu0 %2967
    %2969 = vrot.lane.b32.xlu0 %v2966, 125
    %v2970 = vpop.permute.xlu0 %2969
    %v2973 = vadd.f32 %v2952, %v2968
    %v2974 = vadd.f32 %v2953, %v2970
    %s2975 = sld [smem:[#allocation6 + $0x91]]
    %v2976 = vstv %s2975
    %v2977 = vmul.f32 %v2976, %v2105
    %v2978 = vmul.f32 %v2976, %v2106
    %v2979 = vmul.f32 %v2976, %v2107
    %v2983 = vrot.slane %v2977, 2
    %v2984 = vrot.slane %v2978, 2
    %v2985 = vsel %vm171, %v2983, %v2984
    %v2986 = vrot.slane %v2979, 2
    %v2987 = vsel %vm171, %v2984, %v2986
    %2988 = vrot.lane.b32.xlu0 %v2985, 125
    %v2989 = vpop.permute.xlu0 %2988
    %2990 = vrot.lane.b32.xlu0 %v2987, 125
    %v2991 = vpop.permute.xlu0 %2990
    %v2994 = vadd.f32 %v2973, %v2989
    %v2995 = vadd.f32 %v2974, %v2991
    %s2996 = sld [smem:[#allocation6 + $0x18]]
    %v2997 = vstv %s2996
    %v2998 = vmul.f32 %v2997, %v2079
    %v2999 = vmul.f32 %v2997, %v2080
    %v3000 = vmul.f32 %v2997, %v2081
    %v3004 = vrot.slane %v2998, 3
    %v3005 = vrot.slane %v2999, 3
    %v3006 = vsel %vm206, %v3004, %v3005
    %v3007 = vrot.slane %v3000, 3
    %v3008 = vsel %vm206, %v3005, %v3007
    %3009 = vrot.lane.b32.xlu0 %v3006, 125
    %v3010 = vpop.permute.xlu0 %3009
    %3011 = vrot.lane.b32.xlu0 %v3008, 125
    %v3012 = vpop.permute.xlu0 %3011
    %v3015 = vadd.f32 %v2994, %v3010
    %v3016 = vadd.f32 %v2995, %v3012
    %s3017 = sld [smem:[#allocation6 + $0x98]]
    %v3018 = vstv %s3017
    %v3019 = vmul.f32 %v3018, %v2105
    %v3020 = vmul.f32 %v3018, %v2106
    %v3021 = vmul.f32 %v3018, %v2107
    %v3025 = vrot.slane %v3019, 3
    %v3026 = vrot.slane %v3020, 3
    %v3027 = vsel %vm206, %v3025, %v3026
    %v3028 = vrot.slane %v3021, 3
    %v3029 = vsel %vm206, %v3026, %v3028
    %3030 = vrot.lane.b32.xlu0 %v3027, 125
    %v3031 = vpop.permute.xlu0 %3030
    %3032 = vrot.lane.b32.xlu0 %v3029, 125
    %v3033 = vpop.permute.xlu0 %3032
    %v3036 = vadd.f32 %v3015, %v3031
    %v3037 = vadd.f32 %v3016, %v3033
    %s3038 = sld [smem:[#allocation6 + $0x1f]]
    %v3039 = vstv %s3038
    %v3040 = vmul.f32 %v3039, %v2079
    %v3041 = vmul.f32 %v3039, %v2080
    %v3042 = vmul.f32 %v3039, %v2081
    %v3046 = vrot.slane %v3040, 4
    %v3047 = vrot.slane %v3041, 4
    %v3048 = vsel %vm241, %v3046, %v3047
    %v3049 = vrot.slane %v3042, 4
    %v3050 = vsel %vm241, %v3047, %v3049
    %3051 = vrot.lane.b32.xlu0 %v3048, 125
    %v3052 = vpop.permute.xlu0 %3051
    %3053 = vrot.lane.b32.xlu0 %v3050, 125
    %v3054 = vpop.permute.xlu0 %3053
    %v3057 = vadd.f32 %v3036, %v3052
    %v3058 = vadd.f32 %v3037, %v3054
    %s3059 = sld [smem:[#allocation6 + $0x9f]]
    %v3060 = vstv %s3059
    %v3061 = vmul.f32 %v3060, %v2105
    %v3062 = vmul.f32 %v3060, %v2106
    %v3063 = vmul.f32 %v3060, %v2107
    %v3067 = vrot.slane %v3061, 4
    %v3068 = vrot.slane %v3062, 4
    %v3069 = vsel %vm241, %v3067, %v3068
    %v3070 = vrot.slane %v3063, 4
    %v3071 = vsel %vm241, %v3068, %v3070
    %3072 = vrot.lane.b32.xlu0 %v3069, 125
    %v3073 = vpop.permute.xlu0 %3072
    %3074 = vrot.lane.b32.xlu0 %v3071, 125
    %v3075 = vpop.permute.xlu0 %3074
    %v3078 = vadd.f32 %v3057, %v3073
    %v3079 = vadd.f32 %v3058, %v3075
    %s3080 = sld [smem:[#allocation6 + $0x26]]
    %v3081 = vstv %s3080
    %v3082 = vmul.f32 %v3081, %v2079
    %v3083 = vmul.f32 %v3081, %v2080
    %v3084 = vmul.f32 %v3081, %v2081
    %v3088 = vrot.slane %v3082, 5
    %v3089 = vrot.slane %v3083, 5
    %v3090 = vsel %vm63, %v3088, %v3089
    %v3091 = vrot.slane %v3084, 5
    %v3092 = vsel %vm63, %v3089, %v3091
    %3093 = vrot.lane.b32.xlu0 %v3090, 125
    %v3094 = vpop.permute.xlu0 %3093
    %3095 = vrot.lane.b32.xlu0 %v3092, 125
    %v3096 = vpop.permute.xlu0 %3095
    %v3099 = vadd.f32 %v3078, %v3094
    %v3100 = vadd.f32 %v3079, %v3096
    %s3101 = sld [smem:[#allocation6 + $0xa6]]
    %v3102 = vstv %s3101
    %v3103 = vmul.f32 %v3102, %v2105
    %v3104 = vmul.f32 %v3102, %v2106
    %v3105 = vmul.f32 %v3102, %v2107
    %v3109 = vrot.slane %v3103, 5
    %v3110 = vrot.slane %v3104, 5
    %v3111 = vsel %vm63, %v3109, %v3110
    %v3112 = vrot.slane %v3105, 5
    %v3113 = vsel %vm63, %v3110, %v3112
    %3114 = vrot.lane.b32.xlu0 %v3111, 125
    %v3115 = vpop.permute.xlu0 %3114
    %3116 = vrot.lane.b32.xlu0 %v3113, 125
    %v3117 = vpop.permute.xlu0 %3116
    %v3120 = vadd.f32 %v3099, %v3115
    %v3121 = vadd.f32 %v3100, %v3117
    %s3122 = sld [smem:[#allocation6 + $0x2d]]
    %v3123 = vstv %s3122
    %v3124 = vmul.f32 %v3123, %v2079
    %v3125 = vmul.f32 %v3123, %v2080
    %v3126 = vmul.f32 %v3123, %v2081
    %v3130 = vrot.slane %v3124, 6
    %v3131 = vrot.slane %v3125, 6
    %v3132 = vsel %vm310, %v3130, %v3131
    %v3133 = vrot.slane %v3126, 6
    %v3134 = vsel %vm310, %v3131, %v3133
    %3135 = vrot.lane.b32.xlu0 %v3132, 125
    %v3136 = vpop.permute.xlu0 %3135
    %3137 = vrot.lane.b32.xlu0 %v3134, 125
    %v3138 = vpop.permute.xlu0 %3137
    %v3141 = vadd.f32 %v3120, %v3136
    %v3142 = vadd.f32 %v3121, %v3138
    %s3143 = sld [smem:[#allocation6 + $0xad]]
    %v3144 = vstv %s3143
    %v3145 = vmul.f32 %v3144, %v2105
    %v3146 = vmul.f32 %v3144, %v2106
    %v3147 = vmul.f32 %v3144, %v2107
    %v3151 = vrot.slane %v3145, 6
    %v3152 = vrot.slane %v3146, 6
    %v3153 = vsel %vm310, %v3151, %v3152
    %v3154 = vrot.slane %v3147, 6
    %v3155 = vsel %vm310, %v3152, %v3154
    %3156 = vrot.lane.b32.xlu0 %v3153, 125
    %v3157 = vpop.permute.xlu0 %3156
    %3158 = vrot.lane.b32.xlu0 %v3155, 125
    %v3159 = vpop.permute.xlu0 %3158
    %v3162 = vadd.f32 %v3141, %v3157
    %v3163 = vadd.f32 %v3142, %v3159
    %s3164 = sld [smem:[#allocation6 + $0x4]]
    %v3165 = vstv %s3164
    %v3166 = vmul.f32 %v3165, %v2079
    %v3167 = vmul.f32 %v3165, %v2080
    %3170 = vrot.lane.b32.xlu0 %v3166, 124
    %v3171 = vpop.permute.xlu0 %3170
    %3172 = vrot.lane.b32.xlu0 %v3167, 124
    %v3173 = vpop.permute.xlu0 %3172
    %v3176 = vadd.f32 %v3162, %v3171
    %v3177 = vadd.f32 %v3163, %v3173
    %s3178 = sld [smem:[#allocation6 + $0x84]]
    %v3179 = vstv %s3178
    %v3180 = vmul.f32 %v3179, %v2105
    %v3181 = vmul.f32 %v3179, %v2106
    %3184 = vrot.lane.b32.xlu0 %v3180, 124
    %v3185 = vpop.permute.xlu0 %3184
    %3186 = vrot.lane.b32.xlu0 %v3181, 124
    %v3187 = vpop.permute.xlu0 %3186
    %v3190 = vadd.f32 %v3176, %v3185
    %v3191 = vadd.f32 %v3177, %v3187
    %s3192 = sld [smem:[#allocation6 + $0xb]]
    %v3193 = vstv %s3192
    %v3194 = vmul.f32 %v3193, %v2079
    %v3195 = vmul.f32 %v3193, %v2080
    %v3196 = vmul.f32 %v3193, %v2081
    %v3200 = vrot.slane %v3194, 1
    %v3201 = vrot.slane %v3195, 1
    %v3202 = vsel %vm136, %v3200, %v3201
    %v3203 = vrot.slane %v3196, 1
    %v3204 = vsel %vm136, %v3201, %v3203
    %3205 = vrot.lane.b32.xlu0 %v3202, 124
    %v3206 = vpop.permute.xlu0 %3205
    %3207 = vrot.lane.b32.xlu0 %v3204, 124
    %v3208 = vpop.permute.xlu0 %3207
    %v3211 = vadd.f32 %v3190, %v3206
    %v3212 = vadd.f32 %v3191, %v3208
    %s3213 = sld [smem:[#allocation6 + $0x8b]]
    %v3214 = vstv %s3213
    %v3215 = vmul.f32 %v3214, %v2105
    %v3216 = vmul.f32 %v3214, %v2106
    %v3217 = vmul.f32 %v3214, %v2107
    %v3221 = vrot.slane %v3215, 1
    %v3222 = vrot.slane %v3216, 1
    %v3223 = vsel %vm136, %v3221, %v3222
    %v3224 = vrot.slane %v3217, 1
    %v3225 = vsel %vm136, %v3222, %v3224
    %3226 = vrot.lane.b32.xlu0 %v3223, 124
    %v3227 = vpop.permute.xlu0 %3226
    %3228 = vrot.lane.b32.xlu0 %v3225, 124
    %v3229 = vpop.permute.xlu0 %3228
    %v3232 = vadd.f32 %v3211, %v3227
    %v3233 = vadd.f32 %v3212, %v3229
    %s3234 = sld [smem:[#allocation6 + $0x12]]
    %v3235 = vstv %s3234
    %v3236 = vmul.f32 %v3235, %v2079
    %v3237 = vmul.f32 %v3235, %v2080
    %v3238 = vmul.f32 %v3235, %v2081
    %v3242 = vrot.slane %v3236, 2
    %v3243 = vrot.slane %v3237, 2
    %v3244 = vsel %vm171, %v3242, %v3243
    %v3245 = vrot.slane %v3238, 2
    %v3246 = vsel %vm171, %v3243, %v3245
    %3247 = vrot.lane.b32.xlu0 %v3244, 124
    %v3248 = vpop.permute.xlu0 %3247
    %3249 = vrot.lane.b32.xlu0 %v3246, 124
    %v3250 = vpop.permute.xlu0 %3249
    %v3253 = vadd.f32 %v3232, %v3248
    %v3254 = vadd.f32 %v3233, %v3250
    %s3255 = sld [smem:[#allocation6 + $0x92]]
    %v3256 = vstv %s3255
    %v3257 = vmul.f32 %v3256, %v2105
    %v3258 = vmul.f32 %v3256, %v2106
    %v3259 = vmul.f32 %v3256, %v2107
    %v3263 = vrot.slane %v3257, 2
    %v3264 = vrot.slane %v3258, 2
    %v3265 = vsel %vm171, %v3263, %v3264
    %v3266 = vrot.slane %v3259, 2
    %v3267 = vsel %vm171, %v3264, %v3266
    %3268 = vrot.lane.b32.xlu0 %v3265, 124
    %v3269 = vpop.permute.xlu0 %3268
    %3270 = vrot.lane.b32.xlu0 %v3267, 124
    %v3271 = vpop.permute.xlu0 %3270
    %v3274 = vadd.f32 %v3253, %v3269
    %v3275 = vadd.f32 %v3254, %v3271
    %s3276 = sld [smem:[#allocation6 + $0x19]]
    %v3277 = vstv %s3276
    %v3278 = vmul.f32 %v3277, %v2079
    %v3279 = vmul.f32 %v3277, %v2080
    %v3280 = vmul.f32 %v3277, %v2081
    %v3284 = vrot.slane %v3278, 3
    %v3285 = vrot.slane %v3279, 3
    %v3286 = vsel %vm206, %v3284, %v3285
    %v3287 = vrot.slane %v3280, 3
    %v3288 = vsel %vm206, %v3285, %v3287
    %3289 = vrot.lane.b32.xlu0 %v3286, 124
    %v3290 = vpop.permute.xlu0 %3289
    %3291 = vrot.lane.b32.xlu0 %v3288, 124
    %v3292 = vpop.permute.xlu0 %3291
    %v3295 = vadd.f32 %v3274, %v3290
    %v3296 = vadd.f32 %v3275, %v3292
    %s3297 = sld [smem:[#allocation6 + $0x99]]
    %v3298 = vstv %s3297
    %v3299 = vmul.f32 %v3298, %v2105
    %v3300 = vmul.f32 %v3298, %v2106
    %v3301 = vmul.f32 %v3298, %v2107
    %v3305 = vrot.slane %v3299, 3
    %v3306 = vrot.slane %v3300, 3
    %v3307 = vsel %vm206, %v3305, %v3306
    %v3308 = vrot.slane %v3301, 3
    %v3309 = vsel %vm206, %v3306, %v3308
    %3310 = vrot.lane.b32.xlu0 %v3307, 124
    %v3311 = vpop.permute.xlu0 %3310
    %3312 = vrot.lane.b32.xlu0 %v3309, 124
    %v3313 = vpop.permute.xlu0 %3312
    %v3316 = vadd.f32 %v3295, %v3311
    %v3317 = vadd.f32 %v3296, %v3313
    %s3318 = sld [smem:[#allocation6 + $0x20]]
    %v3319 = vstv %s3318
    %v3320 = vmul.f32 %v3319, %v2079
    %v3321 = vmul.f32 %v3319, %v2080
    %v3322 = vmul.f32 %v3319, %v2081
    %v3326 = vrot.slane %v3320, 4
    %v3327 = vrot.slane %v3321, 4
    %v3328 = vsel %vm241, %v3326, %v3327
    %v3329 = vrot.slane %v3322, 4
    %v3330 = vsel %vm241, %v3327, %v3329
    %3331 = vrot.lane.b32.xlu0 %v3328, 124
    %v3332 = vpop.permute.xlu0 %3331
    %3333 = vrot.lane.b32.xlu0 %v3330, 124
    %v3334 = vpop.permute.xlu0 %3333
    %v3337 = vadd.f32 %v3316, %v3332
    %v3338 = vadd.f32 %v3317, %v3334
    %s3339 = sld [smem:[#allocation6 + $0xa0]]
    %v3340 = vstv %s3339
    %v3341 = vmul.f32 %v3340, %v2105
    %v3342 = vmul.f32 %v3340, %v2106
    %v3343 = vmul.f32 %v3340, %v2107
    %v3347 = vrot.slane %v3341, 4
    %v3348 = vrot.slane %v3342, 4
    %v3349 = vsel %vm241, %v3347, %v3348
    %v3350 = vrot.slane %v3343, 4
    %v3351 = vsel %vm241, %v3348, %v3350
    %3352 = vrot.lane.b32.xlu0 %v3349, 124
    %v3353 = vpop.permute.xlu0 %3352
    %3354 = vrot.lane.b32.xlu0 %v3351, 124
    %v3355 = vpop.permute.xlu0 %3354
    %v3358 = vadd.f32 %v3337, %v3353
    %v3359 = vadd.f32 %v3338, %v3355
    %s3360 = sld [smem:[#allocation6 + $0x27]]
    %v3361 = vstv %s3360
    %v3362 = vmul.f32 %v3361, %v2079
    %v3363 = vmul.f32 %v3361, %v2080
    %v3364 = vmul.f32 %v3361, %v2081
    %v3368 = vrot.slane %v3362, 5
    %v3369 = vrot.slane %v3363, 5
    %v3370 = vsel %vm63, %v3368, %v3369
    %v3371 = vrot.slane %v3364, 5
    %v3372 = vsel %vm63, %v3369, %v3371
    %3373 = vrot.lane.b32.xlu0 %v3370, 124
    %v3374 = vpop.permute.xlu0 %3373
    %3375 = vrot.lane.b32.xlu0 %v3372, 124
    %v3376 = vpop.permute.xlu0 %3375
    %v3379 = vadd.f32 %v3358, %v3374
    %v3380 = vadd.f32 %v3359, %v3376
    %s3381 = sld [smem:[#allocation6 + $0xa7]]
    %v3382 = vstv %s3381
    %v3383 = vmul.f32 %v3382, %v2105
    %v3384 = vmul.f32 %v3382, %v2106
    %v3385 = vmul.f32 %v3382, %v2107
    %v3389 = vrot.slane %v3383, 5
    %v3390 = vrot.slane %v3384, 5
    %v3391 = vsel %vm63, %v3389, %v3390
    %v3392 = vrot.slane %v3385, 5
    %v3393 = vsel %vm63, %v3390, %v3392
    %3394 = vrot.lane.b32.xlu0 %v3391, 124
    %v3395 = vpop.permute.xlu0 %3394
    %3396 = vrot.lane.b32.xlu0 %v3393, 124
    %v3397 = vpop.permute.xlu0 %3396
    %v3400 = vadd.f32 %v3379, %v3395
    %v3401 = vadd.f32 %v3380, %v3397
    %s3402 = sld [smem:[#allocation6 + $0x2e]]
    %v3403 = vstv %s3402
    %v3404 = vmul.f32 %v3403, %v2079
    %v3405 = vmul.f32 %v3403, %v2080
    %v3406 = vmul.f32 %v3403, %v2081
    %v3410 = vrot.slane %v3404, 6
    %v3411 = vrot.slane %v3405, 6
    %v3412 = vsel %vm310, %v3410, %v3411
    %v3413 = vrot.slane %v3406, 6
    %v3414 = vsel %vm310, %v3411, %v3413
    %3415 = vrot.lane.b32.xlu0 %v3412, 124
    %v3416 = vpop.permute.xlu0 %3415
    %3417 = vrot.lane.b32.xlu0 %v3414, 124
    %v3418 = vpop.permute.xlu0 %3417
    %v3421 = vadd.f32 %v3400, %v3416
    %v3422 = vadd.f32 %v3401, %v3418
    %s3423 = sld [smem:[#allocation6 + $0xae]]
    %v3424 = vstv %s3423
    %v3425 = vmul.f32 %v3424, %v2105
    %v3426 = vmul.f32 %v3424, %v2106
    %v3427 = vmul.f32 %v3424, %v2107
    %v3431 = vrot.slane %v3425, 6
    %v3432 = vrot.slane %v3426, 6
    %v3433 = vsel %vm310, %v3431, %v3432
    %v3434 = vrot.slane %v3427, 6
    %v3435 = vsel %vm310, %v3432, %v3434
    %3436 = vrot.lane.b32.xlu0 %v3433, 124
    %v3437 = vpop.permute.xlu0 %3436
    %3438 = vrot.lane.b32.xlu0 %v3435, 124
    %v3439 = vpop.permute.xlu0 %3438
    %v3442 = vadd.f32 %v3421, %v3437
    %v3443 = vadd.f32 %v3422, %v3439
    %s3444 = sld [smem:[#allocation6 + $0x5]]
    %v3445 = vstv %s3444
    %v3446 = vmul.f32 %v3445, %v2079
    %v3447 = vmul.f32 %v3445, %v2080
    %3450 = vrot.lane.b32.xlu0 %v3446, 123
    %v3451 = vpop.permute.xlu0 %3450
    %3452 = vrot.lane.b32.xlu0 %v3447, 123
    %v3453 = vpop.permute.xlu0 %3452
    %v3456 = vadd.f32 %v3442, %v3451
    %v3457 = vadd.f32 %v3443, %v3453
    %s3458 = sld [smem:[#allocation6 + $0x85]]
    %v3459 = vstv %s3458
    %v3460 = vmul.f32 %v3459, %v2105
    %v3461 = vmul.f32 %v3459, %v2106
    %3464 = vrot.lane.b32.xlu0 %v3460, 123
    %v3465 = vpop.permute.xlu0 %3464
    %3466 = vrot.lane.b32.xlu0 %v3461, 123
    %v3467 = vpop.permute.xlu0 %3466
    %v3470 = vadd.f32 %v3456, %v3465
    %v3471 = vadd.f32 %v3457, %v3467
    %s3472 = sld [smem:[#allocation6 + $0xc]]
    %v3473 = vstv %s3472
    %v3474 = vmul.f32 %v3473, %v2079
    %v3475 = vmul.f32 %v3473, %v2080
    %v3476 = vmul.f32 %v3473, %v2081
    %v3480 = vrot.slane %v3474, 1
    %v3481 = vrot.slane %v3475, 1
    %v3482 = vsel %vm136, %v3480, %v3481
    %v3483 = vrot.slane %v3476, 1
    %v3484 = vsel %vm136, %v3481, %v3483
    %3485 = vrot.lane.b32.xlu0 %v3482, 123
    %v3486 = vpop.permute.xlu0 %3485
    %3487 = vrot.lane.b32.xlu0 %v3484, 123
    %v3488 = vpop.permute.xlu0 %3487
    %v3491 = vadd.f32 %v3470, %v3486
    %v3492 = vadd.f32 %v3471, %v3488
    %s3493 = sld [smem:[#allocation6 + $0x8c]]
    %v3494 = vstv %s3493
    %v3495 = vmul.f32 %v3494, %v2105
    %v3496 = vmul.f32 %v3494, %v2106
    %v3497 = vmul.f32 %v3494, %v2107
    %v3501 = vrot.slane %v3495, 1
    %v3502 = vrot.slane %v3496, 1
    %v3503 = vsel %vm136, %v3501, %v3502
    %v3504 = vrot.slane %v3497, 1
    %v3505 = vsel %vm136, %v3502, %v3504
    %3506 = vrot.lane.b32.xlu0 %v3503, 123
    %v3507 = vpop.permute.xlu0 %3506
    %3508 = vrot.lane.b32.xlu0 %v3505, 123
    %v3509 = vpop.permute.xlu0 %3508
    %v3512 = vadd.f32 %v3491, %v3507
    %v3513 = vadd.f32 %v3492, %v3509
    %s3514 = sld [smem:[#allocation6 + $0x13]]
    %v3515 = vstv %s3514
    %v3516 = vmul.f32 %v3515, %v2079
    %v3517 = vmul.f32 %v3515, %v2080
    %v3518 = vmul.f32 %v3515, %v2081
    %v3522 = vrot.slane %v3516, 2
    %v3523 = vrot.slane %v3517, 2
    %v3524 = vsel %vm171, %v3522, %v3523
    %v3525 = vrot.slane %v3518, 2
    %v3526 = vsel %vm171, %v3523, %v3525
    %3527 = vrot.lane.b32.xlu0 %v3524, 123
    %v3528 = vpop.permute.xlu0 %3527
    %3529 = vrot.lane.b32.xlu0 %v3526, 123
    %v3530 = vpop.permute.xlu0 %3529
    %v3533 = vadd.f32 %v3512, %v3528
    %v3534 = vadd.f32 %v3513, %v3530
    %s3535 = sld [smem:[#allocation6 + $0x93]]
    %v3536 = vstv %s3535
    %v3537 = vmul.f32 %v3536, %v2105
    %v3538 = vmul.f32 %v3536, %v2106
    %v3539 = vmul.f32 %v3536, %v2107
    %v3543 = vrot.slane %v3537, 2
    %v3544 = vrot.slane %v3538, 2
    %v3545 = vsel %vm171, %v3543, %v3544
    %v3546 = vrot.slane %v3539, 2
    %v3547 = vsel %vm171, %v3544, %v3546
    %3548 = vrot.lane.b32.xlu0 %v3545, 123
    %v3549 = vpop.permute.xlu0 %3548
    %3550 = vrot.lane.b32.xlu0 %v3547, 123
    %v3551 = vpop.permute.xlu0 %3550
    %v3554 = vadd.f32 %v3533, %v3549
    %v3555 = vadd.f32 %v3534, %v3551
    %s3556 = sld [smem:[#allocation6 + $0x1a]]
    %v3557 = vstv %s3556
    %v3558 = vmul.f32 %v3557, %v2079
    %v3559 = vmul.f32 %v3557, %v2080
    %v3560 = vmul.f32 %v3557, %v2081
    %v3564 = vrot.slane %v3558, 3
    %v3565 = vrot.slane %v3559, 3
    %v3566 = vsel %vm206, %v3564, %v3565
    %v3567 = vrot.slane %v3560, 3
    %v3568 = vsel %vm206, %v3565, %v3567
    %3569 = vrot.lane.b32.xlu0 %v3566, 123
    %v3570 = vpop.permute.xlu0 %3569
    %3571 = vrot.lane.b32.xlu0 %v3568, 123
    %v3572 = vpop.permute.xlu0 %3571
    %v3575 = vadd.f32 %v3554, %v3570
    %v3576 = vadd.f32 %v3555, %v3572
    %s3577 = sld [smem:[#allocation6 + $0x9a]]
    %v3578 = vstv %s3577
    %v3579 = vmul.f32 %v3578, %v2105
    %v3580 = vmul.f32 %v3578, %v2106
    %v3581 = vmul.f32 %v3578, %v2107
    %v3585 = vrot.slane %v3579, 3
    %v3586 = vrot.slane %v3580, 3
    %v3587 = vsel %vm206, %v3585, %v3586
    %v3588 = vrot.slane %v3581, 3
    %v3589 = vsel %vm206, %v3586, %v3588
    %3590 = vrot.lane.b32.xlu0 %v3587, 123
    %v3591 = vpop.permute.xlu0 %3590
    %3592 = vrot.lane.b32.xlu0 %v3589, 123
    %v3593 = vpop.permute.xlu0 %3592
    %v3596 = vadd.f32 %v3575, %v3591
    %v3597 = vadd.f32 %v3576, %v3593
    %s3598 = sld [smem:[#allocation6 + $0x21]]
    %v3599 = vstv %s3598
    %v3600 = vmul.f32 %v3599, %v2079
    %v3601 = vmul.f32 %v3599, %v2080
    %v3602 = vmul.f32 %v3599, %v2081
    %v3606 = vrot.slane %v3600, 4
    %v3607 = vrot.slane %v3601, 4
    %v3608 = vsel %vm241, %v3606, %v3607
    %v3609 = vrot.slane %v3602, 4
    %v3610 = vsel %vm241, %v3607, %v3609
    %3611 = vrot.lane.b32.xlu0 %v3608, 123
    %v3612 = vpop.permute.xlu0 %3611
    %3613 = vrot.lane.b32.xlu0 %v3610, 123
    %v3614 = vpop.permute.xlu0 %3613
    %v3617 = vadd.f32 %v3596, %v3612
    %v3618 = vadd.f32 %v3597, %v3614
    %s3619 = sld [smem:[#allocation6 + $0xa1]]
    %v3620 = vstv %s3619
    %v3621 = vmul.f32 %v3620, %v2105
    %v3622 = vmul.f32 %v3620, %v2106
    %v3623 = vmul.f32 %v3620, %v2107
    %v3627 = vrot.slane %v3621, 4
    %v3628 = vrot.slane %v3622, 4
    %v3629 = vsel %vm241, %v3627, %v3628
    %v3630 = vrot.slane %v3623, 4
    %v3631 = vsel %vm241, %v3628, %v3630
    %3632 = vrot.lane.b32.xlu0 %v3629, 123
    %v3633 = vpop.permute.xlu0 %3632
    %3634 = vrot.lane.b32.xlu0 %v3631, 123
    %v3635 = vpop.permute.xlu0 %3634
    %v3638 = vadd.f32 %v3617, %v3633
    %v3639 = vadd.f32 %v3618, %v3635
    %s3640 = sld [smem:[#allocation6 + $0x28]]
    %v3641 = vstv %s3640
    %v3642 = vmul.f32 %v3641, %v2079
    %v3643 = vmul.f32 %v3641, %v2080
    %v3644 = vmul.f32 %v3641, %v2081
    %v3648 = vrot.slane %v3642, 5
    %v3649 = vrot.slane %v3643, 5
    %v3650 = vsel %vm63, %v3648, %v3649
    %v3651 = vrot.slane %v3644, 5
    %v3652 = vsel %vm63, %v3649, %v3651
    %3653 = vrot.lane.b32.xlu0 %v3650, 123
    %v3654 = vpop.permute.xlu0 %3653
    %3655 = vrot.lane.b32.xlu0 %v3652, 123
    %v3656 = vpop.permute.xlu0 %3655
    %v3659 = vadd.f32 %v3638, %v3654
    %v3660 = vadd.f32 %v3639, %v3656
    %s3661 = sld [smem:[#allocation6 + $0xa8]]
    %v3662 = vstv %s3661
    %v3663 = vmul.f32 %v3662, %v2105
    %v3664 = vmul.f32 %v3662, %v2106
    %v3665 = vmul.f32 %v3662, %v2107
    %v3669 = vrot.slane %v3663, 5
    %v3670 = vrot.slane %v3664, 5
    %v3671 = vsel %vm63, %v3669, %v3670
    %v3672 = vrot.slane %v3665, 5
    %v3673 = vsel %vm63, %v3670, %v3672
    %3674 = vrot.lane.b32.xlu0 %v3671, 123
    %v3675 = vpop.permute.xlu0 %3674
    %3676 = vrot.lane.b32.xlu0 %v3673, 123
    %v3677 = vpop.permute.xlu0 %3676
    %v3680 = vadd.f32 %v3659, %v3675
    %v3681 = vadd.f32 %v3660, %v3677
    %s3682 = sld [smem:[#allocation6 + $0x2f]]
    %v3683 = vstv %s3682
    %v3684 = vmul.f32 %v3683, %v2079
    %v3685 = vmul.f32 %v3683, %v2080
    %v3686 = vmul.f32 %v3683, %v2081
    %v3690 = vrot.slane %v3684, 6
    %v3691 = vrot.slane %v3685, 6
    %v3692 = vsel %vm310, %v3690, %v3691
    %v3693 = vrot.slane %v3686, 6
    %v3694 = vsel %vm310, %v3691, %v3693
    %3695 = vrot.lane.b32.xlu0 %v3692, 123
    %v3696 = vpop.permute.xlu0 %3695
    %3697 = vrot.lane.b32.xlu0 %v3694, 123
    %v3698 = vpop.permute.xlu0 %3697
    %v3701 = vadd.f32 %v3680, %v3696
    %v3702 = vadd.f32 %v3681, %v3698
    %s3703 = sld [smem:[#allocation6 + $0xaf]]
    %v3704 = vstv %s3703
    %v3705 = vmul.f32 %v3704, %v2105
    %v3706 = vmul.f32 %v3704, %v2106
    %v3707 = vmul.f32 %v3704, %v2107
    %v3711 = vrot.slane %v3705, 6
    %v3712 = vrot.slane %v3706, 6
    %v3713 = vsel %vm310, %v3711, %v3712
    %v3714 = vrot.slane %v3707, 6
    %v3715 = vsel %vm310, %v3712, %v3714
    %3716 = vrot.lane.b32.xlu0 %v3713, 123
    %v3717 = vpop.permute.xlu0 %3716
    %3718 = vrot.lane.b32.xlu0 %v3715, 123
    %v3719 = vpop.permute.xlu0 %3718
    %v3722 = vadd.f32 %v3701, %v3717
    %v3723 = vadd.f32 %v3702, %v3719
    %s3724 = sld [smem:[#allocation6 + $0x6]]
    %v3725 = vstv %s3724
    %v3726 = vmul.f32 %v3725, %v2079
    %v3727 = vmul.f32 %v3725, %v2080
    %3730 = vrot.lane.b32.xlu0 %v3726, 122
    %v3731 = vpop.permute.xlu0 %3730
    %3732 = vrot.lane.b32.xlu0 %v3727, 122
    %v3733 = vpop.permute.xlu0 %3732
    %v3736 = vadd.f32 %v3722, %v3731
    %v3737 = vadd.f32 %v3723, %v3733
    %s3738 = sld [smem:[#allocation6 + $0x86]]
    %v3739 = vstv %s3738
    %v3740 = vmul.f32 %v3739, %v2105
    %v3741 = vmul.f32 %v3739, %v2106
    %3744 = vrot.lane.b32.xlu0 %v3740, 122
    %v3745 = vpop.permute.xlu0 %3744
    %3746 = vrot.lane.b32.xlu0 %v3741, 122
    %v3747 = vpop.permute.xlu0 %3746
    %v3750 = vadd.f32 %v3736, %v3745
    %v3751 = vadd.f32 %v3737, %v3747
    %s3752 = sld [smem:[#allocation6 + $0xd]]
    %v3753 = vstv %s3752
    %v3754 = vmul.f32 %v3753, %v2079
    %v3755 = vmul.f32 %v3753, %v2080
    %v3756 = vmul.f32 %v3753, %v2081
    %v3760 = vrot.slane %v3754, 1
    %v3761 = vrot.slane %v3755, 1
    %v3762 = vsel %vm136, %v3760, %v3761
    %v3763 = vrot.slane %v3756, 1
    %v3764 = vsel %vm136, %v3761, %v3763
    %3765 = vrot.lane.b32.xlu0 %v3762, 122
    %v3766 = vpop.permute.xlu0 %3765
    %3767 = vrot.lane.b32.xlu0 %v3764, 122
    %v3768 = vpop.permute.xlu0 %3767
    %v3771 = vadd.f32 %v3750, %v3766
    %v3772 = vadd.f32 %v3751, %v3768
    %s3773 = sld [smem:[#allocation6 + $0x8d]]
    %v3774 = vstv %s3773
    %v3775 = vmul.f32 %v3774, %v2105
    %v3776 = vmul.f32 %v3774, %v2106
    %v3777 = vmul.f32 %v3774, %v2107
    %v3781 = vrot.slane %v3775, 1
    %v3782 = vrot.slane %v3776, 1
    %v3783 = vsel %vm136, %v3781, %v3782
    %v3784 = vrot.slane %v3777, 1
    %v3785 = vsel %vm136, %v3782, %v3784
    %3786 = vrot.lane.b32.xlu0 %v3783, 122
    %v3787 = vpop.permute.xlu0 %3786
    %3788 = vrot.lane.b32.xlu0 %v3785, 122
    %v3789 = vpop.permute.xlu0 %3788
    %v3792 = vadd.f32 %v3771, %v3787
    %v3793 = vadd.f32 %v3772, %v3789
    %s3794 = sld [smem:[#allocation6 + $0x14]]
    %v3795 = vstv %s3794
    %v3796 = vmul.f32 %v3795, %v2079
    %v3797 = vmul.f32 %v3795, %v2080
    %v3798 = vmul.f32 %v3795, %v2081
    %v3802 = vrot.slane %v3796, 2
    %v3803 = vrot.slane %v3797, 2
    %v3804 = vsel %vm171, %v3802, %v3803
    %v3805 = vrot.slane %v3798, 2
    %v3806 = vsel %vm171, %v3803, %v3805
    %3807 = vrot.lane.b32.xlu0 %v3804, 122
    %v3808 = vpop.permute.xlu0 %3807
    %3809 = vrot.lane.b32.xlu0 %v3806, 122
    %v3810 = vpop.permute.xlu0 %3809
    %v3813 = vadd.f32 %v3792, %v3808
    %v3814 = vadd.f32 %v3793, %v3810
    %s3815 = sld [smem:[#allocation6 + $0x94]]
    %v3816 = vstv %s3815
    %v3817 = vmul.f32 %v3816, %v2105
    %v3818 = vmul.f32 %v3816, %v2106
    %v3819 = vmul.f32 %v3816, %v2107
    %v3823 = vrot.slane %v3817, 2
    %v3824 = vrot.slane %v3818, 2
    %v3825 = vsel %vm171, %v3823, %v3824
    %v3826 = vrot.slane %v3819, 2
    %v3827 = vsel %vm171, %v3824, %v3826
    %3828 = vrot.lane.b32.xlu0 %v3825, 122
    %v3829 = vpop.permute.xlu0 %3828
    %3830 = vrot.lane.b32.xlu0 %v3827, 122
    %v3831 = vpop.permute.xlu0 %3830
    %v3834 = vadd.f32 %v3813, %v3829
    %v3835 = vadd.f32 %v3814, %v3831
    %s3836 = sld [smem:[#allocation6 + $0x1b]]
    %v3837 = vstv %s3836
    %v3838 = vmul.f32 %v3837, %v2079
    %v3839 = vmul.f32 %v3837, %v2080
    %v3840 = vmul.f32 %v3837, %v2081
    %v3844 = vrot.slane %v3838, 3
    %v3845 = vrot.slane %v3839, 3
    %v3846 = vsel %vm206, %v3844, %v3845
    %v3847 = vrot.slane %v3840, 3
    %v3848 = vsel %vm206, %v3845, %v3847
    %3849 = vrot.lane.b32.xlu0 %v3846, 122
    %v3850 = vpop.permute.xlu0 %3849
    %3851 = vrot.lane.b32.xlu0 %v3848, 122
    %v3852 = vpop.permute.xlu0 %3851
    %v3855 = vadd.f32 %v3834, %v3850
    %v3856 = vadd.f32 %v3835, %v3852
    %s3857 = sld [smem:[#allocation6 + $0x9b]]
    %v3858 = vstv %s3857
    %v3859 = vmul.f32 %v3858, %v2105
    %v3860 = vmul.f32 %v3858, %v2106
    %v3861 = vmul.f32 %v3858, %v2107
    %v3865 = vrot.slane %v3859, 3
    %v3866 = vrot.slane %v3860, 3
    %v3867 = vsel %vm206, %v3865, %v3866
    %v3868 = vrot.slane %v3861, 3
    %v3869 = vsel %vm206, %v3866, %v3868
    %3870 = vrot.lane.b32.xlu0 %v3867, 122
    %v3871 = vpop.permute.xlu0 %3870
    %3872 = vrot.lane.b32.xlu0 %v3869, 122
    %v3873 = vpop.permute.xlu0 %3872
    %v3876 = vadd.f32 %v3855, %v3871
    %v3877 = vadd.f32 %v3856, %v3873
    %s3878 = sld [smem:[#allocation6 + $0x22]]
    %v3879 = vstv %s3878
    %v3880 = vmul.f32 %v3879, %v2079
    %v3881 = vmul.f32 %v3879, %v2080
    %v3882 = vmul.f32 %v3879, %v2081
    %v3886 = vrot.slane %v3880, 4
    %v3887 = vrot.slane %v3881, 4
    %v3888 = vsel %vm241, %v3886, %v3887
    %v3889 = vrot.slane %v3882, 4
    %v3890 = vsel %vm241, %v3887, %v3889
    %3891 = vrot.lane.b32.xlu0 %v3888, 122
    %v3892 = vpop.permute.xlu0 %3891
    %3893 = vrot.lane.b32.xlu0 %v3890, 122
    %v3894 = vpop.permute.xlu0 %3893
    %v3897 = vadd.f32 %v3876, %v3892
    %v3898 = vadd.f32 %v3877, %v3894
    %s3899 = sld [smem:[#allocation6 + $0xa2]]
    %v3900 = vstv %s3899
    %v3901 = vmul.f32 %v3900, %v2105
    %v3902 = vmul.f32 %v3900, %v2106
    %v3903 = vmul.f32 %v3900, %v2107
    %v3907 = vrot.slane %v3901, 4
    %v3908 = vrot.slane %v3902, 4
    %v3909 = vsel %vm241, %v3907, %v3908
    %v3910 = vrot.slane %v3903, 4
    %v3911 = vsel %vm241, %v3908, %v3910
    %3912 = vrot.lane.b32.xlu0 %v3909, 122
    %v3913 = vpop.permute.xlu0 %3912
    %3914 = vrot.lane.b32.xlu0 %v3911, 122
    %v3915 = vpop.permute.xlu0 %3914
    %v3918 = vadd.f32 %v3897, %v3913
    %v3919 = vadd.f32 %v3898, %v3915
    %s3920 = sld [smem:[#allocation6 + $0x29]]
    %v3921 = vstv %s3920
    %v3922 = vmul.f32 %v3921, %v2079
    %v3923 = vmul.f32 %v3921, %v2080
    %v3924 = vmul.f32 %v3921, %v2081
    %v3928 = vrot.slane %v3922, 5
    %v3929 = vrot.slane %v3923, 5
    %v3930 = vsel %vm63, %v3928, %v3929
    %v3931 = vrot.slane %v3924, 5
    %v3932 = vsel %vm63, %v3929, %v3931
    %3933 = vrot.lane.b32.xlu0 %v3930, 122
    %v3934 = vpop.permute.xlu0 %3933
    %3935 = vrot.lane.b32.xlu0 %v3932, 122
    %v3936 = vpop.permute.xlu0 %3935
    %v3939 = vadd.f32 %v3918, %v3934
    %v3940 = vadd.f32 %v3919, %v3936
    %s3941 = sld [smem:[#allocation6 + $0xa9]]
    %v3942 = vstv %s3941
    %v3943 = vmul.f32 %v3942, %v2105
    %v3944 = vmul.f32 %v3942, %v2106
    %v3945 = vmul.f32 %v3942, %v2107
    %v3949 = vrot.slane %v3943, 5
    %v3950 = vrot.slane %v3944, 5
    %v3951 = vsel %vm63, %v3949, %v3950
    %v3952 = vrot.slane %v3945, 5
    %v3953 = vsel %vm63, %v3950, %v3952
    %3954 = vrot.lane.b32.xlu0 %v3951, 122
    %v3955 = vpop.permute.xlu0 %3954
    %3956 = vrot.lane.b32.xlu0 %v3953, 122
    %v3957 = vpop.permute.xlu0 %3956
    %v3960 = vadd.f32 %v3939, %v3955
    %v3961 = vadd.f32 %v3940, %v3957
    %s3962 = sld [smem:[#allocation6 + $0x30]]
    %v3963 = vstv %s3962
    %v3964 = vmul.f32 %v3963, %v2079
    %v3965 = vmul.f32 %v3963, %v2080
    %v3966 = vmul.f32 %v3963, %v2081
    %v3970 = vrot.slane %v3964, 6
    %v3971 = vrot.slane %v3965, 6
    %v3972 = vsel %vm310, %v3970, %v3971
    %v3973 = vrot.slane %v3966, 6
    %v3974 = vsel %vm310, %v3971, %v3973
    %3975 = vrot.lane.b32.xlu0 %v3972, 122
    %v3976 = vpop.permute.xlu0 %3975
    %3977 = vrot.lane.b32.xlu0 %v3974, 122
    %v3978 = vpop.permute.xlu0 %3977
    %v3981 = vadd.f32 %v3960, %v3976
    %v3982 = vadd.f32 %v3961, %v3978
    %s3983 = sld [smem:[#allocation6 + $0xb0]]
    %v3984 = vstv %s3983
    %v3985 = vmul.f32 %v3984, %v2105
    %v3986 = vmul.f32 %v3984, %v2106
    %v3987 = vmul.f32 %v3984, %v2107
    %v3991 = vrot.slane %v3985, 6
    %v3992 = vrot.slane %v3986, 6
    %v3993 = vsel %vm310, %v3991, %v3992
    %v3994 = vrot.slane %v3987, 6
    %v3995 = vsel %vm310, %v3992, %v3994
    %3996 = vrot.lane.b32.xlu0 %v3993, 122
    %v3997 = vpop.permute.xlu0 %3996
    %3998 = vrot.lane.b32.xlu0 %v3995, 122
    %v3999 = vpop.permute.xlu0 %3998
    %v4002 = vadd.f32 %v3981, %v3997
    %v4003 = vadd.f32 %v3982, %v3999
    %v4004 = vsub.f32 0.0, %v4002
    %v4005 = vsub.f32 0.0, %v4003
    %v4006 = vmul.f32 %v4004, 1.442695
    %v4007 = vpow.pop %v4006
    %v4008 = vmul.f32 %v4005, 1.442695
    %v4009 = vpow.pop %v4008
    %v4010 = vadd.f32 %v4007, 1.0
    %v4011 = vadd.f32 %v4009, 1.0
    %v4012 = vrcp.pop %v4010
    %v4013 = vmul.f32 1.0, %v4012
    %v4014 = vrcp.pop %v4011
    %v4015 = vmul.f32 1.0, %v4014
    %s4016 = scalar_lea.vmem [#allocation7], 16
    %4017 = vst.msk [vmem:[%s4016] sm:$0xff] %vm2029, %v4013
    %4018 = vst.msk [vmem:[%s4016 + $0x8] sm:$0xff] %vm2029, %v4015
    // Predicated region
    $region32: #{spatial_attention.1} parent=1 // pred_check
      _
    $region33: #{spatial_attention.1} parent=1 // pred_check_branch
      %4020 = sbr.rel (0) target = $region35
    $region34: #{spatial_attention.1} parent=1 // pred_region
      %s4022 = ssub.s32 512, 512
      %4023 = vsyncadd [#allocation4], %s4022
      %s4024 = sshll.u32 [#allocation7], 4
      %s4025 = int_to_ptr.vmem [resolvable:$true] %s4024
      %4030 = dma.vmem_to_hbm [thread:$0]  %s4025, 512, %s2, [#allocation4], 128, 128, 8
    $region35: #{spatial_attention.1} parent=1 // pred_fallthru
      _
    // Predicated region
    $region36: #{spatial_attention.1} parent=1 // pred_check
      _
    $region37: #{spatial_attention.1} parent=1 // pred_check_branch
      %4032 = sbr.rel (0) target = $region39
    $region38: #{spatial_attention.1} parent=1 // pred_region
      %4033 = dma.done [#allocation4], 512
    $region39: #{spatial_attention.1} parent=1 // pred_fallthru
      _
    %4034 = vsyncpa [#allocation3], 1
    %4035 = vsyncpa [#allocation4], 1
    %4036 = vsyncpa [#allocation5], 1

</llo_original>
